<compile_context>
chip_gen: v5e
topology: v5e:2x2
jax: 0.10.0
libtpu: 0.0.40
codegen_flags: <defaults>
</compile_context>

<pallas_src>
import jax
import jax.numpy as jnp
from jax import lax
from jax.experimental import pallas as pl
from jax.experimental.pallas import tpu as pltpu


def bilstm2_kernel(x_ref, w1_ref, b1_ref, w2_ref, b2_ref, out_ref,
                   l1f, l1b, l2f, l2b):
    """Fused 2-layer bidirectional LSTM, everything VMEM-resident.

    x_ref  : (T, B, Cin)    time-major input sequence
    wK_ref : (CinK+H, 8H)   packed [[W_ih^T; W_hh^T]_fwd | [W_ih^T; W_hh^T]_bwd]
    bK_ref : (1, 8H)        packed (b_ih + b_hh) fwd | bwd
    out_ref: (B, T, 2H)     batch-first output, [fwd | bwd] on last axis
    l1f/l1b/l2f/l2b: (T, B, H) scratch holding per-direction hidden sequences
    """
    T, B, _ = x_ref.shape
    H = out_ref.shape[-1] // 2

    def lstm_cell(gates, c):
        # PyTorch gate order: i, f, g, o  (gates: (B, 4H), f32)
        i = jax.nn.sigmoid(gates[:, 0:H])
        f = jax.nn.sigmoid(gates[:, H:2 * H])
        g = jnp.tanh(gates[:, 2 * H:3 * H])
        o = jax.nn.sigmoid(gates[:, 3 * H:4 * H])
        c_new = f * c + i * g
        return o * jnp.tanh(c_new), c_new

    def bidir_layer(read_x, w_ref, b_ref, dst_f, dst_b):
        w = w_ref[...]                                            # (Cin+H, 8H), loop-invariant
        bias = jnp.broadcast_to(b_ref[...], (2 * B, 8 * H))       # broadcast hoisted out of loop

        def step(t, carry):
            h_f, c_f, h_b, c_b = carry
            x_f = read_x(t)                                       # (B, Cin)
            x_b = read_x(T - 1 - t)
            # both directions in one MXU dot: rows [0:B]=fwd, [B:2B]=bwd
            lhs = jnp.concatenate(
                [jnp.concatenate([x_f, h_f], axis=-1),
                 jnp.concatenate([x_b, h_b], axis=-1)], axis=0)   # (2B, Cin+H)
            gates = jnp.dot(lhs, w, preferred_element_type=jnp.float32) + bias  # (2B, 8H)
            h_f, c_f = lstm_cell(gates[:B, 0:4 * H], c_f)
            h_b, c_b = lstm_cell(gates[B:, 4 * H:8 * H], c_b)
            dst_f[t] = h_f                                        # forward hidden for time t
            dst_b[T - 1 - t] = h_b                                # backward hidden for time T-1-t
            return (h_f, c_f, h_b, c_b)

        z = jnp.zeros((B, H), jnp.float32)
        lax.fori_loop(0, T, step, (z, z, z, z), unroll=(T <= 16))

    # Layer 1: reads the raw sequence.
    bidir_layer(lambda t: x_ref[t], w1_ref, b1_ref, l1f, l1b)
    # Layer 2: reads the (B, 2H) concat of layer-1 fwd/bwd hidden states (VMEM scratch).
    bidir_layer(lambda t: jnp.concatenate([l1f[t], l1b[t]], axis=-1),
                w2_ref, b2_ref, l2f, l2b)

    # Assemble the batch-first, lane-dense output directly (no XLA concat/transpose).
    out_seq = jnp.concatenate([l2f[...], l2b[...]], axis=-1)      # (T, B, 2H)
    for b in range(B):                                            # B is small & static
        out_ref[b] = out_seq[:, b, :]                             # (T, 2H) slab per batch row


def init_params(key, in_channels, hidden_size, num_layers=2):
    """Deterministic synthetic LSTM weights in PyTorch nn.LSTM layout."""
    params = []
    for layer in range(num_layers):
        layer_in = in_channels if layer == 0 else 2 * hidden_size
        scale = 1.0 / jnp.sqrt(hidden_size)
        p = {}
        for d in ("f", "b"):
            key, k1, k2, k3, k4 = jax.random.split(key, 5)
            p[f"wih_{d}"] = jax.random.uniform(k1, (4 * hidden_size, layer_in),
                                               jnp.float32, -scale, scale)
            p[f"whh_{d}"] = jax.random.uniform(k2, (4 * hidden_size, hidden_size),
                                               jnp.float32, -scale, scale)
            p[f"bih_{d}"] = jax.random.uniform(k3, (4 * hidden_size,),
                                               jnp.float32, -scale, scale)
            p[f"bhh_{d}"] = jax.random.uniform(k4, (4 * hidden_size,),
                                               jnp.float32, -scale, scale)
        params.append(p)
    return params


def _pack_layer(p):
    """Pack one layer: W -> (Cin+H, 8H) = [fwd | bwd], bias -> (1, 8H)."""
    w_f = jnp.concatenate([p["wih_f"].T, p["whh_f"].T], axis=0)   # (Cin+H, 4H)
    w_b = jnp.concatenate([p["wih_b"].T, p["whh_b"].T], axis=0)   # (Cin+H, 4H)
    w = jnp.concatenate([w_f, w_b], axis=1)                       # (Cin+H, 8H)
    bias = jnp.concatenate([p["bih_f"] + p["bhh_f"], p["bih_b"] + p["bhh_b"]])
    return w, bias[None, :]


@jax.jit
def sequence_encoder_forward(x_nchw, params):
    """SequenceEncoder('rnn') forward: Im2Seq + EncoderWithRNN (2-layer bidirectional LSTM)."""
    B, C, Himg, W = x_nchw.shape
    T = Himg * W
    H = params[0]["whh_f"].shape[1]
    # Im2Seq: (B, C, H, W) -> (B, T, C); fed to the kernel time-major as (T, B, C).
    x_tbc = jnp.transpose(x_nchw.reshape(B, C, T), (2, 0, 1))
    w1, b1 = _pack_layer(params[0])
    w2, b2 = _pack_layer(params[1])
    return pl.pallas_call(
        bilstm2_kernel,
        out_shape=jax.ShapeDtypeStruct((B, T, 2 * H), jnp.float32),
        scratch_shapes=[pltpu.VMEM((T, B, H), jnp.float32) for _ in range(4)],
    )(x_tbc, w1, b1, w2, b2)


# --- pure-JAX reference for correctness check -------------------------------
def _lstm_ref_dir(x_tbc, wih, whh, bih, bhh, reverse):
    T, B, _ = x_tbc.shape
    H = whh.shape[1]
    xs = x_tbc[::-1] if reverse else x_tbc

    def step(carry, x_t):
        h, c = carry
        gates = x_t @ wih.T + h @ whh.T + bih + bhh
        i = jax.nn.sigmoid(gates[:, :H])
        f = jax.nn.sigmoid(gates[:, H:2 * H])
        g = jnp.tanh(gates[:, 2 * H:3 * H])
        o = jax.nn.sigmoid(gates[:, 3 * H:])
        c = f * c + i * g
        h = o * jnp.tanh(c)
        return (h, c), h

    init = (jnp.zeros((B, H), jnp.float32), jnp.zeros((B, H), jnp.float32))
    _, hs = lax.scan(step, init, xs)
    return hs[::-1] if reverse else hs


def _ref_forward(x_nchw, params):
    B, C, Himg, W = x_nchw.shape
    x = x_nchw.reshape(B, C, Himg * W).transpose(0, 2, 1).transpose(1, 0, 2)  # (T, B, C)
    for p in params:
        fwd = _lstm_ref_dir(x, p["wih_f"], p["whh_f"], p["bih_f"], p["bhh_f"], False)
        bwd = _lstm_ref_dir(x, p["wih_b"], p["whh_b"], p["bih_b"], p["bhh_b"], True)
        x = jnp.concatenate([fwd, bwd], axis=-1)
    return x.transpose(1, 0, 2)                                   # (B, T, 2H)


if __name__ == "__main__":
    key = jax.random.PRNGKey(0)
    kx, kp = jax.random.split(key)

    B, C, Himg, W = 2, 64, 1, 8          # OCR feature map: height already collapsed to 1
    hidden_size = 32                     # SequenceEncoder(..., hidden_size=32)
    x = jax.random.normal(kx, (B, C, Himg, W), jnp.float32)
    params = init_params(kp, in_channels=C, hidden_size=hidden_size)

    out = jax.block_until_ready(sequence_encoder_forward(x, params))
    assert out.shape == (B, Himg * W, 2 * hidden_size), out.shape

    ref = jax.block_until_ready(_ref_forward(x, params))
    # slightly loose tolerance: the fused kernel accumulates [x|h] @ [Wih;Whh] in one
    # K-pass and an 8H-wide dot, so f32 summation order differs from the reference.
    assert jnp.allclose(out, ref, atol=2e-5, rtol=2e-5), float(jnp.abs(out - ref).max())

    print("KERNEL_OK")
</pallas_src>

<mosaic_0001>
module attributes {stable_mosaic.version = 11 : i64} {
  func.func @bilstm2_kernel(%arg0: memref<8x2x64xf32, #tpu.memory_space<vmem>>, %arg1: memref<96x256xf32, #tpu.memory_space<vmem>>, %arg2: memref<1x256xf32, #tpu.memory_space<vmem>>, %arg3: memref<96x256xf32, #tpu.memory_space<vmem>>, %arg4: memref<1x256xf32, #tpu.memory_space<vmem>>, %arg5: memref<2x8x64xf32, #tpu.memory_space<vmem>>, %arg6: memref<8x2x32xf32, #tpu.memory_space<vmem>>, %arg7: memref<8x2x32xf32, #tpu.memory_space<vmem>>, %arg8: memref<8x2x32xf32, #tpu.memory_space<vmem>>, %arg9: memref<8x2x32xf32, #tpu.memory_space<vmem>>) attributes {dimension_semantics = [], scalar_prefetch = 0 : i64, scratch_operands = 4 : i64, tpu.core_type = #tpu.core_type<tc>} {
    %c0 = arith.constant 0 : index
    %c0_0 = arith.constant 0 : index
    %0 = vector.load %arg1[%c0, %c0_0] : memref<96x256xf32, #tpu.memory_space<vmem>>, vector<96x256xf32>
    %c0_1 = arith.constant 0 : index
    %c0_2 = arith.constant 0 : index
    %1 = vector.load %arg2[%c0_1, %c0_2] : memref<1x256xf32, #tpu.memory_space<vmem>>, vector<1x256xf32>
    %2 = vector.shape_cast %1 : vector<1x256xf32> to vector<1x256xf32>
    %3 = vector.broadcast %2 : vector<1x256xf32> to vector<4x256xf32>
    %cst = arith.constant 0.000000e+00 : f32
    %4 = vector.broadcast %cst : f32 to vector<2x32xf32>
    %c0_i32 = arith.constant 0 : i32
    %5 = arith.index_cast %c0_i32 : i32 to index
    %c0_3 = arith.constant 0 : index
    %c0_4 = arith.constant 0 : index
    %6 = vector.load %arg0[%5, %c0_3, %c0_4] : memref<8x2x64xf32, #tpu.memory_space<vmem>>, vector<1x2x64xf32>
    %7 = vector.shape_cast %6 : vector<1x2x64xf32> to vector<2x64xf32>
    %c7_i32 = arith.constant 7 : i32
    %8 = arith.subi %c7_i32, %c0_i32 : i32
    %9 = arith.index_cast %8 : i32 to index
    %c0_5 = arith.constant 0 : index
    %c0_6 = arith.constant 0 : index
    %10 = vector.load %arg0[%9, %c0_5, %c0_6] : memref<8x2x64xf32, #tpu.memory_space<vmem>>, vector<1x2x64xf32>
    %11 = vector.shape_cast %10 : vector<1x2x64xf32> to vector<2x64xf32>
    %12 = tpu.concatenate %7, %4 in 1 : vector<2x64xf32>, vector<2x32xf32> -> vector<2x96xf32>
    %13 = tpu.concatenate %11, %4 in 1 : vector<2x64xf32>, vector<2x32xf32> -> vector<2x96xf32>
    %14 = tpu.concatenate %12, %13 in 0 : vector<2x96xf32>, vector<2x96xf32> -> vector<4x96xf32>
    %cst_7 = arith.constant dense<0.000000e+00> : vector<4x256xf32>
    %15 = tpu.matmul %14, %0, %cst_7 {dimension_numbers = #tpu.dot_dimension_numbers<[1], [0], [0], [1], [0, 0, 1, 1], [], []>} : vector<4x96xf32>, vector<96x256xf32>, vector<4x256xf32> -> vector<4x256xf32>
    %16 = arith.addf %15, %3 : vector<4x256xf32>
    %17 = vector.extract_strided_slice %16 {offsets = [0, 0], sizes = [2, 128], strides = [1, 1]} : vector<4x256xf32> to vector<2x128xf32>
    %18 = vector.extract_strided_slice %17 {offsets = [0, 0], sizes = [2, 32], strides = [1, 1]} : vector<2x128xf32> to vector<2x32xf32>
    %19 = arith.negf %18 : vector<2x32xf32>
    %20 = math.exp %19 : vector<2x32xf32>
    %cst_8 = arith.constant 1.000000e+00 : f32
    %21 = vector.broadcast %cst_8 : f32 to vector<2x32xf32>
    %22 = arith.addf %21, %20 : vector<2x32xf32>
    %23 = arith.divf %21, %22 : vector<2x32xf32>
    %24 = vector.extract_strided_slice %17 {offsets = [0, 32], sizes = [2, 32], strides = [1, 1]} : vector<2x128xf32> to vector<2x32xf32>
    %25 = arith.negf %24 : vector<2x32xf32>
    %26 = math.exp %25 : vector<2x32xf32>
    %cst_9 = arith.constant 1.000000e+00 : f32
    %27 = vector.broadcast %cst_9 : f32 to vector<2x32xf32>
    %28 = arith.addf %27, %26 : vector<2x32xf32>
    %29 = arith.divf %27, %28 : vector<2x32xf32>
    %30 = vector.extract_strided_slice %17 {offsets = [0, 64], sizes = [2, 32], strides = [1, 1]} : vector<2x128xf32> to vector<2x32xf32>
    %31 = math.tanh %30 : vector<2x32xf32>
    %32 = vector.extract_strided_slice %17 {offsets = [0, 96], sizes = [2, 32], strides = [1, 1]} : vector<2x128xf32> to vector<2x32xf32>
    %33 = arith.negf %32 : vector<2x32xf32>
    %34 = math.exp %33 : vector<2x32xf32>
    %cst_10 = arith.constant 1.000000e+00 : f32
    %35 = vector.broadcast %cst_10 : f32 to vector<2x32xf32>
    %36 = arith.addf %35, %34 : vector<2x32xf32>
    %37 = arith.divf %35, %36 : vector<2x32xf32>
    %38 = arith.mulf %29, %4 : vector<2x32xf32>
    %39 = arith.mulf %23, %31 : vector<2x32xf32>
    %40 = arith.addf %38, %39 : vector<2x32xf32>
    %41 = math.tanh %40 : vector<2x32xf32>
    %42 = arith.mulf %37, %41 : vector<2x32xf32>
    %43 = vector.extract_strided_slice %16 {offsets = [2, 128], sizes = [2, 128], strides = [1, 1]} : vector<4x256xf32> to vector<2x128xf32>
    %44 = vector.extract_strided_slice %43 {offsets = [0, 0], sizes = [2, 32], strides = [1, 1]} : vector<2x128xf32> to vector<2x32xf32>
    %45 = arith.negf %44 : vector<2x32xf32>
    %46 = math.exp %45 : vector<2x32xf32>
    %cst_11 = arith.constant 1.000000e+00 : f32
    %47 = vector.broadcast %cst_11 : f32 to vector<2x32xf32>
    %48 = arith.addf %47, %46 : vector<2x32xf32>
    %49 = arith.divf %47, %48 : vector<2x32xf32>
    %50 = vector.extract_strided_slice %43 {offsets = [0, 32], sizes = [2, 32], strides = [1, 1]} : vector<2x128xf32> to vector<2x32xf32>
    %51 = arith.negf %50 : vector<2x32xf32>
    %52 = math.exp %51 : vector<2x32xf32>
    %cst_12 = arith.constant 1.000000e+00 : f32
    %53 = vector.broadcast %cst_12 : f32 to vector<2x32xf32>
    %54 = arith.addf %53, %52 : vector<2x32xf32>
    %55 = arith.divf %53, %54 : vector<2x32xf32>
    %56 = vector.extract_strided_slice %43 {offsets = [0, 64], sizes = [2, 32], strides = [1, 1]} : vector<2x128xf32> to vector<2x32xf32>
    %57 = math.tanh %56 : vector<2x32xf32>
    %58 = vector.extract_strided_slice %43 {offsets = [0, 96], sizes = [2, 32], strides = [1, 1]} : vector<2x128xf32> to vector<2x32xf32>
    %59 = arith.negf %58 : vector<2x32xf32>
    %60 = math.exp %59 : vector<2x32xf32>
    %cst_13 = arith.constant 1.000000e+00 : f32
    %61 = vector.broadcast %cst_13 : f32 to vector<2x32xf32>
    %62 = arith.addf %61, %60 : vector<2x32xf32>
    %63 = arith.divf %61, %62 : vector<2x32xf32>
    %64 = arith.mulf %55, %4 : vector<2x32xf32>
    %65 = arith.mulf %49, %57 : vector<2x32xf32>
    %66 = arith.addf %64, %65 : vector<2x32xf32>
    %67 = math.tanh %66 : vector<2x32xf32>
    %68 = arith.mulf %63, %67 : vector<2x32xf32>
    %69 = arith.index_cast %c0_i32 : i32 to index
    %c0_14 = arith.constant 0 : index
    %c0_15 = arith.constant 0 : index
    %70 = vector.load %arg6[%69, %c0_14, %c0_15] : memref<8x2x32xf32, #tpu.memory_space<vmem>>, vector<1x2x32xf32>
    %71 = vector.shape_cast %70 : vector<1x2x32xf32> to vector<2x32xf32>
    %72 = vector.shape_cast %42 : vector<2x32xf32> to vector<1x2x32xf32>
    tpu.vector_store %arg6[%69, %c0_14, %c0_15], %72 {strides = array<i32>} : memref<8x2x32xf32, #tpu.memory_space<vmem>>, vector<1x2x32xf32>,
    %c7_i32_16 = arith.constant 7 : i32
    %73 = arith.subi %c7_i32_16, %c0_i32 : i32
    %74 = arith.index_cast %73 : i32 to index
    %c0_17 = arith.constant 0 : index
    %c0_18 = arith.constant 0 : index
    %75 = vector.load %arg7[%74, %c0_17, %c0_18] : memref<8x2x32xf32, #tpu.memory_space<vmem>>, vector<1x2x32xf32>
    %76 = vector.shape_cast %75 : vector<1x2x32xf32> to vector<2x32xf32>
    %77 = vector.shape_cast %68 : vector<2x32xf32> to vector<1x2x32xf32>
    tpu.vector_store %arg7[%74, %c0_17, %c0_18], %77 {strides = array<i32>} : memref<8x2x32xf32, #tpu.memory_space<vmem>>, vector<1x2x32xf32>,
    %c1_i32 = arith.constant 1 : i32
    %78 = arith.index_cast %c1_i32 : i32 to index
    %c0_19 = arith.constant 0 : index
    %c0_20 = arith.constant 0 : index
    %79 = vector.load %arg0[%78, %c0_19, %c0_20] : memref<8x2x64xf32, #tpu.memory_space<vmem>>, vector<1x2x64xf32>
    %80 = vector.shape_cast %79 : vector<1x2x64xf32> to vector<2x64xf32>
    %c7_i32_21 = arith.constant 7 : i32
    %81 = arith.subi %c7_i32_21, %c1_i32 : i32
    %82 = arith.index_cast %81 : i32 to index
    %c0_22 = arith.constant 0 : index
    %c0_23 = arith.constant 0 : index
    %83 = vector.load %arg0[%82, %c0_22, %c0_23] : memref<8x2x64xf32, #tpu.memory_space<vmem>>, vector<1x2x64xf32>
    %84 = vector.shape_cast %83 : vector<1x2x64xf32> to vector<2x64xf32>
    %85 = tpu.concatenate %80, %42 in 1 : vector<2x64xf32>, vector<2x32xf32> -> vector<2x96xf32>
    %86 = tpu.concatenate %84, %68 in 1 : vector<2x64xf32>, vector<2x32xf32> -> vector<2x96xf32>
    %87 = tpu.concatenate %85, %86 in 0 : vector<2x96xf32>, vector<2x96xf32> -> vector<4x96xf32>
    %cst_24 = arith.constant dense<0.000000e+00> : vector<4x256xf32>
    %88 = tpu.matmul %87, %0, %cst_24 {dimension_numbers = #tpu.dot_dimension_numbers<[1], [0], [0], [1], [0, 0, 1, 1], [], []>} : vector<4x96xf32>, vector<96x256xf32>, vector<4x256xf32> -> vector<4x256xf32>
    %89 = arith.addf %88, %3 : vector<4x256xf32>
    %90 = vector.extract_strided_slice %89 {offsets = [0, 0], sizes = [2, 128], strides = [1, 1]} : vector<4x256xf32> to vector<2x128xf32>
    %91 = vector.extract_strided_slice %90 {offsets = [0, 0], sizes = [2, 32], strides = [1, 1]} : vector<2x128xf32> to vector<2x32xf32>
    %92 = arith.negf %91 : vector<2x32xf32>
    %93 = math.exp %92 : vector<2x32xf32>
    %cst_25 = arith.constant 1.000000e+00 : f32
    %94 = vector.broadcast %cst_25 : f32 to vector<2x32xf32>
    %95 = arith.addf %94, %93 : vector<2x32xf32>
    %96 = arith.divf %94, %95 : vector<2x32xf32>
    %97 = vector.extract_strided_slice %90 {offsets = [0, 32], sizes = [2, 32], strides = [1, 1]} : vector<2x128xf32> to vector<2x32xf32>
    %98 = arith.negf %97 : vector<2x32xf32>
    %99 = math.exp %98 : vector<2x32xf32>
    %cst_26 = arith.constant 1.000000e+00 : f32
    %100 = vector.broadcast %cst_26 : f32 to vector<2x32xf32>
    %101 = arith.addf %100, %99 : vector<2x32xf32>
    %102 = arith.divf %100, %101 : vector<2x32xf32>
    %103 = vector.extract_strided_slice %90 {offsets = [0, 64], sizes = [2, 32], strides = [1, 1]} : vector<2x128xf32> to vector<2x32xf32>
    %104 = math.tanh %103 : vector<2x32xf32>
    %105 = vector.extract_strided_slice %90 {offsets = [0, 96], sizes = [2, 32], strides = [1, 1]} : vector<2x128xf32> to vector<2x32xf32>
    %106 = arith.negf %105 : vector<2x32xf32>
    %107 = math.exp %106 : vector<2x32xf32>
    %cst_27 = arith.constant 1.000000e+00 : f32
    %108 = vector.broadcast %cst_27 : f32 to vector<2x32xf32>
    %109 = arith.addf %108, %107 : vector<2x32xf32>
    %110 = arith.divf %108, %109 : vector<2x32xf32>
    %111 = arith.mulf %102, %40 : vector<2x32xf32>
    %112 = arith.mulf %96, %104 : vector<2x32xf32>
    %113 = arith.addf %111, %112 : vector<2x32xf32>
    %114 = math.tanh %113 : vector<2x32xf32>
    %115 = arith.mulf %110, %114 : vector<2x32xf32>
    %116 = vector.extract_strided_slice %89 {offsets = [2, 128], sizes = [2, 128], strides = [1, 1]} : vector<4x256xf32> to vector<2x128xf32>
    %117 = vector.extract_strided_slice %116 {offsets = [0, 0], sizes = [2, 32], strides = [1, 1]} : vector<2x128xf32> to vector<2x32xf32>
    %118 = arith.negf %117 : vector<2x32xf32>
    %119 = math.exp %118 : vector<2x32xf32>
    %cst_28 = arith.constant 1.000000e+00 : f32
    %120 = vector.broadcast %cst_28 : f32 to vector<2x32xf32>
    %121 = arith.addf %120, %119 : vector<2x32xf32>
    %122 = arith.divf %120, %121 : vector<2x32xf32>
    %123 = vector.extract_strided_slice %116 {offsets = [0, 32], sizes = [2, 32], strides = [1, 1]} : vector<2x128xf32> to vector<2x32xf32>
    %124 = arith.negf %123 : vector<2x32xf32>
    %125 = math.exp %124 : vector<2x32xf32>
    %cst_29 = arith.constant 1.000000e+00 : f32
    %126 = vector.broadcast %cst_29 : f32 to vector<2x32xf32>
    %127 = arith.addf %126, %125 : vector<2x32xf32>
    %128 = arith.divf %126, %127 : vector<2x32xf32>
    %129 = vector.extract_strided_slice %116 {offsets = [0, 64], sizes = [2, 32], strides = [1, 1]} : vector<2x128xf32> to vector<2x32xf32>
    %130 = math.tanh %129 : vector<2x32xf32>
    %131 = vector.extract_strided_slice %116 {offsets = [0, 96], sizes = [2, 32], strides = [1, 1]} : vector<2x128xf32> to vector<2x32xf32>
    %132 = arith.negf %131 : vector<2x32xf32>
    %133 = math.exp %132 : vector<2x32xf32>
    %cst_30 = arith.constant 1.000000e+00 : f32
    %134 = vector.broadcast %cst_30 : f32 to vector<2x32xf32>
    %135 = arith.addf %134, %133 : vector<2x32xf32>
    %136 = arith.divf %134, %135 : vector<2x32xf32>
    %137 = arith.mulf %128, %66 : vector<2x32xf32>
    %138 = arith.mulf %122, %130 : vector<2x32xf32>
    %139 = arith.addf %137, %138 : vector<2x32xf32>
    %140 = math.tanh %139 : vector<2x32xf32>
    %141 = arith.mulf %136, %140 : vector<2x32xf32>
    %142 = arith.index_cast %c1_i32 : i32 to index
    %c0_31 = arith.constant 0 : index
    %c0_32 = arith.constant 0 : index
    %143 = vector.load %arg6[%142, %c0_31, %c0_32] : memref<8x2x32xf32, #tpu.memory_space<vmem>>, vector<1x2x32xf32>
    %144 = vector.shape_cast %143 : vector<1x2x32xf32> to vector<2x32xf32>
    %145 = vector.shape_cast %115 : vector<2x32xf32> to vector<1x2x32xf32>
    tpu.vector_store %arg6[%142, %c0_31, %c0_32], %145 {strides = array<i32>} : memref<8x2x32xf32, #tpu.memory_space<vmem>>, vector<1x2x32xf32>,
    %c7_i32_33 = arith.constant 7 : i32
    %146 = arith.subi %c7_i32_33, %c1_i32 : i32
    %147 = arith.index_cast %146 : i32 to index
    %c0_34 = arith.constant 0 : index
    %c0_35 = arith.constant 0 : index
    %148 = vector.load %arg7[%147, %c0_34, %c0_35] : memref<8x2x32xf32, #tpu.memory_space<vmem>>, vector<1x2x32xf32>
    %149 = vector.shape_cast %148 : vector<1x2x32xf32> to vector<2x32xf32>
    %150 = vector.shape_cast %141 : vector<2x32xf32> to vector<1x2x32xf32>
    tpu.vector_store %arg7[%147, %c0_34, %c0_35], %150 {strides = array<i32>} : memref<8x2x32xf32, #tpu.memory_space<vmem>>, vector<1x2x32xf32>,
    %c2_i32 = arith.constant 2 : i32
    %151 = arith.index_cast %c2_i32 : i32 to index
    %c0_36 = arith.constant 0 : index
    %c0_37 = arith.constant 0 : index
    %152 = vector.load %arg0[%151, %c0_36, %c0_37] : memref<8x2x64xf32, #tpu.memory_space<vmem>>, vector<1x2x64xf32>
    %153 = vector.shape_cast %152 : vector<1x2x64xf32> to vector<2x64xf32>
    %c7_i32_38 = arith.constant 7 : i32
    %154 = arith.subi %c7_i32_38, %c2_i32 : i32
    %155 = arith.index_cast %154 : i32 to index
    %c0_39 = arith.constant 0 : index
    %c0_40 = arith.constant 0 : index
    %156 = vector.load %arg0[%155, %c0_39, %c0_40] : memref<8x2x64xf32, #tpu.memory_space<vmem>>, vector<1x2x64xf32>
    %157 = vector.shape_cast %156 : vector<1x2x64xf32> to vector<2x64xf32>
    %158 = tpu.concatenate %153, %115 in 1 : vector<2x64xf32>, vector<2x32xf32> -> vector<2x96xf32>
    %159 = tpu.concatenate %157, %141 in 1 : vector<2x64xf32>, vector<2x32xf32> -> vector<2x96xf32>
    %160 = tpu.concatenate %158, %159 in 0 : vector<2x96xf32>, vector<2x96xf32> -> vector<4x96xf32>
    %cst_41 = arith.constant dense<0.000000e+00> : vector<4x256xf32>
    %161 = tpu.matmul %160, %0, %cst_41 {dimension_numbers = #tpu.dot_dimension_numbers<[1], [0], [0], [1], [0, 0, 1, 1], [], []>} : vector<4x96xf32>, vector<96x256xf32>, vector<4x256xf32> -> vector<4x256xf32>
    %162 = arith.addf %161, %3 : vector<4x256xf32>
    %163 = vector.extract_strided_slice %162 {offsets = [0, 0], sizes = [2, 128], strides = [1, 1]} : vector<4x256xf32> to vector<2x128xf32>
    %164 = vector.extract_strided_slice %163 {offsets = [0, 0], sizes = [2, 32], strides = [1, 1]} : vector<2x128xf32> to vector<2x32xf32>
    %165 = arith.negf %164 : vector<2x32xf32>
    %166 = math.exp %165 : vector<2x32xf32>
    %cst_42 = arith.constant 1.000000e+00 : f32
    %167 = vector.broadcast %cst_42 : f32 to vector<2x32xf32>
    %168 = arith.addf %167, %166 : vector<2x32xf32>
    %169 = arith.divf %167, %168 : vector<2x32xf32>
    %170 = vector.extract_strided_slice %163 {offsets = [0, 32], sizes = [2, 32], strides = [1, 1]} : vector<2x128xf32> to vector<2x32xf32>
    %171 = arith.negf %170 : vector<2x32xf32>
    %172 = math.exp %171 : vector<2x32xf32>
    %cst_43 = arith.constant 1.000000e+00 : f32
    %173 = vector.broadcast %cst_43 : f32 to vector<2x32xf32>
    %174 = arith.addf %173, %172 : vector<2x32xf32>
    %175 = arith.divf %173, %174 : vector<2x32xf32>
    %176 = vector.extract_strided_slice %163 {offsets = [0, 64], sizes = [2, 32], strides = [1, 1]} : vector<2x128xf32> to vector<2x32xf32>
    %177 = math.tanh %176 : vector<2x32xf32>
    %178 = vector.extract_strided_slice %163 {offsets = [0, 96], sizes = [2, 32], strides = [1, 1]} : vector<2x128xf32> to vector<2x32xf32>
    %179 = arith.negf %178 : vector<2x32xf32>
    %180 = math.exp %179 : vector<2x32xf32>
    %cst_44 = arith.constant 1.000000e+00 : f32
    %181 = vector.broadcast %cst_44 : f32 to vector<2x32xf32>
    %182 = arith.addf %181, %180 : vector<2x32xf32>
    %183 = arith.divf %181, %182 : vector<2x32xf32>
    %184 = arith.mulf %175, %113 : vector<2x32xf32>
    %185 = arith.mulf %169, %177 : vector<2x32xf32>
    %186 = arith.addf %184, %185 : vector<2x32xf32>
    %187 = math.tanh %186 : vector<2x32xf32>
    %188 = arith.mulf %183, %187 : vector<2x32xf32>
    %189 = vector.extract_strided_slice %162 {offsets = [2, 128], sizes = [2, 128], strides = [1, 1]} : vector<4x256xf32> to vector<2x128xf32>
    %190 = vector.extract_strided_slice %189 {offsets = [0, 0], sizes = [2, 32], strides = [1, 1]} : vector<2x128xf32> to vector<2x32xf32>
    %191 = arith.negf %190 : vector<2x32xf32>
    %192 = math.exp %191 : vector<2x32xf32>
    %cst_45 = arith.constant 1.000000e+00 : f32
    %193 = vector.broadcast %cst_45 : f32 to vector<2x32xf32>
    %194 = arith.addf %193, %192 : vector<2x32xf32>
    %195 = arith.divf %193, %194 : vector<2x32xf32>
    %196 = vector.extract_strided_slice %189 {offsets = [0, 32], sizes = [2, 32], strides = [1, 1]} : vector<2x128xf32> to vector<2x32xf32>
    %197 = arith.negf %196 : vector<2x32xf32>
    %198 = math.exp %197 : vector<2x32xf32>
    %cst_46 = arith.constant 1.000000e+00 : f32
    %199 = vector.broadcast %cst_46 : f32 to vector<2x32xf32>
    %200 = arith.addf %199, %198 : vector<2x32xf32>
    %201 = arith.divf %199, %200 : vector<2x32xf32>
    %202 = vector.extract_strided_slice %189 {offsets = [0, 64], sizes = [2, 32], strides = [1, 1]} : vector<2x128xf32> to vector<2x32xf32>
    %203 = math.tanh %202 : vector<2x32xf32>
    %204 = vector.extract_strided_slice %189 {offsets = [0, 96], sizes = [2, 32], strides = [1, 1]} : vector<2x128xf32> to vector<2x32xf32>
    %205 = arith.negf %204 : vector<2x32xf32>
    %206 = math.exp %205 : vector<2x32xf32>
    %cst_47 = arith.constant 1.000000e+00 : f32
    %207 = vector.broadcast %cst_47 : f32 to vector<2x32xf32>
    %208 = arith.addf %207, %206 : vector<2x32xf32>
    %209 = arith.divf %207, %208 : vector<2x32xf32>
    %210 = arith.mulf %201, %139 : vector<2x32xf32>
    %211 = arith.mulf %195, %203 : vector<2x32xf32>
    %212 = arith.addf %210, %211 : vector<2x32xf32>
    %213 = math.tanh %212 : vector<2x32xf32>
    %214 = arith.mulf %209, %213 : vector<2x32xf32>
    %215 = arith.index_cast %c2_i32 : i32 to index
    %c0_48 = arith.constant 0 : index
    %c0_49 = arith.constant 0 : index
    %216 = vector.load %arg6[%215, %c0_48, %c0_49] : memref<8x2x32xf32, #tpu.memory_space<vmem>>, vector<1x2x32xf32>
    %217 = vector.shape_cast %216 : vector<1x2x32xf32> to vector<2x32xf32>
    %218 = vector.shape_cast %188 : vector<2x32xf32> to vector<1x2x32xf32>
    tpu.vector_store %arg6[%215, %c0_48, %c0_49], %218 {strides = array<i32>} : memref<8x2x32xf32, #tpu.memory_space<vmem>>, vector<1x2x32xf32>,
    %c7_i32_50 = arith.constant 7 : i32
    %219 = arith.subi %c7_i32_50, %c2_i32 : i32
    %220 = arith.index_cast %219 : i32 to index
    %c0_51 = arith.constant 0 : index
    %c0_52 = arith.constant 0 : index
    %221 = vector.load %arg7[%220, %c0_51, %c0_52] : memref<8x2x32xf32, #tpu.memory_space<vmem>>, vector<1x2x32xf32>
    %222 = vector.shape_cast %221 : vector<1x2x32xf32> to vector<2x32xf32>
    %223 = vector.shape_cast %214 : vector<2x32xf32> to vector<1x2x32xf32>
    tpu.vector_store %arg7[%220, %c0_51, %c0_52], %223 {strides = array<i32>} : memref<8x2x32xf32, #tpu.memory_space<vmem>>, vector<1x2x32xf32>,
    %c3_i32 = arith.constant 3 : i32
    %224 = arith.index_cast %c3_i32 : i32 to index
    %c0_53 = arith.constant 0 : index
    %c0_54 = arith.constant 0 : index
    %225 = vector.load %arg0[%224, %c0_53, %c0_54] : memref<8x2x64xf32, #tpu.memory_space<vmem>>, vector<1x2x64xf32>
    %226 = vector.shape_cast %225 : vector<1x2x64xf32> to vector<2x64xf32>
    %c7_i32_55 = arith.constant 7 : i32
    %227 = arith.subi %c7_i32_55, %c3_i32 : i32
    %228 = arith.index_cast %227 : i32 to index
    %c0_56 = arith.constant 0 : index
    %c0_57 = arith.constant 0 : index
    %229 = vector.load %arg0[%228, %c0_56, %c0_57] : memref<8x2x64xf32, #tpu.memory_space<vmem>>, vector<1x2x64xf32>
    %230 = vector.shape_cast %229 : vector<1x2x64xf32> to vector<2x64xf32>
    %231 = tpu.concatenate %226, %188 in 1 : vector<2x64xf32>, vector<2x32xf32> -> vector<2x96xf32>
    %232 = tpu.concatenate %230, %214 in 1 : vector<2x64xf32>, vector<2x32xf32> -> vector<2x96xf32>
    %233 = tpu.concatenate %231, %232 in 0 : vector<2x96xf32>, vector<2x96xf32> -> vector<4x96xf32>
    %cst_58 = arith.constant dense<0.000000e+00> : vector<4x256xf32>
    %234 = tpu.matmul %233, %0, %cst_58 {dimension_numbers = #tpu.dot_dimension_numbers<[1], [0], [0], [1], [0, 0, 1, 1], [], []>} : vector<4x96xf32>, vector<96x256xf32>, vector<4x256xf32> -> vector<4x256xf32>
    %235 = arith.addf %234, %3 : vector<4x256xf32>
    %236 = vector.extract_strided_slice %235 {offsets = [0, 0], sizes = [2, 128], strides = [1, 1]} : vector<4x256xf32> to vector<2x128xf32>
    %237 = vector.extract_strided_slice %236 {offsets = [0, 0], sizes = [2, 32], strides = [1, 1]} : vector<2x128xf32> to vector<2x32xf32>
    %238 = arith.negf %237 : vector<2x32xf32>
    %239 = math.exp %238 : vector<2x32xf32>
    %cst_59 = arith.constant 1.000000e+00 : f32
    %240 = vector.broadcast %cst_59 : f32 to vector<2x32xf32>
    %241 = arith.addf %240, %239 : vector<2x32xf32>
    %242 = arith.divf %240, %241 : vector<2x32xf32>
    %243 = vector.extract_strided_slice %236 {offsets = [0, 32], sizes = [2, 32], strides = [1, 1]} : vector<2x128xf32> to vector<2x32xf32>
    %244 = arith.negf %243 : vector<2x32xf32>
    %245 = math.exp %244 : vector<2x32xf32>
    %cst_60 = arith.constant 1.000000e+00 : f32
    %246 = vector.broadcast %cst_60 : f32 to vector<2x32xf32>
    %247 = arith.addf %246, %245 : vector<2x32xf32>
    %248 = arith.divf %246, %247 : vector<2x32xf32>
    %249 = vector.extract_strided_slice %236 {offsets = [0, 64], sizes = [2, 32], strides = [1, 1]} : vector<2x128xf32> to vector<2x32xf32>
    %250 = math.tanh %249 : vector<2x32xf32>
    %251 = vector.extract_strided_slice %236 {offsets = [0, 96], sizes = [2, 32], strides = [1, 1]} : vector<2x128xf32> to vector<2x32xf32>
    %252 = arith.negf %251 : vector<2x32xf32>
    %253 = math.exp %252 : vector<2x32xf32>
    %cst_61 = arith.constant 1.000000e+00 : f32
    %254 = vector.broadcast %cst_61 : f32 to vector<2x32xf32>
    %255 = arith.addf %254, %253 : vector<2x32xf32>
    %256 = arith.divf %254, %255 : vector<2x32xf32>
    %257 = arith.mulf %248, %186 : vector<2x32xf32>
    %258 = arith.mulf %242, %250 : vector<2x32xf32>
    %259 = arith.addf %257, %258 : vector<2x32xf32>
    %260 = math.tanh %259 : vector<2x32xf32>
    %261 = arith.mulf %256, %260 : vector<2x32xf32>
    %262 = vector.extract_strided_slice %235 {offsets = [2, 128], sizes = [2, 128], strides = [1, 1]} : vector<4x256xf32> to vector<2x128xf32>
    %263 = vector.extract_strided_slice %262 {offsets = [0, 0], sizes = [2, 32], strides = [1, 1]} : vector<2x128xf32> to vector<2x32xf32>
    %264 = arith.negf %263 : vector<2x32xf32>
    %265 = math.exp %264 : vector<2x32xf32>
    %cst_62 = arith.constant 1.000000e+00 : f32
    %266 = vector.broadcast %cst_62 : f32 to vector<2x32xf32>
    %267 = arith.addf %266, %265 : vector<2x32xf32>
    %268 = arith.divf %266, %267 : vector<2x32xf32>
    %269 = vector.extract_strided_slice %262 {offsets = [0, 32], sizes = [2, 32], strides = [1, 1]} : vector<2x128xf32> to vector<2x32xf32>
    %270 = arith.negf %269 : vector<2x32xf32>
    %271 = math.exp %270 : vector<2x32xf32>
    %cst_63 = arith.constant 1.000000e+00 : f32
    %272 = vector.broadcast %cst_63 : f32 to vector<2x32xf32>
    %273 = arith.addf %272, %271 : vector<2x32xf32>
    %274 = arith.divf %272, %273 : vector<2x32xf32>
    %275 = vector.extract_strided_slice %262 {offsets = [0, 64], sizes = [2, 32], strides = [1, 1]} : vector<2x128xf32> to vector<2x32xf32>
    %276 = math.tanh %275 : vector<2x32xf32>
    %277 = vector.extract_strided_slice %262 {offsets = [0, 96], sizes = [2, 32], strides = [1, 1]} : vector<2x128xf32> to vector<2x32xf32>
    %278 = arith.negf %277 : vector<2x32xf32>
    %279 = math.exp %278 : vector<2x32xf32>
    %cst_64 = arith.constant 1.000000e+00 : f32
    %280 = vector.broadcast %cst_64 : f32 to vector<2x32xf32>
    %281 = arith.addf %280, %279 : vector<2x32xf32>
    %282 = arith.divf %280, %281 : vector<2x32xf32>
    %283 = arith.mulf %274, %212 : vector<2x32xf32>
    %284 = arith.mulf %268, %276 : vector<2x32xf32>
    %285 = arith.addf %283, %284 : vector<2x32xf32>
    %286 = math.tanh %285 : vector<2x32xf32>
    %287 = arith.mulf %282, %286 : vector<2x32xf32>
    %288 = arith.index_cast %c3_i32 : i32 to index
    %c0_65 = arith.constant 0 : index
    %c0_66 = arith.constant 0 : index
    %289 = vector.load %arg6[%288, %c0_65, %c0_66] : memref<8x2x32xf32, #tpu.memory_space<vmem>>, vector<1x2x32xf32>
    %290 = vector.shape_cast %289 : vector<1x2x32xf32> to vector<2x32xf32>
    %291 = vector.shape_cast %261 : vector<2x32xf32> to vector<1x2x32xf32>
    tpu.vector_store %arg6[%288, %c0_65, %c0_66], %291 {strides = array<i32>} : memref<8x2x32xf32, #tpu.memory_space<vmem>>, vector<1x2x32xf32>,
    %c7_i32_67 = arith.constant 7 : i32
    %292 = arith.subi %c7_i32_67, %c3_i32 : i32
    %293 = arith.index_cast %292 : i32 to index
    %c0_68 = arith.constant 0 : index
    %c0_69 = arith.constant 0 : index
    %294 = vector.load %arg7[%293, %c0_68, %c0_69] : memref<8x2x32xf32, #tpu.memory_space<vmem>>, vector<1x2x32xf32>
    %295 = vector.shape_cast %294 : vector<1x2x32xf32> to vector<2x32xf32>
    %296 = vector.shape_cast %287 : vector<2x32xf32> to vector<1x2x32xf32>
    tpu.vector_store %arg7[%293, %c0_68, %c0_69], %296 {strides = array<i32>} : memref<8x2x32xf32, #tpu.memory_space<vmem>>, vector<1x2x32xf32>,
    %c4_i32 = arith.constant 4 : i32
    %297 = arith.index_cast %c4_i32 : i32 to index
    %c0_70 = arith.constant 0 : index
    %c0_71 = arith.constant 0 : index
    %298 = vector.load %arg0[%297, %c0_70, %c0_71] : memref<8x2x64xf32, #tpu.memory_space<vmem>>, vector<1x2x64xf32>
    %299 = vector.shape_cast %298 : vector<1x2x64xf32> to vector<2x64xf32>
    %c7_i32_72 = arith.constant 7 : i32
    %300 = arith.subi %c7_i32_72, %c4_i32 : i32
    %301 = arith.index_cast %300 : i32 to index
    %c0_73 = arith.constant 0 : index
    %c0_74 = arith.constant 0 : index
    %302 = vector.load %arg0[%301, %c0_73, %c0_74] : memref<8x2x64xf32, #tpu.memory_space<vmem>>, vector<1x2x64xf32>
    %303 = vector.shape_cast %302 : vector<1x2x64xf32> to vector<2x64xf32>
    %304 = tpu.concatenate %299, %261 in 1 : vector<2x64xf32>, vector<2x32xf32> -> vector<2x96xf32>
    %305 = tpu.concatenate %303, %287 in 1 : vector<2x64xf32>, vector<2x32xf32> -> vector<2x96xf32>
    %306 = tpu.concatenate %304, %305 in 0 : vector<2x96xf32>, vector<2x96xf32> -> vector<4x96xf32>
    %cst_75 = arith.constant dense<0.000000e+00> : vector<4x256xf32>
    %307 = tpu.matmul %306, %0, %cst_75 {dimension_numbers = #tpu.dot_dimension_numbers<[1], [0], [0], [1], [0, 0, 1, 1], [], []>} : vector<4x96xf32>, vector<96x256xf32>, vector<4x256xf32> -> vector<4x256xf32>
    %308 = arith.addf %307, %3 : vector<4x256xf32>
    %309 = vector.extract_strided_slice %308 {offsets = [0, 0], sizes = [2, 128], strides = [1, 1]} : vector<4x256xf32> to vector<2x128xf32>
    %310 = vector.extract_strided_slice %309 {offsets = [0, 0], sizes = [2, 32], strides = [1, 1]} : vector<2x128xf32> to vector<2x32xf32>
    %311 = arith.negf %310 : vector<2x32xf32>
    %312 = math.exp %311 : vector<2x32xf32>
    %cst_76 = arith.constant 1.000000e+00 : f32
    %313 = vector.broadcast %cst_76 : f32 to vector<2x32xf32>
    %314 = arith.addf %313, %312 : vector<2x32xf32>
    %315 = arith.divf %313, %314 : vector<2x32xf32>
    %316 = vector.extract_strided_slice %309 {offsets = [0, 32], sizes = [2, 32], strides = [1, 1]} : vector<2x128xf32> to vector<2x32xf32>
    %317 = arith.negf %316 : vector<2x32xf32>
    %318 = math.exp %317 : vector<2x32xf32>
    %cst_77 = arith.constant 1.000000e+00 : f32
    %319 = vector.broadcast %cst_77 : f32 to vector<2x32xf32>
    %320 = arith.addf %319, %318 : vector<2x32xf32>
    %321 = arith.divf %319, %320 : vector<2x32xf32>
    %322 = vector.extract_strided_slice %309 {offsets = [0, 64], sizes = [2, 32], strides = [1, 1]} : vector<2x128xf32> to vector<2x32xf32>
    %323 = math.tanh %322 : vector<2x32xf32>
    %324 = vector.extract_strided_slice %309 {offsets = [0, 96], sizes = [2, 32], strides = [1, 1]} : vector<2x128xf32> to vector<2x32xf32>
    %325 = arith.negf %324 : vector<2x32xf32>
    %326 = math.exp %325 : vector<2x32xf32>
    %cst_78 = arith.constant 1.000000e+00 : f32
    %327 = vector.broadcast %cst_78 : f32 to vector<2x32xf32>
    %328 = arith.addf %327, %326 : vector<2x32xf32>
    %329 = arith.divf %327, %328 : vector<2x32xf32>
    %330 = arith.mulf %321, %259 : vector<2x32xf32>
    %331 = arith.mulf %315, %323 : vector<2x32xf32>
    %332 = arith.addf %330, %331 : vector<2x32xf32>
    %333 = math.tanh %332 : vector<2x32xf32>
    %334 = arith.mulf %329, %333 : vector<2x32xf32>
    %335 = vector.extract_strided_slice %308 {offsets = [2, 128], sizes = [2, 128], strides = [1, 1]} : vector<4x256xf32> to vector<2x128xf32>
    %336 = vector.extract_strided_slice %335 {offsets = [0, 0], sizes = [2, 32], strides = [1, 1]} : vector<2x128xf32> to vector<2x32xf32>
    %337 = arith.negf %336 : vector<2x32xf32>
    %338 = math.exp %337 : vector<2x32xf32>
    %cst_79 = arith.constant 1.000000e+00 : f32
    %339 = vector.broadcast %cst_79 : f32 to vector<2x32xf32>
    %340 = arith.addf %339, %338 : vector<2x32xf32>
    %341 = arith.divf %339, %340 : vector<2x32xf32>
    %342 = vector.extract_strided_slice %335 {offsets = [0, 32], sizes = [2, 32], strides = [1, 1]} : vector<2x128xf32> to vector<2x32xf32>
    %343 = arith.negf %342 : vector<2x32xf32>
    %344 = math.exp %343 : vector<2x32xf32>
    %cst_80 = arith.constant 1.000000e+00 : f32
    %345 = vector.broadcast %cst_80 : f32 to vector<2x32xf32>
    %346 = arith.addf %345, %344 : vector<2x32xf32>
    %347 = arith.divf %345, %346 : vector<2x32xf32>
    %348 = vector.extract_strided_slice %335 {offsets = [0, 64], sizes = [2, 32], strides = [1, 1]} : vector<2x128xf32> to vector<2x32xf32>
    %349 = math.tanh %348 : vector<2x32xf32>
    %350 = vector.extract_strided_slice %335 {offsets = [0, 96], sizes = [2, 32], strides = [1, 1]} : vector<2x128xf32> to vector<2x32xf32>
    %351 = arith.negf %350 : vector<2x32xf32>
    %352 = math.exp %351 : vector<2x32xf32>
    %cst_81 = arith.constant 1.000000e+00 : f32
    %353 = vector.broadcast %cst_81 : f32 to vector<2x32xf32>
    %354 = arith.addf %353, %352 : vector<2x32xf32>
    %355 = arith.divf %353, %354 : vector<2x32xf32>
    %356 = arith.mulf %347, %285 : vector<2x32xf32>
    %357 = arith.mulf %341, %349 : vector<2x32xf32>
    %358 = arith.addf %356, %357 : vector<2x32xf32>
    %359 = math.tanh %358 : vector<2x32xf32>
    %360 = arith.mulf %355, %359 : vector<2x32xf32>
    %361 = arith.index_cast %c4_i32 : i32 to index
    %c0_82 = arith.constant 0 : index
    %c0_83 = arith.constant 0 : index
    %362 = vector.load %arg6[%361, %c0_82, %c0_83] : memref<8x2x32xf32, #tpu.memory_space<vmem>>, vector<1x2x32xf32>
    %363 = vector.shape_cast %362 : vector<1x2x32xf32> to vector<2x32xf32>
    %364 = vector.shape_cast %334 : vector<2x32xf32> to vector<1x2x32xf32>
    tpu.vector_store %arg6[%361, %c0_82, %c0_83], %364 {strides = array<i32>} : memref<8x2x32xf32, #tpu.memory_space<vmem>>, vector<1x2x32xf32>,
    %c7_i32_84 = arith.constant 7 : i32
    %365 = arith.subi %c7_i32_84, %c4_i32 : i32
    %366 = arith.index_cast %365 : i32 to index
    %c0_85 = arith.constant 0 : index
    %c0_86 = arith.constant 0 : index
    %367 = vector.load %arg7[%366, %c0_85, %c0_86] : memref<8x2x32xf32, #tpu.memory_space<vmem>>, vector<1x2x32xf32>
    %368 = vector.shape_cast %367 : vector<1x2x32xf32> to vector<2x32xf32>
    %369 = vector.shape_cast %360 : vector<2x32xf32> to vector<1x2x32xf32>
    tpu.vector_store %arg7[%366, %c0_85, %c0_86], %369 {strides = array<i32>} : memref<8x2x32xf32, #tpu.memory_space<vmem>>, vector<1x2x32xf32>,
    %c5_i32 = arith.constant 5 : i32
    %370 = arith.index_cast %c5_i32 : i32 to index
    %c0_87 = arith.constant 0 : index
    %c0_88 = arith.constant 0 : index
    %371 = vector.load %arg0[%370, %c0_87, %c0_88] : memref<8x2x64xf32, #tpu.memory_space<vmem>>, vector<1x2x64xf32>
    %372 = vector.shape_cast %371 : vector<1x2x64xf32> to vector<2x64xf32>
    %c7_i32_89 = arith.constant 7 : i32
    %373 = arith.subi %c7_i32_89, %c5_i32 : i32
    %374 = arith.index_cast %373 : i32 to index
    %c0_90 = arith.constant 0 : index
    %c0_91 = arith.constant 0 : index
    %375 = vector.load %arg0[%374, %c0_90, %c0_91] : memref<8x2x64xf32, #tpu.memory_space<vmem>>, vector<1x2x64xf32>
    %376 = vector.shape_cast %375 : vector<1x2x64xf32> to vector<2x64xf32>
    %377 = tpu.concatenate %372, %334 in 1 : vector<2x64xf32>, vector<2x32xf32> -> vector<2x96xf32>
    %378 = tpu.concatenate %376, %360 in 1 : vector<2x64xf32>, vector<2x32xf32> -> vector<2x96xf32>
    %379 = tpu.concatenate %377, %378 in 0 : vector<2x96xf32>, vector<2x96xf32> -> vector<4x96xf32>
    %cst_92 = arith.constant dense<0.000000e+00> : vector<4x256xf32>
    %380 = tpu.matmul %379, %0, %cst_92 {dimension_numbers = #tpu.dot_dimension_numbers<[1], [0], [0], [1], [0, 0, 1, 1], [], []>} : vector<4x96xf32>, vector<96x256xf32>, vector<4x256xf32> -> vector<4x256xf32>
    %381 = arith.addf %380, %3 : vector<4x256xf32>
    %382 = vector.extract_strided_slice %381 {offsets = [0, 0], sizes = [2, 128], strides = [1, 1]} : vector<4x256xf32> to vector<2x128xf32>
    %383 = vector.extract_strided_slice %382 {offsets = [0, 0], sizes = [2, 32], strides = [1, 1]} : vector<2x128xf32> to vector<2x32xf32>
    %384 = arith.negf %383 : vector<2x32xf32>
    %385 = math.exp %384 : vector<2x32xf32>
    %cst_93 = arith.constant 1.000000e+00 : f32
    %386 = vector.broadcast %cst_93 : f32 to vector<2x32xf32>
    %387 = arith.addf %386, %385 : vector<2x32xf32>
    %388 = arith.divf %386, %387 : vector<2x32xf32>
    %389 = vector.extract_strided_slice %382 {offsets = [0, 32], sizes = [2, 32], strides = [1, 1]} : vector<2x128xf32> to vector<2x32xf32>
    %390 = arith.negf %389 : vector<2x32xf32>
    %391 = math.exp %390 : vector<2x32xf32>
    %cst_94 = arith.constant 1.000000e+00 : f32
    %392 = vector.broadcast %cst_94 : f32 to vector<2x32xf32>
    %393 = arith.addf %392, %391 : vector<2x32xf32>
    %394 = arith.divf %392, %393 : vector<2x32xf32>
    %395 = vector.extract_strided_slice %382 {offsets = [0, 64], sizes = [2, 32], strides = [1, 1]} : vector<2x128xf32> to vector<2x32xf32>
    %396 = math.tanh %395 : vector<2x32xf32>
    %397 = vector.extract_strided_slice %382 {offsets = [0, 96], sizes = [2, 32], strides = [1, 1]} : vector<2x128xf32> to vector<2x32xf32>
    %398 = arith.negf %397 : vector<2x32xf32>
    %399 = math.exp %398 : vector<2x32xf32>
    %cst_95 = arith.constant 1.000000e+00 : f32
    %400 = vector.broadcast %cst_95 : f32 to vector<2x32xf32>
    %401 = arith.addf %400, %399 : vector<2x32xf32>
    %402 = arith.divf %400, %401 : vector<2x32xf32>
    %403 = arith.mulf %394, %332 : vector<2x32xf32>
    %404 = arith.mulf %388, %396 : vector<2x32xf32>
    %405 = arith.addf %403, %404 : vector<2x32xf32>
    %406 = math.tanh %405 : vector<2x32xf32>
    %407 = arith.mulf %402, %406 : vector<2x32xf32>
    %408 = vector.extract_strided_slice %381 {offsets = [2, 128], sizes = [2, 128], strides = [1, 1]} : vector<4x256xf32> to vector<2x128xf32>
    %409 = vector.extract_strided_slice %408 {offsets = [0, 0], sizes = [2, 32], strides = [1, 1]} : vector<2x128xf32> to vector<2x32xf32>
    %410 = arith.negf %409 : vector<2x32xf32>
    %411 = math.exp %410 : vector<2x32xf32>
    %cst_96 = arith.constant 1.000000e+00 : f32
    %412 = vector.broadcast %cst_96 : f32 to vector<2x32xf32>
    %413 = arith.addf %412, %411 : vector<2x32xf32>
    %414 = arith.divf %412, %413 : vector<2x32xf32>
    %415 = vector.extract_strided_slice %408 {offsets = [0, 32], sizes = [2, 32], strides = [1, 1]} : vector<2x128xf32> to vector<2x32xf32>
    %416 = arith.negf %415 : vector<2x32xf32>
    %417 = math.exp %416 : vector<2x32xf32>
    %cst_97 = arith.constant 1.000000e+00 : f32
    %418 = vector.broadcast %cst_97 : f32 to vector<2x32xf32>
    %419 = arith.addf %418, %417 : vector<2x32xf32>
    %420 = arith.divf %418, %419 : vector<2x32xf32>
    %421 = vector.extract_strided_slice %408 {offsets = [0, 64], sizes = [2, 32], strides = [1, 1]} : vector<2x128xf32> to vector<2x32xf32>
    %422 = math.tanh %421 : vector<2x32xf32>
    %423 = vector.extract_strided_slice %408 {offsets = [0, 96], sizes = [2, 32], strides = [1, 1]} : vector<2x128xf32> to vector<2x32xf32>
    %424 = arith.negf %423 : vector<2x32xf32>
    %425 = math.exp %424 : vector<2x32xf32>
    %cst_98 = arith.constant 1.000000e+00 : f32
    %426 = vector.broadcast %cst_98 : f32 to vector<2x32xf32>
    %427 = arith.addf %426, %425 : vector<2x32xf32>
    %428 = arith.divf %426, %427 : vector<2x32xf32>
    %429 = arith.mulf %420, %358 : vector<2x32xf32>
    %430 = arith.mulf %414, %422 : vector<2x32xf32>
    %431 = arith.addf %429, %430 : vector<2x32xf32>
    %432 = math.tanh %431 : vector<2x32xf32>
    %433 = arith.mulf %428, %432 : vector<2x32xf32>
    %434 = arith.index_cast %c5_i32 : i32 to index
    %c0_99 = arith.constant 0 : index
    %c0_100 = arith.constant 0 : index
    %435 = vector.load %arg6[%434, %c0_99, %c0_100] : memref<8x2x32xf32, #tpu.memory_space<vmem>>, vector<1x2x32xf32>
    %436 = vector.shape_cast %435 : vector<1x2x32xf32> to vector<2x32xf32>
    %437 = vector.shape_cast %407 : vector<2x32xf32> to vector<1x2x32xf32>
    tpu.vector_store %arg6[%434, %c0_99, %c0_100], %437 {strides = array<i32>} : memref<8x2x32xf32, #tpu.memory_space<vmem>>, vector<1x2x32xf32>,
    %c7_i32_101 = arith.constant 7 : i32
    %438 = arith.subi %c7_i32_101, %c5_i32 : i32
    %439 = arith.index_cast %438 : i32 to index
    %c0_102 = arith.constant 0 : index
    %c0_103 = arith.constant 0 : index
    %440 = vector.load %arg7[%439, %c0_102, %c0_103] : memref<8x2x32xf32, #tpu.memory_space<vmem>>, vector<1x2x32xf32>
    %441 = vector.shape_cast %440 : vector<1x2x32xf32> to vector<2x32xf32>
    %442 = vector.shape_cast %433 : vector<2x32xf32> to vector<1x2x32xf32>
    tpu.vector_store %arg7[%439, %c0_102, %c0_103], %442 {strides = array<i32>} : memref<8x2x32xf32, #tpu.memory_space<vmem>>, vector<1x2x32xf32>,
    %c6_i32 = arith.constant 6 : i32
    %443 = arith.index_cast %c6_i32 : i32 to index
    %c0_104 = arith.constant 0 : index
    %c0_105 = arith.constant 0 : index
    %444 = vector.load %arg0[%443, %c0_104, %c0_105] : memref<8x2x64xf32, #tpu.memory_space<vmem>>, vector<1x2x64xf32>
    %445 = vector.shape_cast %444 : vector<1x2x64xf32> to vector<2x64xf32>
    %c7_i32_106 = arith.constant 7 : i32
    %446 = arith.subi %c7_i32_106, %c6_i32 : i32
    %447 = arith.index_cast %446 : i32 to index
    %c0_107 = arith.constant 0 : index
    %c0_108 = arith.constant 0 : index
    %448 = vector.load %arg0[%447, %c0_107, %c0_108] : memref<8x2x64xf32, #tpu.memory_space<vmem>>, vector<1x2x64xf32>
    %449 = vector.shape_cast %448 : vector<1x2x64xf32> to vector<2x64xf32>
    %450 = tpu.concatenate %445, %407 in 1 : vector<2x64xf32>, vector<2x32xf32> -> vector<2x96xf32>
    %451 = tpu.concatenate %449, %433 in 1 : vector<2x64xf32>, vector<2x32xf32> -> vector<2x96xf32>
    %452 = tpu.concatenate %450, %451 in 0 : vector<2x96xf32>, vector<2x96xf32> -> vector<4x96xf32>
    %cst_109 = arith.constant dense<0.000000e+00> : vector<4x256xf32>
    %453 = tpu.matmul %452, %0, %cst_109 {dimension_numbers = #tpu.dot_dimension_numbers<[1], [0], [0], [1], [0, 0, 1, 1], [], []>} : vector<4x96xf32>, vector<96x256xf32>, vector<4x256xf32> -> vector<4x256xf32>
    %454 = arith.addf %453, %3 : vector<4x256xf32>
    %455 = vector.extract_strided_slice %454 {offsets = [0, 0], sizes = [2, 128], strides = [1, 1]} : vector<4x256xf32> to vector<2x128xf32>
    %456 = vector.extract_strided_slice %455 {offsets = [0, 0], sizes = [2, 32], strides = [1, 1]} : vector<2x128xf32> to vector<2x32xf32>
    %457 = arith.negf %456 : vector<2x32xf32>
    %458 = math.exp %457 : vector<2x32xf32>
    %cst_110 = arith.constant 1.000000e+00 : f32
    %459 = vector.broadcast %cst_110 : f32 to vector<2x32xf32>
    %460 = arith.addf %459, %458 : vector<2x32xf32>
    %461 = arith.divf %459, %460 : vector<2x32xf32>
    %462 = vector.extract_strided_slice %455 {offsets = [0, 32], sizes = [2, 32], strides = [1, 1]} : vector<2x128xf32> to vector<2x32xf32>
    %463 = arith.negf %462 : vector<2x32xf32>
    %464 = math.exp %463 : vector<2x32xf32>
    %cst_111 = arith.constant 1.000000e+00 : f32
    %465 = vector.broadcast %cst_111 : f32 to vector<2x32xf32>
    %466 = arith.addf %465, %464 : vector<2x32xf32>
    %467 = arith.divf %465, %466 : vector<2x32xf32>
    %468 = vector.extract_strided_slice %455 {offsets = [0, 64], sizes = [2, 32], strides = [1, 1]} : vector<2x128xf32> to vector<2x32xf32>
    %469 = math.tanh %468 : vector<2x32xf32>
    %470 = vector.extract_strided_slice %455 {offsets = [0, 96], sizes = [2, 32], strides = [1, 1]} : vector<2x128xf32> to vector<2x32xf32>
    %471 = arith.negf %470 : vector<2x32xf32>
    %472 = math.exp %471 : vector<2x32xf32>
    %cst_112 = arith.constant 1.000000e+00 : f32
    %473 = vector.broadcast %cst_112 : f32 to vector<2x32xf32>
    %474 = arith.addf %473, %472 : vector<2x32xf32>
    %475 = arith.divf %473, %474 : vector<2x32xf32>
    %476 = arith.mulf %467, %405 : vector<2x32xf32>
    %477 = arith.mulf %461, %469 : vector<2x32xf32>
    %478 = arith.addf %476, %477 : vector<2x32xf32>
    %479 = math.tanh %478 : vector<2x32xf32>
    %480 = arith.mulf %475, %479 : vector<2x32xf32>
    %481 = vector.extract_strided_slice %454 {offsets = [2, 128], sizes = [2, 128], strides = [1, 1]} : vector<4x256xf32> to vector<2x128xf32>
    %482 = vector.extract_strided_slice %481 {offsets = [0, 0], sizes = [2, 32], strides = [1, 1]} : vector<2x128xf32> to vector<2x32xf32>
    %483 = arith.negf %482 : vector<2x32xf32>
    %484 = math.exp %483 : vector<2x32xf32>
    %cst_113 = arith.constant 1.000000e+00 : f32
    %485 = vector.broadcast %cst_113 : f32 to vector<2x32xf32>
    %486 = arith.addf %485, %484 : vector<2x32xf32>
    %487 = arith.divf %485, %486 : vector<2x32xf32>
    %488 = vector.extract_strided_slice %481 {offsets = [0, 32], sizes = [2, 32], strides = [1, 1]} : vector<2x128xf32> to vector<2x32xf32>
    %489 = arith.negf %488 : vector<2x32xf32>
    %490 = math.exp %489 : vector<2x32xf32>
    %cst_114 = arith.constant 1.000000e+00 : f32
    %491 = vector.broadcast %cst_114 : f32 to vector<2x32xf32>
    %492 = arith.addf %491, %490 : vector<2x32xf32>
    %493 = arith.divf %491, %492 : vector<2x32xf32>
    %494 = vector.extract_strided_slice %481 {offsets = [0, 64], sizes = [2, 32], strides = [1, 1]} : vector<2x128xf32> to vector<2x32xf32>
    %495 = math.tanh %494 : vector<2x32xf32>
    %496 = vector.extract_strided_slice %481 {offsets = [0, 96], sizes = [2, 32], strides = [1, 1]} : vector<2x128xf32> to vector<2x32xf32>
    %497 = arith.negf %496 : vector<2x32xf32>
    %498 = math.exp %497 : vector<2x32xf32>
    %cst_115 = arith.constant 1.000000e+00 : f32
    %499 = vector.broadcast %cst_115 : f32 to vector<2x32xf32>
    %500 = arith.addf %499, %498 : vector<2x32xf32>
    %501 = arith.divf %499, %500 : vector<2x32xf32>
    %502 = arith.mulf %493, %431 : vector<2x32xf32>
    %503 = arith.mulf %487, %495 : vector<2x32xf32>
    %504 = arith.addf %502, %503 : vector<2x32xf32>
    %505 = math.tanh %504 : vector<2x32xf32>
    %506 = arith.mulf %501, %505 : vector<2x32xf32>
    %507 = arith.index_cast %c6_i32 : i32 to index
    %c0_116 = arith.constant 0 : index
    %c0_117 = arith.constant 0 : index
    %508 = vector.load %arg6[%507, %c0_116, %c0_117] : memref<8x2x32xf32, #tpu.memory_space<vmem>>, vector<1x2x32xf32>
    %509 = vector.shape_cast %508 : vector<1x2x32xf32> to vector<2x32xf32>
    %510 = vector.shape_cast %480 : vector<2x32xf32> to vector<1x2x32xf32>
    tpu.vector_store %arg6[%507, %c0_116, %c0_117], %510 {strides = array<i32>} : memref<8x2x32xf32, #tpu.memory_space<vmem>>, vector<1x2x32xf32>,
    %c7_i32_118 = arith.constant 7 : i32
    %511 = arith.subi %c7_i32_118, %c6_i32 : i32
    %512 = arith.index_cast %511 : i32 to index
    %c0_119 = arith.constant 0 : index
    %c0_120 = arith.constant 0 : index
    %513 = vector.load %arg7[%512, %c0_119, %c0_120] : memref<8x2x32xf32, #tpu.memory_space<vmem>>, vector<1x2x32xf32>
    %514 = vector.shape_cast %513 : vector<1x2x32xf32> to vector<2x32xf32>
    %515 = vector.shape_cast %506 : vector<2x32xf32> to vector<1x2x32xf32>
    tpu.vector_store %arg7[%512, %c0_119, %c0_120], %515 {strides = array<i32>} : memref<8x2x32xf32, #tpu.memory_space<vmem>>, vector<1x2x32xf32>,
    %c7_i32_121 = arith.constant 7 : i32
    %516 = arith.index_cast %c7_i32_121 : i32 to index
    %c0_122 = arith.constant 0 : index
    %c0_123 = arith.constant 0 : index
    %517 = vector.load %arg0[%516, %c0_122, %c0_123] : memref<8x2x64xf32, #tpu.memory_space<vmem>>, vector<1x2x64xf32>
    %518 = vector.shape_cast %517 : vector<1x2x64xf32> to vector<2x64xf32>
    %c7_i32_124 = arith.constant 7 : i32
    %519 = arith.subi %c7_i32_124, %c7_i32_121 : i32
    %520 = arith.index_cast %519 : i32 to index
    %c0_125 = arith.constant 0 : index
    %c0_126 = arith.constant 0 : index
    %521 = vector.load %arg0[%520, %c0_125, %c0_126] : memref<8x2x64xf32, #tpu.memory_space<vmem>>, vector<1x2x64xf32>
    %522 = vector.shape_cast %521 : vector<1x2x64xf32> to vector<2x64xf32>
    %523 = tpu.concatenate %518, %480 in 1 : vector<2x64xf32>, vector<2x32xf32> -> vector<2x96xf32>
    %524 = tpu.concatenate %522, %506 in 1 : vector<2x64xf32>, vector<2x32xf32> -> vector<2x96xf32>
    %525 = tpu.concatenate %523, %524 in 0 : vector<2x96xf32>, vector<2x96xf32> -> vector<4x96xf32>
    %cst_127 = arith.constant dense<0.000000e+00> : vector<4x256xf32>
    %526 = tpu.matmul %525, %0, %cst_127 {dimension_numbers = #tpu.dot_dimension_numbers<[1], [0], [0], [1], [0, 0, 1, 1], [], []>} : vector<4x96xf32>, vector<96x256xf32>, vector<4x256xf32> -> vector<4x256xf32>
    %527 = arith.addf %526, %3 : vector<4x256xf32>
    %528 = vector.extract_strided_slice %527 {offsets = [0, 0], sizes = [2, 128], strides = [1, 1]} : vector<4x256xf32> to vector<2x128xf32>
    %529 = vector.extract_strided_slice %528 {offsets = [0, 0], sizes = [2, 32], strides = [1, 1]} : vector<2x128xf32> to vector<2x32xf32>
    %530 = arith.negf %529 : vector<2x32xf32>
    %531 = math.exp %530 : vector<2x32xf32>
    %cst_128 = arith.constant 1.000000e+00 : f32
    %532 = vector.broadcast %cst_128 : f32 to vector<2x32xf32>
    %533 = arith.addf %532, %531 : vector<2x32xf32>
    %534 = arith.divf %532, %533 : vector<2x32xf32>
    %535 = vector.extract_strided_slice %528 {offsets = [0, 32], sizes = [2, 32], strides = [1, 1]} : vector<2x128xf32> to vector<2x32xf32>
    %536 = arith.negf %535 : vector<2x32xf32>
    %537 = math.exp %536 : vector<2x32xf32>
    %cst_129 = arith.constant 1.000000e+00 : f32
    %538 = vector.broadcast %cst_129 : f32 to vector<2x32xf32>
    %539 = arith.addf %538, %537 : vector<2x32xf32>
    %540 = arith.divf %538, %539 : vector<2x32xf32>
    %541 = vector.extract_strided_slice %528 {offsets = [0, 64], sizes = [2, 32], strides = [1, 1]} : vector<2x128xf32> to vector<2x32xf32>
    %542 = math.tanh %541 : vector<2x32xf32>
    %543 = vector.extract_strided_slice %528 {offsets = [0, 96], sizes = [2, 32], strides = [1, 1]} : vector<2x128xf32> to vector<2x32xf32>
    %544 = arith.negf %543 : vector<2x32xf32>
    %545 = math.exp %544 : vector<2x32xf32>
    %cst_130 = arith.constant 1.000000e+00 : f32
    %546 = vector.broadcast %cst_130 : f32 to vector<2x32xf32>
    %547 = arith.addf %546, %545 : vector<2x32xf32>
    %548 = arith.divf %546, %547 : vector<2x32xf32>
    %549 = arith.mulf %540, %478 : vector<2x32xf32>
    %550 = arith.mulf %534, %542 : vector<2x32xf32>
    %551 = arith.addf %549, %550 : vector<2x32xf32>
    %552 = math.tanh %551 : vector<2x32xf32>
    %553 = arith.mulf %548, %552 : vector<2x32xf32>
    %554 = vector.extract_strided_slice %527 {offsets = [2, 128], sizes = [2, 128], strides = [1, 1]} : vector<4x256xf32> to vector<2x128xf32>
    %555 = vector.extract_strided_slice %554 {offsets = [0, 0], sizes = [2, 32], strides = [1, 1]} : vector<2x128xf32> to vector<2x32xf32>
    %556 = arith.negf %555 : vector<2x32xf32>
    %557 = math.exp %556 : vector<2x32xf32>
    %cst_131 = arith.constant 1.000000e+00 : f32
    %558 = vector.broadcast %cst_131 : f32 to vector<2x32xf32>
    %559 = arith.addf %558, %557 : vector<2x32xf32>
    %560 = arith.divf %558, %559 : vector<2x32xf32>
    %561 = vector.extract_strided_slice %554 {offsets = [0, 32], sizes = [2, 32], strides = [1, 1]} : vector<2x128xf32> to vector<2x32xf32>
    %562 = arith.negf %561 : vector<2x32xf32>
    %563 = math.exp %562 : vector<2x32xf32>
    %cst_132 = arith.constant 1.000000e+00 : f32
    %564 = vector.broadcast %cst_132 : f32 to vector<2x32xf32>
    %565 = arith.addf %564, %563 : vector<2x32xf32>
    %566 = arith.divf %564, %565 : vector<2x32xf32>
    %567 = vector.extract_strided_slice %554 {offsets = [0, 64], sizes = [2, 32], strides = [1, 1]} : vector<2x128xf32> to vector<2x32xf32>
    %568 = math.tanh %567 : vector<2x32xf32>
    %569 = vector.extract_strided_slice %554 {offsets = [0, 96], sizes = [2, 32], strides = [1, 1]} : vector<2x128xf32> to vector<2x32xf32>
    %570 = arith.negf %569 : vector<2x32xf32>
    %571 = math.exp %570 : vector<2x32xf32>
    %cst_133 = arith.constant 1.000000e+00 : f32
    %572 = vector.broadcast %cst_133 : f32 to vector<2x32xf32>
    %573 = arith.addf %572, %571 : vector<2x32xf32>
    %574 = arith.divf %572, %573 : vector<2x32xf32>
    %575 = arith.mulf %566, %504 : vector<2x32xf32>
    %576 = arith.mulf %560, %568 : vector<2x32xf32>
    %577 = arith.addf %575, %576 : vector<2x32xf32>
    %578 = math.tanh %577 : vector<2x32xf32>
    %579 = arith.mulf %574, %578 : vector<2x32xf32>
    %580 = arith.index_cast %c7_i32_121 : i32 to index
    %c0_134 = arith.constant 0 : index
    %c0_135 = arith.constant 0 : index
    %581 = vector.load %arg6[%580, %c0_134, %c0_135] : memref<8x2x32xf32, #tpu.memory_space<vmem>>, vector<1x2x32xf32>
    %582 = vector.shape_cast %581 : vector<1x2x32xf32> to vector<2x32xf32>
    %583 = vector.shape_cast %553 : vector<2x32xf32> to vector<1x2x32xf32>
    tpu.vector_store %arg6[%580, %c0_134, %c0_135], %583 {strides = array<i32>} : memref<8x2x32xf32, #tpu.memory_space<vmem>>, vector<1x2x32xf32>,
    %c7_i32_136 = arith.constant 7 : i32
    %584 = arith.subi %c7_i32_136, %c7_i32_121 : i32
    %585 = arith.index_cast %584 : i32 to index
    %c0_137 = arith.constant 0 : index
    %c0_138 = arith.constant 0 : index
    %586 = vector.load %arg7[%585, %c0_137, %c0_138] : memref<8x2x32xf32, #tpu.memory_space<vmem>>, vector<1x2x32xf32>
    %587 = vector.shape_cast %586 : vector<1x2x32xf32> to vector<2x32xf32>
    %588 = vector.shape_cast %579 : vector<2x32xf32> to vector<1x2x32xf32>
    tpu.vector_store %arg7[%585, %c0_137, %c0_138], %588 {strides = array<i32>} : memref<8x2x32xf32, #tpu.memory_space<vmem>>, vector<1x2x32xf32>,
    %c8_i32 = arith.constant 8 : i32
    %c0_139 = arith.constant 0 : index
    %c0_140 = arith.constant 0 : index
    %589 = vector.load %arg3[%c0_139, %c0_140] : memref<96x256xf32, #tpu.memory_space<vmem>>, vector<96x256xf32>
    %c0_141 = arith.constant 0 : index
    %c0_142 = arith.constant 0 : index
    %590 = vector.load %arg4[%c0_141, %c0_142] : memref<1x256xf32, #tpu.memory_space<vmem>>, vector<1x256xf32>
    %591 = vector.shape_cast %590 : vector<1x256xf32> to vector<1x256xf32>
    %592 = vector.broadcast %591 : vector<1x256xf32> to vector<4x256xf32>
    %cst_143 = arith.constant 0.000000e+00 : f32
    %593 = vector.broadcast %cst_143 : f32 to vector<2x32xf32>
    %c0_i32_144 = arith.constant 0 : i32
    %594 = arith.index_cast %c0_i32_144 : i32 to index
    %c0_145 = arith.constant 0 : index
    %c0_146 = arith.constant 0 : index
    %595 = vector.load %arg6[%594, %c0_145, %c0_146] : memref<8x2x32xf32, #tpu.memory_space<vmem>>, vector<1x2x32xf32>
    %596 = vector.shape_cast %595 : vector<1x2x32xf32> to vector<2x32xf32>
    %597 = arith.index_cast %c0_i32_144 : i32 to index
    %c0_147 = arith.constant 0 : index
    %c0_148 = arith.constant 0 : index
    %598 = vector.load %arg7[%597, %c0_147, %c0_148] : memref<8x2x32xf32, #tpu.memory_space<vmem>>, vector<1x2x32xf32>
    %599 = vector.shape_cast %598 : vector<1x2x32xf32> to vector<2x32xf32>
    %600 = tpu.concatenate %596, %599 in 1 : vector<2x32xf32>, vector<2x32xf32> -> vector<2x64xf32>
    %c7_i32_149 = arith.constant 7 : i32
    %601 = arith.subi %c7_i32_149, %c0_i32_144 : i32
    %602 = arith.index_cast %601 : i32 to index
    %c0_150 = arith.constant 0 : index
    %c0_151 = arith.constant 0 : index
    %603 = vector.load %arg6[%602, %c0_150, %c0_151] : memref<8x2x32xf32, #tpu.memory_space<vmem>>, vector<1x2x32xf32>
    %604 = vector.shape_cast %603 : vector<1x2x32xf32> to vector<2x32xf32>
    %605 = arith.index_cast %601 : i32 to index
    %c0_152 = arith.constant 0 : index
    %c0_153 = arith.constant 0 : index
    %606 = vector.load %arg7[%605, %c0_152, %c0_153] : memref<8x2x32xf32, #tpu.memory_space<vmem>>, vector<1x2x32xf32>
    %607 = vector.shape_cast %606 : vector<1x2x32xf32> to vector<2x32xf32>
    %608 = tpu.concatenate %604, %607 in 1 : vector<2x32xf32>, vector<2x32xf32> -> vector<2x64xf32>
    %609 = tpu.concatenate %600, %593 in 1 : vector<2x64xf32>, vector<2x32xf32> -> vector<2x96xf32>
    %610 = tpu.concatenate %608, %593 in 1 : vector<2x64xf32>, vector<2x32xf32> -> vector<2x96xf32>
    %611 = tpu.concatenate %609, %610 in 0 : vector<2x96xf32>, vector<2x96xf32> -> vector<4x96xf32>
    %cst_154 = arith.constant dense<0.000000e+00> : vector<4x256xf32>
    %612 = tpu.matmul %611, %589, %cst_154 {dimension_numbers = #tpu.dot_dimension_numbers<[1], [0], [0], [1], [0, 0, 1, 1], [], []>} : vector<4x96xf32>, vector<96x256xf32>, vector<4x256xf32> -> vector<4x256xf32>
    %613 = arith.addf %612, %592 : vector<4x256xf32>
    %614 = vector.extract_strided_slice %613 {offsets = [0, 0], sizes = [2, 128], strides = [1, 1]} : vector<4x256xf32> to vector<2x128xf32>
    %615 = vector.extract_strided_slice %614 {offsets = [0, 0], sizes = [2, 32], strides = [1, 1]} : vector<2x128xf32> to vector<2x32xf32>
    %616 = arith.negf %615 : vector<2x32xf32>
    %617 = math.exp %616 : vector<2x32xf32>
    %cst_155 = arith.constant 1.000000e+00 : f32
    %618 = vector.broadcast %cst_155 : f32 to vector<2x32xf32>
    %619 = arith.addf %618, %617 : vector<2x32xf32>
    %620 = arith.divf %618, %619 : vector<2x32xf32>
    %621 = vector.extract_strided_slice %614 {offsets = [0, 32], sizes = [2, 32], strides = [1, 1]} : vector<2x128xf32> to vector<2x32xf32>
    %622 = arith.negf %621 : vector<2x32xf32>
    %623 = math.exp %622 : vector<2x32xf32>
    %cst_156 = arith.constant 1.000000e+00 : f32
    %624 = vector.broadcast %cst_156 : f32 to vector<2x32xf32>
    %625 = arith.addf %624, %623 : vector<2x32xf32>
    %626 = arith.divf %624, %625 : vector<2x32xf32>
    %627 = vector.extract_strided_slice %614 {offsets = [0, 64], sizes = [2, 32], strides = [1, 1]} : vector<2x128xf32> to vector<2x32xf32>
    %628 = math.tanh %627 : vector<2x32xf32>
    %629 = vector.extract_strided_slice %614 {offsets = [0, 96], sizes = [2, 32], strides = [1, 1]} : vector<2x128xf32> to vector<2x32xf32>
    %630 = arith.negf %629 : vector<2x32xf32>
    %631 = math.exp %630 : vector<2x32xf32>
    %cst_157 = arith.constant 1.000000e+00 : f32
    %632 = vector.broadcast %cst_157 : f32 to vector<2x32xf32>
    %633 = arith.addf %632, %631 : vector<2x32xf32>
    %634 = arith.divf %632, %633 : vector<2x32xf32>
    %635 = arith.mulf %626, %593 : vector<2x32xf32>
    %636 = arith.mulf %620, %628 : vector<2x32xf32>
    %637 = arith.addf %635, %636 : vector<2x32xf32>
    %638 = math.tanh %637 : vector<2x32xf32>
    %639 = arith.mulf %634, %638 : vector<2x32xf32>
    %640 = vector.extract_strided_slice %613 {offsets = [2, 128], sizes = [2, 128], strides = [1, 1]} : vector<4x256xf32> to vector<2x128xf32>
    %641 = vector.extract_strided_slice %640 {offsets = [0, 0], sizes = [2, 32], strides = [1, 1]} : vector<2x128xf32> to vector<2x32xf32>
    %642 = arith.negf %641 : vector<2x32xf32>
    %643 = math.exp %642 : vector<2x32xf32>
    %cst_158 = arith.constant 1.000000e+00 : f32
    %644 = vector.broadcast %cst_158 : f32 to vector<2x32xf32>
    %645 = arith.addf %644, %643 : vector<2x32xf32>
    %646 = arith.divf %644, %645 : vector<2x32xf32>
    %647 = vector.extract_strided_slice %640 {offsets = [0, 32], sizes = [2, 32], strides = [1, 1]} : vector<2x128xf32> to vector<2x32xf32>
    %648 = arith.negf %647 : vector<2x32xf32>
    %649 = math.exp %648 : vector<2x32xf32>
    %cst_159 = arith.constant 1.000000e+00 : f32
    %650 = vector.broadcast %cst_159 : f32 to vector<2x32xf32>
    %651 = arith.addf %650, %649 : vector<2x32xf32>
    %652 = arith.divf %650, %651 : vector<2x32xf32>
    %653 = vector.extract_strided_slice %640 {offsets = [0, 64], sizes = [2, 32], strides = [1, 1]} : vector<2x128xf32> to vector<2x32xf32>
    %654 = math.tanh %653 : vector<2x32xf32>
    %655 = vector.extract_strided_slice %640 {offsets = [0, 96], sizes = [2, 32], strides = [1, 1]} : vector<2x128xf32> to vector<2x32xf32>
    %656 = arith.negf %655 : vector<2x32xf32>
    %657 = math.exp %656 : vector<2x32xf32>
    %cst_160 = arith.constant 1.000000e+00 : f32
    %658 = vector.broadcast %cst_160 : f32 to vector<2x32xf32>
    %659 = arith.addf %658, %657 : vector<2x32xf32>
    %660 = arith.divf %658, %659 : vector<2x32xf32>
    %661 = arith.mulf %652, %593 : vector<2x32xf32>
    %662 = arith.mulf %646, %654 : vector<2x32xf32>
    %663 = arith.addf %661, %662 : vector<2x32xf32>
    %664 = math.tanh %663 : vector<2x32xf32>
    %665 = arith.mulf %660, %664 : vector<2x32xf32>
    %666 = arith.index_cast %c0_i32_144 : i32 to index
    %c0_161 = arith.constant 0 : index
    %c0_162 = arith.constant 0 : index
    %667 = vector.load %arg8[%666, %c0_161, %c0_162] : memref<8x2x32xf32, #tpu.memory_space<vmem>>, vector<1x2x32xf32>
    %668 = vector.shape_cast %667 : vector<1x2x32xf32> to vector<2x32xf32>
    %669 = vector.shape_cast %639 : vector<2x32xf32> to vector<1x2x32xf32>
    tpu.vector_store %arg8[%666, %c0_161, %c0_162], %669 {strides = array<i32>} : memref<8x2x32xf32, #tpu.memory_space<vmem>>, vector<1x2x32xf32>,
    %c7_i32_163 = arith.constant 7 : i32
    %670 = arith.subi %c7_i32_163, %c0_i32_144 : i32
    %671 = arith.index_cast %670 : i32 to index
    %c0_164 = arith.constant 0 : index
    %c0_165 = arith.constant 0 : index
    %672 = vector.load %arg9[%671, %c0_164, %c0_165] : memref<8x2x32xf32, #tpu.memory_space<vmem>>, vector<1x2x32xf32>
    %673 = vector.shape_cast %672 : vector<1x2x32xf32> to vector<2x32xf32>
    %674 = vector.shape_cast %665 : vector<2x32xf32> to vector<1x2x32xf32>
    tpu.vector_store %arg9[%671, %c0_164, %c0_165], %674 {strides = array<i32>} : memref<8x2x32xf32, #tpu.memory_space<vmem>>, vector<1x2x32xf32>,
    %c1_i32_166 = arith.constant 1 : i32
    %675 = arith.index_cast %c1_i32_166 : i32 to index
    %c0_167 = arith.constant 0 : index
    %c0_168 = arith.constant 0 : index
    %676 = vector.load %arg6[%675, %c0_167, %c0_168] : memref<8x2x32xf32, #tpu.memory_space<vmem>>, vector<1x2x32xf32>
    %677 = vector.shape_cast %676 : vector<1x2x32xf32> to vector<2x32xf32>
    %678 = arith.index_cast %c1_i32_166 : i32 to index
    %c0_169 = arith.constant 0 : index
    %c0_170 = arith.constant 0 : index
    %679 = vector.load %arg7[%678, %c0_169, %c0_170] : memref<8x2x32xf32, #tpu.memory_space<vmem>>, vector<1x2x32xf32>
    %680 = vector.shape_cast %679 : vector<1x2x32xf32> to vector<2x32xf32>
    %681 = tpu.concatenate %677, %680 in 1 : vector<2x32xf32>, vector<2x32xf32> -> vector<2x64xf32>
    %c7_i32_171 = arith.constant 7 : i32
    %682 = arith.subi %c7_i32_171, %c1_i32_166 : i32
    %683 = arith.index_cast %682 : i32 to index
    %c0_172 = arith.constant 0 : index
    %c0_173 = arith.constant 0 : index
    %684 = vector.load %arg6[%683, %c0_172, %c0_173] : memref<8x2x32xf32, #tpu.memory_space<vmem>>, vector<1x2x32xf32>
    %685 = vector.shape_cast %684 : vector<1x2x32xf32> to vector<2x32xf32>
    %686 = arith.index_cast %682 : i32 to index
    %c0_174 = arith.constant 0 : index
    %c0_175 = arith.constant 0 : index
    %687 = vector.load %arg7[%686, %c0_174, %c0_175] : memref<8x2x32xf32, #tpu.memory_space<vmem>>, vector<1x2x32xf32>
    %688 = vector.shape_cast %687 : vector<1x2x32xf32> to vector<2x32xf32>
    %689 = tpu.concatenate %685, %688 in 1 : vector<2x32xf32>, vector<2x32xf32> -> vector<2x64xf32>
    %690 = tpu.concatenate %681, %639 in 1 : vector<2x64xf32>, vector<2x32xf32> -> vector<2x96xf32>
    %691 = tpu.concatenate %689, %665 in 1 : vector<2x64xf32>, vector<2x32xf32> -> vector<2x96xf32>
    %692 = tpu.concatenate %690, %691 in 0 : vector<2x96xf32>, vector<2x96xf32> -> vector<4x96xf32>
    %cst_176 = arith.constant dense<0.000000e+00> : vector<4x256xf32>
    %693 = tpu.matmul %692, %589, %cst_176 {dimension_numbers = #tpu.dot_dimension_numbers<[1], [0], [0], [1], [0, 0, 1, 1], [], []>} : vector<4x96xf32>, vector<96x256xf32>, vector<4x256xf32> -> vector<4x256xf32>
    %694 = arith.addf %693, %592 : vector<4x256xf32>
    %695 = vector.extract_strided_slice %694 {offsets = [0, 0], sizes = [2, 128], strides = [1, 1]} : vector<4x256xf32> to vector<2x128xf32>
    %696 = vector.extract_strided_slice %695 {offsets = [0, 0], sizes = [2, 32], strides = [1, 1]} : vector<2x128xf32> to vector<2x32xf32>
    %697 = arith.negf %696 : vector<2x32xf32>
    %698 = math.exp %697 : vector<2x32xf32>
    %cst_177 = arith.constant 1.000000e+00 : f32
    %699 = vector.broadcast %cst_177 : f32 to vector<2x32xf32>
    %700 = arith.addf %699, %698 : vector<2x32xf32>
    %701 = arith.divf %699, %700 : vector<2x32xf32>
    %702 = vector.extract_strided_slice %695 {offsets = [0, 32], sizes = [2, 32], strides = [1, 1]} : vector<2x128xf32> to vector<2x32xf32>
    %703 = arith.negf %702 : vector<2x32xf32>
    %704 = math.exp %703 : vector<2x32xf32>
    %cst_178 = arith.constant 1.000000e+00 : f32
    %705 = vector.broadcast %cst_178 : f32 to vector<2x32xf32>
    %706 = arith.addf %705, %704 : vector<2x32xf32>
    %707 = arith.divf %705, %706 : vector<2x32xf32>
    %708 = vector.extract_strided_slice %695 {offsets = [0, 64], sizes = [2, 32], strides = [1, 1]} : vector<2x128xf32> to vector<2x32xf32>
    %709 = math.tanh %708 : vector<2x32xf32>
    %710 = vector.extract_strided_slice %695 {offsets = [0, 96], sizes = [2, 32], strides = [1, 1]} : vector<2x128xf32> to vector<2x32xf32>
    %711 = arith.negf %710 : vector<2x32xf32>
    %712 = math.exp %711 : vector<2x32xf32>
    %cst_179 = arith.constant 1.000000e+00 : f32
    %713 = vector.broadcast %cst_179 : f32 to vector<2x32xf32>
    %714 = arith.addf %713, %712 : vector<2x32xf32>
    %715 = arith.divf %713, %714 : vector<2x32xf32>
    %716 = arith.mulf %707, %637 : vector<2x32xf32>
    %717 = arith.mulf %701, %709 : vector<2x32xf32>
    %718 = arith.addf %716, %717 : vector<2x32xf32>
    %719 = math.tanh %718 : vector<2x32xf32>
    %720 = arith.mulf %715, %719 : vector<2x32xf32>
    %721 = vector.extract_strided_slice %694 {offsets = [2, 128], sizes = [2, 128], strides = [1, 1]} : vector<4x256xf32> to vector<2x128xf32>
    %722 = vector.extract_strided_slice %721 {offsets = [0, 0], sizes = [2, 32], strides = [1, 1]} : vector<2x128xf32> to vector<2x32xf32>
    %723 = arith.negf %722 : vector<2x32xf32>
    %724 = math.exp %723 : vector<2x32xf32>
    %cst_180 = arith.constant 1.000000e+00 : f32
    %725 = vector.broadcast %cst_180 : f32 to vector<2x32xf32>
    %726 = arith.addf %725, %724 : vector<2x32xf32>
    %727 = arith.divf %725, %726 : vector<2x32xf32>
    %728 = vector.extract_strided_slice %721 {offsets = [0, 32], sizes = [2, 32], strides = [1, 1]} : vector<2x128xf32> to vector<2x32xf32>
    %729 = arith.negf %728 : vector<2x32xf32>
    %730 = math.exp %729 : vector<2x32xf32>
    %cst_181 = arith.constant 1.000000e+00 : f32
    %731 = vector.broadcast %cst_181 : f32 to vector<2x32xf32>
    %732 = arith.addf %731, %730 : vector<2x32xf32>
    %733 = arith.divf %731, %732 : vector<2x32xf32>
    %734 = vector.extract_strided_slice %721 {offsets = [0, 64], sizes = [2, 32], strides = [1, 1]} : vector<2x128xf32> to vector<2x32xf32>
    %735 = math.tanh %734 : vector<2x32xf32>
    %736 = vector.extract_strided_slice %721 {offsets = [0, 96], sizes = [2, 32], strides = [1, 1]} : vector<2x128xf32> to vector<2x32xf32>
    %737 = arith.negf %736 : vector<2x32xf32>
    %738 = math.exp %737 : vector<2x32xf32>
    %cst_182 = arith.constant 1.000000e+00 : f32
    %739 = vector.broadcast %cst_182 : f32 to vector<2x32xf32>
    %740 = arith.addf %739, %738 : vector<2x32xf32>
    %741 = arith.divf %739, %740 : vector<2x32xf32>
    %742 = arith.mulf %733, %663 : vector<2x32xf32>
    %743 = arith.mulf %727, %735 : vector<2x32xf32>
    %744 = arith.addf %742, %743 : vector<2x32xf32>
    %745 = math.tanh %744 : vector<2x32xf32>
    %746 = arith.mulf %741, %745 : vector<2x32xf32>
    %747 = arith.index_cast %c1_i32_166 : i32 to index
    %c0_183 = arith.constant 0 : index
    %c0_184 = arith.constant 0 : index
    %748 = vector.load %arg8[%747, %c0_183, %c0_184] : memref<8x2x32xf32, #tpu.memory_space<vmem>>, vector<1x2x32xf32>
    %749 = vector.shape_cast %748 : vector<1x2x32xf32> to vector<2x32xf32>
    %750 = vector.shape_cast %720 : vector<2x32xf32> to vector<1x2x32xf32>
    tpu.vector_store %arg8[%747, %c0_183, %c0_184], %750 {strides = array<i32>} : memref<8x2x32xf32, #tpu.memory_space<vmem>>, vector<1x2x32xf32>,
    %c7_i32_185 = arith.constant 7 : i32
    %751 = arith.subi %c7_i32_185, %c1_i32_166 : i32
    %752 = arith.index_cast %751 : i32 to index
    %c0_186 = arith.constant 0 : index
    %c0_187 = arith.constant 0 : index
    %753 = vector.load %arg9[%752, %c0_186, %c0_187] : memref<8x2x32xf32, #tpu.memory_space<vmem>>, vector<1x2x32xf32>
    %754 = vector.shape_cast %753 : vector<1x2x32xf32> to vector<2x32xf32>
    %755 = vector.shape_cast %746 : vector<2x32xf32> to vector<1x2x32xf32>
    tpu.vector_store %arg9[%752, %c0_186, %c0_187], %755 {strides = array<i32>} : memref<8x2x32xf32, #tpu.memory_space<vmem>>, vector<1x2x32xf32>,
    %c2_i32_188 = arith.constant 2 : i32
    %756 = arith.index_cast %c2_i32_188 : i32 to index
    %c0_189 = arith.constant 0 : index
    %c0_190 = arith.constant 0 : index
    %757 = vector.load %arg6[%756, %c0_189, %c0_190] : memref<8x2x32xf32, #tpu.memory_space<vmem>>, vector<1x2x32xf32>
    %758 = vector.shape_cast %757 : vector<1x2x32xf32> to vector<2x32xf32>
    %759 = arith.index_cast %c2_i32_188 : i32 to index
    %c0_191 = arith.constant 0 : index
    %c0_192 = arith.constant 0 : index
    %760 = vector.load %arg7[%759, %c0_191, %c0_192] : memref<8x2x32xf32, #tpu.memory_space<vmem>>, vector<1x2x32xf32>
    %761 = vector.shape_cast %760 : vector<1x2x32xf32> to vector<2x32xf32>
    %762 = tpu.concatenate %758, %761 in 1 : vector<2x32xf32>, vector<2x32xf32> -> vector<2x64xf32>
    %c7_i32_193 = arith.constant 7 : i32
    %763 = arith.subi %c7_i32_193, %c2_i32_188 : i32
    %764 = arith.index_cast %763 : i32 to index
    %c0_194 = arith.constant 0 : index
    %c0_195 = arith.constant 0 : index
    %765 = vector.load %arg6[%764, %c0_194, %c0_195] : memref<8x2x32xf32, #tpu.memory_space<vmem>>, vector<1x2x32xf32>
    %766 = vector.shape_cast %765 : vector<1x2x32xf32> to vector<2x32xf32>
    %767 = arith.index_cast %763 : i32 to index
    %c0_196 = arith.constant 0 : index
    %c0_197 = arith.constant 0 : index
    %768 = vector.load %arg7[%767, %c0_196, %c0_197] : memref<8x2x32xf32, #tpu.memory_space<vmem>>, vector<1x2x32xf32>
    %769 = vector.shape_cast %768 : vector<1x2x32xf32> to vector<2x32xf32>
    %770 = tpu.concatenate %766, %769 in 1 : vector<2x32xf32>, vector<2x32xf32> -> vector<2x64xf32>
    %771 = tpu.concatenate %762, %720 in 1 : vector<2x64xf32>, vector<2x32xf32> -> vector<2x96xf32>
    %772 = tpu.concatenate %770, %746 in 1 : vector<2x64xf32>, vector<2x32xf32> -> vector<2x96xf32>
    %773 = tpu.concatenate %771, %772 in 0 : vector<2x96xf32>, vector<2x96xf32> -> vector<4x96xf32>
    %cst_198 = arith.constant dense<0.000000e+00> : vector<4x256xf32>
    %774 = tpu.matmul %773, %589, %cst_198 {dimension_numbers = #tpu.dot_dimension_numbers<[1], [0], [0], [1], [0, 0, 1, 1], [], []>} : vector<4x96xf32>, vector<96x256xf32>, vector<4x256xf32> -> vector<4x256xf32>
    %775 = arith.addf %774, %592 : vector<4x256xf32>
    %776 = vector.extract_strided_slice %775 {offsets = [0, 0], sizes = [2, 128], strides = [1, 1]} : vector<4x256xf32> to vector<2x128xf32>
    %777 = vector.extract_strided_slice %776 {offsets = [0, 0], sizes = [2, 32], strides = [1, 1]} : vector<2x128xf32> to vector<2x32xf32>
    %778 = arith.negf %777 : vector<2x32xf32>
    %779 = math.exp %778 : vector<2x32xf32>
    %cst_199 = arith.constant 1.000000e+00 : f32
    %780 = vector.broadcast %cst_199 : f32 to vector<2x32xf32>
    %781 = arith.addf %780, %779 : vector<2x32xf32>
    %782 = arith.divf %780, %781 : vector<2x32xf32>
    %783 = vector.extract_strided_slice %776 {offsets = [0, 32], sizes = [2, 32], strides = [1, 1]} : vector<2x128xf32> to vector<2x32xf32>
    %784 = arith.negf %783 : vector<2x32xf32>
    %785 = math.exp %784 : vector<2x32xf32>
    %cst_200 = arith.constant 1.000000e+00 : f32
    %786 = vector.broadcast %cst_200 : f32 to vector<2x32xf32>
    %787 = arith.addf %786, %785 : vector<2x32xf32>
    %788 = arith.divf %786, %787 : vector<2x32xf32>
    %789 = vector.extract_strided_slice %776 {offsets = [0, 64], sizes = [2, 32], strides = [1, 1]} : vector<2x128xf32> to vector<2x32xf32>
    %790 = math.tanh %789 : vector<2x32xf32>
    %791 = vector.extract_strided_slice %776 {offsets = [0, 96], sizes = [2, 32], strides = [1, 1]} : vector<2x128xf32> to vector<2x32xf32>
    %792 = arith.negf %791 : vector<2x32xf32>
    %793 = math.exp %792 : vector<2x32xf32>
    %cst_201 = arith.constant 1.000000e+00 : f32
    %794 = vector.broadcast %cst_201 : f32 to vector<2x32xf32>
    %795 = arith.addf %794, %793 : vector<2x32xf32>
    %796 = arith.divf %794, %795 : vector<2x32xf32>
    %797 = arith.mulf %788, %718 : vector<2x32xf32>
    %798 = arith.mulf %782, %790 : vector<2x32xf32>
    %799 = arith.addf %797, %798 : vector<2x32xf32>
    %800 = math.tanh %799 : vector<2x32xf32>
    %801 = arith.mulf %796, %800 : vector<2x32xf32>
    %802 = vector.extract_strided_slice %775 {offsets = [2, 128], sizes = [2, 128], strides = [1, 1]} : vector<4x256xf32> to vector<2x128xf32>
    %803 = vector.extract_strided_slice %802 {offsets = [0, 0], sizes = [2, 32], strides = [1, 1]} : vector<2x128xf32> to vector<2x32xf32>
    %804 = arith.negf %803 : vector<2x32xf32>
    %805 = math.exp %804 : vector<2x32xf32>
    %cst_202 = arith.constant 1.000000e+00 : f32
    %806 = vector.broadcast %cst_202 : f32 to vector<2x32xf32>
    %807 = arith.addf %806, %805 : vector<2x32xf32>
    %808 = arith.divf %806, %807 : vector<2x32xf32>
    %809 = vector.extract_strided_slice %802 {offsets = [0, 32], sizes = [2, 32], strides = [1, 1]} : vector<2x128xf32> to vector<2x32xf32>
    %810 = arith.negf %809 : vector<2x32xf32>
    %811 = math.exp %810 : vector<2x32xf32>
    %cst_203 = arith.constant 1.000000e+00 : f32
    %812 = vector.broadcast %cst_203 : f32 to vector<2x32xf32>
    %813 = arith.addf %812, %811 : vector<2x32xf32>
    %814 = arith.divf %812, %813 : vector<2x32xf32>
    %815 = vector.extract_strided_slice %802 {offsets = [0, 64], sizes = [2, 32], strides = [1, 1]} : vector<2x128xf32> to vector<2x32xf32>
    %816 = math.tanh %815 : vector<2x32xf32>
    %817 = vector.extract_strided_slice %802 {offsets = [0, 96], sizes = [2, 32], strides = [1, 1]} : vector<2x128xf32> to vector<2x32xf32>
    %818 = arith.negf %817 : vector<2x32xf32>
    %819 = math.exp %818 : vector<2x32xf32>
    %cst_204 = arith.constant 1.000000e+00 : f32
    %820 = vector.broadcast %cst_204 : f32 to vector<2x32xf32>
    %821 = arith.addf %820, %819 : vector<2x32xf32>
    %822 = arith.divf %820, %821 : vector<2x32xf32>
    %823 = arith.mulf %814, %744 : vector<2x32xf32>
    %824 = arith.mulf %808, %816 : vector<2x32xf32>
    %825 = arith.addf %823, %824 : vector<2x32xf32>
    %826 = math.tanh %825 : vector<2x32xf32>
    %827 = arith.mulf %822, %826 : vector<2x32xf32>
    %828 = arith.index_cast %c2_i32_188 : i32 to index
    %c0_205 = arith.constant 0 : index
    %c0_206 = arith.constant 0 : index
    %829 = vector.load %arg8[%828, %c0_205, %c0_206] : memref<8x2x32xf32, #tpu.memory_space<vmem>>, vector<1x2x32xf32>
    %830 = vector.shape_cast %829 : vector<1x2x32xf32> to vector<2x32xf32>
    %831 = vector.shape_cast %801 : vector<2x32xf32> to vector<1x2x32xf32>
    tpu.vector_store %arg8[%828, %c0_205, %c0_206], %831 {strides = array<i32>} : memref<8x2x32xf32, #tpu.memory_space<vmem>>, vector<1x2x32xf32>,
    %c7_i32_207 = arith.constant 7 : i32
    %832 = arith.subi %c7_i32_207, %c2_i32_188 : i32
    %833 = arith.index_cast %832 : i32 to index
    %c0_208 = arith.constant 0 : index
    %c0_209 = arith.constant 0 : index
    %834 = vector.load %arg9[%833, %c0_208, %c0_209] : memref<8x2x32xf32, #tpu.memory_space<vmem>>, vector<1x2x32xf32>
    %835 = vector.shape_cast %834 : vector<1x2x32xf32> to vector<2x32xf32>
    %836 = vector.shape_cast %827 : vector<2x32xf32> to vector<1x2x32xf32>
    tpu.vector_store %arg9[%833, %c0_208, %c0_209], %836 {strides = array<i32>} : memref<8x2x32xf32, #tpu.memory_space<vmem>>, vector<1x2x32xf32>,
    %c3_i32_210 = arith.constant 3 : i32
    %837 = arith.index_cast %c3_i32_210 : i32 to index
    %c0_211 = arith.constant 0 : index
    %c0_212 = arith.constant 0 : index
    %838 = vector.load %arg6[%837, %c0_211, %c0_212] : memref<8x2x32xf32, #tpu.memory_space<vmem>>, vector<1x2x32xf32>
    %839 = vector.shape_cast %838 : vector<1x2x32xf32> to vector<2x32xf32>
    %840 = arith.index_cast %c3_i32_210 : i32 to index
    %c0_213 = arith.constant 0 : index
    %c0_214 = arith.constant 0 : index
    %841 = vector.load %arg7[%840, %c0_213, %c0_214] : memref<8x2x32xf32, #tpu.memory_space<vmem>>, vector<1x2x32xf32>
    %842 = vector.shape_cast %841 : vector<1x2x32xf32> to vector<2x32xf32>
    %843 = tpu.concatenate %839, %842 in 1 : vector<2x32xf32>, vector<2x32xf32> -> vector<2x64xf32>
    %c7_i32_215 = arith.constant 7 : i32
    %844 = arith.subi %c7_i32_215, %c3_i32_210 : i32
    %845 = arith.index_cast %844 : i32 to index
    %c0_216 = arith.constant 0 : index
    %c0_217 = arith.constant 0 : index
    %846 = vector.load %arg6[%845, %c0_216, %c0_217] : memref<8x2x32xf32, #tpu.memory_space<vmem>>, vector<1x2x32xf32>
    %847 = vector.shape_cast %846 : vector<1x2x32xf32> to vector<2x32xf32>
    %848 = arith.index_cast %844 : i32 to index
    %c0_218 = arith.constant 0 : index
    %c0_219 = arith.constant 0 : index
    %849 = vector.load %arg7[%848, %c0_218, %c0_219] : memref<8x2x32xf32, #tpu.memory_space<vmem>>, vector<1x2x32xf32>
    %850 = vector.shape_cast %849 : vector<1x2x32xf32> to vector<2x32xf32>
    %851 = tpu.concatenate %847, %850 in 1 : vector<2x32xf32>, vector<2x32xf32> -> vector<2x64xf32>
    %852 = tpu.concatenate %843, %801 in 1 : vector<2x64xf32>, vector<2x32xf32> -> vector<2x96xf32>
    %853 = tpu.concatenate %851, %827 in 1 : vector<2x64xf32>, vector<2x32xf32> -> vector<2x96xf32>
    %854 = tpu.concatenate %852, %853 in 0 : vector<2x96xf32>, vector<2x96xf32> -> vector<4x96xf32>
    %cst_220 = arith.constant dense<0.000000e+00> : vector<4x256xf32>
    %855 = tpu.matmul %854, %589, %cst_220 {dimension_numbers = #tpu.dot_dimension_numbers<[1], [0], [0], [1], [0, 0, 1, 1], [], []>} : vector<4x96xf32>, vector<96x256xf32>, vector<4x256xf32> -> vector<4x256xf32>
    %856 = arith.addf %855, %592 : vector<4x256xf32>
    %857 = vector.extract_strided_slice %856 {offsets = [0, 0], sizes = [2, 128], strides = [1, 1]} : vector<4x256xf32> to vector<2x128xf32>
    %858 = vector.extract_strided_slice %857 {offsets = [0, 0], sizes = [2, 32], strides = [1, 1]} : vector<2x128xf32> to vector<2x32xf32>
    %859 = arith.negf %858 : vector<2x32xf32>
    %860 = math.exp %859 : vector<2x32xf32>
    %cst_221 = arith.constant 1.000000e+00 : f32
    %861 = vector.broadcast %cst_221 : f32 to vector<2x32xf32>
    %862 = arith.addf %861, %860 : vector<2x32xf32>
    %863 = arith.divf %861, %862 : vector<2x32xf32>
    %864 = vector.extract_strided_slice %857 {offsets = [0, 32], sizes = [2, 32], strides = [1, 1]} : vector<2x128xf32> to vector<2x32xf32>
    %865 = arith.negf %864 : vector<2x32xf32>
    %866 = math.exp %865 : vector<2x32xf32>
    %cst_222 = arith.constant 1.000000e+00 : f32
    %867 = vector.broadcast %cst_222 : f32 to vector<2x32xf32>
    %868 = arith.addf %867, %866 : vector<2x32xf32>
    %869 = arith.divf %867, %868 : vector<2x32xf32>
    %870 = vector.extract_strided_slice %857 {offsets = [0, 64], sizes = [2, 32], strides = [1, 1]} : vector<2x128xf32> to vector<2x32xf32>
    %871 = math.tanh %870 : vector<2x32xf32>
    %872 = vector.extract_strided_slice %857 {offsets = [0, 96], sizes = [2, 32], strides = [1, 1]} : vector<2x128xf32> to vector<2x32xf32>
    %873 = arith.negf %872 : vector<2x32xf32>
    %874 = math.exp %873 : vector<2x32xf32>
    %cst_223 = arith.constant 1.000000e+00 : f32
    %875 = vector.broadcast %cst_223 : f32 to vector<2x32xf32>
    %876 = arith.addf %875, %874 : vector<2x32xf32>
    %877 = arith.divf %875, %876 : vector<2x32xf32>
    %878 = arith.mulf %869, %799 : vector<2x32xf32>
    %879 = arith.mulf %863, %871 : vector<2x32xf32>
    %880 = arith.addf %878, %879 : vector<2x32xf32>
    %881 = math.tanh %880 : vector<2x32xf32>
    %882 = arith.mulf %877, %881 : vector<2x32xf32>
    %883 = vector.extract_strided_slice %856 {offsets = [2, 128], sizes = [2, 128], strides = [1, 1]} : vector<4x256xf32> to vector<2x128xf32>
    %884 = vector.extract_strided_slice %883 {offsets = [0, 0], sizes = [2, 32], strides = [1, 1]} : vector<2x128xf32> to vector<2x32xf32>
    %885 = arith.negf %884 : vector<2x32xf32>
    %886 = math.exp %885 : vector<2x32xf32>
    %cst_224 = arith.constant 1.000000e+00 : f32
    %887 = vector.broadcast %cst_224 : f32 to vector<2x32xf32>
    %888 = arith.addf %887, %886 : vector<2x32xf32>
    %889 = arith.divf %887, %888 : vector<2x32xf32>
    %890 = vector.extract_strided_slice %883 {offsets = [0, 32], sizes = [2, 32], strides = [1, 1]} : vector<2x128xf32> to vector<2x32xf32>
    %891 = arith.negf %890 : vector<2x32xf32>
    %892 = math.exp %891 : vector<2x32xf32>
    %cst_225 = arith.constant 1.000000e+00 : f32
    %893 = vector.broadcast %cst_225 : f32 to vector<2x32xf32>
    %894 = arith.addf %893, %892 : vector<2x32xf32>
    %895 = arith.divf %893, %894 : vector<2x32xf32>
    %896 = vector.extract_strided_slice %883 {offsets = [0, 64], sizes = [2, 32], strides = [1, 1]} : vector<2x128xf32> to vector<2x32xf32>
    %897 = math.tanh %896 : vector<2x32xf32>
    %898 = vector.extract_strided_slice %883 {offsets = [0, 96], sizes = [2, 32], strides = [1, 1]} : vector<2x128xf32> to vector<2x32xf32>
    %899 = arith.negf %898 : vector<2x32xf32>
    %900 = math.exp %899 : vector<2x32xf32>
    %cst_226 = arith.constant 1.000000e+00 : f32
    %901 = vector.broadcast %cst_226 : f32 to vector<2x32xf32>
    %902 = arith.addf %901, %900 : vector<2x32xf32>
    %903 = arith.divf %901, %902 : vector<2x32xf32>
    %904 = arith.mulf %895, %825 : vector<2x32xf32>
    %905 = arith.mulf %889, %897 : vector<2x32xf32>
    %906 = arith.addf %904, %905 : vector<2x32xf32>
    %907 = math.tanh %906 : vector<2x32xf32>
    %908 = arith.mulf %903, %907 : vector<2x32xf32>
    %909 = arith.index_cast %c3_i32_210 : i32 to index
    %c0_227 = arith.constant 0 : index
    %c0_228 = arith.constant 0 : index
    %910 = vector.load %arg8[%909, %c0_227, %c0_228] : memref<8x2x32xf32, #tpu.memory_space<vmem>>, vector<1x2x32xf32>
    %911 = vector.shape_cast %910 : vector<1x2x32xf32> to vector<2x32xf32>
    %912 = vector.shape_cast %882 : vector<2x32xf32> to vector<1x2x32xf32>
    tpu.vector_store %arg8[%909, %c0_227, %c0_228], %912 {strides = array<i32>} : memref<8x2x32xf32, #tpu.memory_space<vmem>>, vector<1x2x32xf32>,
    %c7_i32_229 = arith.constant 7 : i32
    %913 = arith.subi %c7_i32_229, %c3_i32_210 : i32
    %914 = arith.index_cast %913 : i32 to index
    %c0_230 = arith.constant 0 : index
    %c0_231 = arith.constant 0 : index
    %915 = vector.load %arg9[%914, %c0_230, %c0_231] : memref<8x2x32xf32, #tpu.memory_space<vmem>>, vector<1x2x32xf32>
    %916 = vector.shape_cast %915 : vector<1x2x32xf32> to vector<2x32xf32>
    %917 = vector.shape_cast %908 : vector<2x32xf32> to vector<1x2x32xf32>
    tpu.vector_store %arg9[%914, %c0_230, %c0_231], %917 {strides = array<i32>} : memref<8x2x32xf32, #tpu.memory_space<vmem>>, vector<1x2x32xf32>,
    %c4_i32_232 = arith.constant 4 : i32
    %918 = arith.index_cast %c4_i32_232 : i32 to index
    %c0_233 = arith.constant 0 : index
    %c0_234 = arith.constant 0 : index
    %919 = vector.load %arg6[%918, %c0_233, %c0_234] : memref<8x2x32xf32, #tpu.memory_space<vmem>>, vector<1x2x32xf32>
    %920 = vector.shape_cast %919 : vector<1x2x32xf32> to vector<2x32xf32>
    %921 = arith.index_cast %c4_i32_232 : i32 to index
    %c0_235 = arith.constant 0 : index
    %c0_236 = arith.constant 0 : index
    %922 = vector.load %arg7[%921, %c0_235, %c0_236] : memref<8x2x32xf32, #tpu.memory_space<vmem>>, vector<1x2x32xf32>
    %923 = vector.shape_cast %922 : vector<1x2x32xf32> to vector<2x32xf32>
    %924 = tpu.concatenate %920, %923 in 1 : vector<2x32xf32>, vector<2x32xf32> -> vector<2x64xf32>
    %c7_i32_237 = arith.constant 7 : i32
    %925 = arith.subi %c7_i32_237, %c4_i32_232 : i32
    %926 = arith.index_cast %925 : i32 to index
    %c0_238 = arith.constant 0 : index
    %c0_239 = arith.constant 0 : index
    %927 = vector.load %arg6[%926, %c0_238, %c0_239] : memref<8x2x32xf32, #tpu.memory_space<vmem>>, vector<1x2x32xf32>
    %928 = vector.shape_cast %927 : vector<1x2x32xf32> to vector<2x32xf32>
    %929 = arith.index_cast %925 : i32 to index
    %c0_240 = arith.constant 0 : index
    %c0_241 = arith.constant 0 : index
    %930 = vector.load %arg7[%929, %c0_240, %c0_241] : memref<8x2x32xf32, #tpu.memory_space<vmem>>, vector<1x2x32xf32>
    %931 = vector.shape_cast %930 : vector<1x2x32xf32> to vector<2x32xf32>
    %932 = tpu.concatenate %928, %931 in 1 : vector<2x32xf32>, vector<2x32xf32> -> vector<2x64xf32>
    %933 = tpu.concatenate %924, %882 in 1 : vector<2x64xf32>, vector<2x32xf32> -> vector<2x96xf32>
    %934 = tpu.concatenate %932, %908 in 1 : vector<2x64xf32>, vector<2x32xf32> -> vector<2x96xf32>
    %935 = tpu.concatenate %933, %934 in 0 : vector<2x96xf32>, vector<2x96xf32> -> vector<4x96xf32>
    %cst_242 = arith.constant dense<0.000000e+00> : vector<4x256xf32>
    %936 = tpu.matmul %935, %589, %cst_242 {dimension_numbers = #tpu.dot_dimension_numbers<[1], [0], [0], [1], [0, 0, 1, 1], [], []>} : vector<4x96xf32>, vector<96x256xf32>, vector<4x256xf32> -> vector<4x256xf32>
    %937 = arith.addf %936, %592 : vector<4x256xf32>
    %938 = vector.extract_strided_slice %937 {offsets = [0, 0], sizes = [2, 128], strides = [1, 1]} : vector<4x256xf32> to vector<2x128xf32>
    %939 = vector.extract_strided_slice %938 {offsets = [0, 0], sizes = [2, 32], strides = [1, 1]} : vector<2x128xf32> to vector<2x32xf32>
    %940 = arith.negf %939 : vector<2x32xf32>
    %941 = math.exp %940 : vector<2x32xf32>
    %cst_243 = arith.constant 1.000000e+00 : f32
    %942 = vector.broadcast %cst_243 : f32 to vector<2x32xf32>
    %943 = arith.addf %942, %941 : vector<2x32xf32>
    %944 = arith.divf %942, %943 : vector<2x32xf32>
    %945 = vector.extract_strided_slice %938 {offsets = [0, 32], sizes = [2, 32], strides = [1, 1]} : vector<2x128xf32> to vector<2x32xf32>
    %946 = arith.negf %945 : vector<2x32xf32>
    %947 = math.exp %946 : vector<2x32xf32>
    %cst_244 = arith.constant 1.000000e+00 : f32
    %948 = vector.broadcast %cst_244 : f32 to vector<2x32xf32>
    %949 = arith.addf %948, %947 : vector<2x32xf32>
    %950 = arith.divf %948, %949 : vector<2x32xf32>
    %951 = vector.extract_strided_slice %938 {offsets = [0, 64], sizes = [2, 32], strides = [1, 1]} : vector<2x128xf32> to vector<2x32xf32>
    %952 = math.tanh %951 : vector<2x32xf32>
    %953 = vector.extract_strided_slice %938 {offsets = [0, 96], sizes = [2, 32], strides = [1, 1]} : vector<2x128xf32> to vector<2x32xf32>
    %954 = arith.negf %953 : vector<2x32xf32>
    %955 = math.exp %954 : vector<2x32xf32>
    %cst_245 = arith.constant 1.000000e+00 : f32
    %956 = vector.broadcast %cst_245 : f32 to vector<2x32xf32>
    %957 = arith.addf %956, %955 : vector<2x32xf32>
    %958 = arith.divf %956, %957 : vector<2x32xf32>
    %959 = arith.mulf %950, %880 : vector<2x32xf32>
    %960 = arith.mulf %944, %952 : vector<2x32xf32>
    %961 = arith.addf %959, %960 : vector<2x32xf32>
    %962 = math.tanh %961 : vector<2x32xf32>
    %963 = arith.mulf %958, %962 : vector<2x32xf32>
    %964 = vector.extract_strided_slice %937 {offsets = [2, 128], sizes = [2, 128], strides = [1, 1]} : vector<4x256xf32> to vector<2x128xf32>
    %965 = vector.extract_strided_slice %964 {offsets = [0, 0], sizes = [2, 32], strides = [1, 1]} : vector<2x128xf32> to vector<2x32xf32>
    %966 = arith.negf %965 : vector<2x32xf32>
    %967 = math.exp %966 : vector<2x32xf32>
    %cst_246 = arith.constant 1.000000e+00 : f32
    %968 = vector.broadcast %cst_246 : f32 to vector<2x32xf32>
    %969 = arith.addf %968, %967 : vector<2x32xf32>
    %970 = arith.divf %968, %969 : vector<2x32xf32>
    %971 = vector.extract_strided_slice %964 {offsets = [0, 32], sizes = [2, 32], strides = [1, 1]} : vector<2x128xf32> to vector<2x32xf32>
    %972 = arith.negf %971 : vector<2x32xf32>
    %973 = math.exp %972 : vector<2x32xf32>
    %cst_247 = arith.constant 1.000000e+00 : f32
    %974 = vector.broadcast %cst_247 : f32 to vector<2x32xf32>
    %975 = arith.addf %974, %973 : vector<2x32xf32>
    %976 = arith.divf %974, %975 : vector<2x32xf32>
    %977 = vector.extract_strided_slice %964 {offsets = [0, 64], sizes = [2, 32], strides = [1, 1]} : vector<2x128xf32> to vector<2x32xf32>
    %978 = math.tanh %977 : vector<2x32xf32>
    %979 = vector.extract_strided_slice %964 {offsets = [0, 96], sizes = [2, 32], strides = [1, 1]} : vector<2x128xf32> to vector<2x32xf32>
    %980 = arith.negf %979 : vector<2x32xf32>
    %981 = math.exp %980 : vector<2x32xf32>
    %cst_248 = arith.constant 1.000000e+00 : f32
    %982 = vector.broadcast %cst_248 : f32 to vector<2x32xf32>
    %983 = arith.addf %982, %981 : vector<2x32xf32>
    %984 = arith.divf %982, %983 : vector<2x32xf32>
    %985 = arith.mulf %976, %906 : vector<2x32xf32>
    %986 = arith.mulf %970, %978 : vector<2x32xf32>
    %987 = arith.addf %985, %986 : vector<2x32xf32>
    %988 = math.tanh %987 : vector<2x32xf32>
    %989 = arith.mulf %984, %988 : vector<2x32xf32>
    %990 = arith.index_cast %c4_i32_232 : i32 to index
    %c0_249 = arith.constant 0 : index
    %c0_250 = arith.constant 0 : index
    %991 = vector.load %arg8[%990, %c0_249, %c0_250] : memref<8x2x32xf32, #tpu.memory_space<vmem>>, vector<1x2x32xf32>
    %992 = vector.shape_cast %991 : vector<1x2x32xf32> to vector<2x32xf32>
    %993 = vector.shape_cast %963 : vector<2x32xf32> to vector<1x2x32xf32>
    tpu.vector_store %arg8[%990, %c0_249, %c0_250], %993 {strides = array<i32>} : memref<8x2x32xf32, #tpu.memory_space<vmem>>, vector<1x2x32xf32>,
    %c7_i32_251 = arith.constant 7 : i32
    %994 = arith.subi %c7_i32_251, %c4_i32_232 : i32
    %995 = arith.index_cast %994 : i32 to index
    %c0_252 = arith.constant 0 : index
    %c0_253 = arith.constant 0 : index
    %996 = vector.load %arg9[%995, %c0_252, %c0_253] : memref<8x2x32xf32, #tpu.memory_space<vmem>>, vector<1x2x32xf32>
    %997 = vector.shape_cast %996 : vector<1x2x32xf32> to vector<2x32xf32>
    %998 = vector.shape_cast %989 : vector<2x32xf32> to vector<1x2x32xf32>
    tpu.vector_store %arg9[%995, %c0_252, %c0_253], %998 {strides = array<i32>} : memref<8x2x32xf32, #tpu.memory_space<vmem>>, vector<1x2x32xf32>,
    %c5_i32_254 = arith.constant 5 : i32
    %999 = arith.index_cast %c5_i32_254 : i32 to index
    %c0_255 = arith.constant 0 : index
    %c0_256 = arith.constant 0 : index
    %1000 = vector.load %arg6[%999, %c0_255, %c0_256] : memref<8x2x32xf32, #tpu.memory_space<vmem>>, vector<1x2x32xf32>
    %1001 = vector.shape_cast %1000 : vector<1x2x32xf32> to vector<2x32xf32>
    %1002 = arith.index_cast %c5_i32_254 : i32 to index
    %c0_257 = arith.constant 0 : index
    %c0_258 = arith.constant 0 : index
    %1003 = vector.load %arg7[%1002, %c0_257, %c0_258] : memref<8x2x32xf32, #tpu.memory_space<vmem>>, vector<1x2x32xf32>
    %1004 = vector.shape_cast %1003 : vector<1x2x32xf32> to vector<2x32xf32>
    %1005 = tpu.concatenate %1001, %1004 in 1 : vector<2x32xf32>, vector<2x32xf32> -> vector<2x64xf32>
    %c7_i32_259 = arith.constant 7 : i32
    %1006 = arith.subi %c7_i32_259, %c5_i32_254 : i32
    %1007 = arith.index_cast %1006 : i32 to index
    %c0_260 = arith.constant 0 : index
    %c0_261 = arith.constant 0 : index
    %1008 = vector.load %arg6[%1007, %c0_260, %c0_261] : memref<8x2x32xf32, #tpu.memory_space<vmem>>, vector<1x2x32xf32>
    %1009 = vector.shape_cast %1008 : vector<1x2x32xf32> to vector<2x32xf32>
    %1010 = arith.index_cast %1006 : i32 to index
    %c0_262 = arith.constant 0 : index
    %c0_263 = arith.constant 0 : index
    %1011 = vector.load %arg7[%1010, %c0_262, %c0_263] : memref<8x2x32xf32, #tpu.memory_space<vmem>>, vector<1x2x32xf32>
    %1012 = vector.shape_cast %1011 : vector<1x2x32xf32> to vector<2x32xf32>
    %1013 = tpu.concatenate %1009, %1012 in 1 : vector<2x32xf32>, vector<2x32xf32> -> vector<2x64xf32>
    %1014 = tpu.concatenate %1005, %963 in 1 : vector<2x64xf32>, vector<2x32xf32> -> vector<2x96xf32>
    %1015 = tpu.concatenate %1013, %989 in 1 : vector<2x64xf32>, vector<2x32xf32> -> vector<2x96xf32>
    %1016 = tpu.concatenate %1014, %1015 in 0 : vector<2x96xf32>, vector<2x96xf32> -> vector<4x96xf32>
    %cst_264 = arith.constant dense<0.000000e+00> : vector<4x256xf32>
    %1017 = tpu.matmul %1016, %589, %cst_264 {dimension_numbers = #tpu.dot_dimension_numbers<[1], [0], [0], [1], [0, 0, 1, 1], [], []>} : vector<4x96xf32>, vector<96x256xf32>, vector<4x256xf32> -> vector<4x256xf32>
    %1018 = arith.addf %1017, %592 : vector<4x256xf32>
    %1019 = vector.extract_strided_slice %1018 {offsets = [0, 0], sizes = [2, 128], strides = [1, 1]} : vector<4x256xf32> to vector<2x128xf32>
    %1020 = vector.extract_strided_slice %1019 {offsets = [0, 0], sizes = [2, 32], strides = [1, 1]} : vector<2x128xf32> to vector<2x32xf32>
    %1021 = arith.negf %1020 : vector<2x32xf32>
    %1022 = math.exp %1021 : vector<2x32xf32>
    %cst_265 = arith.constant 1.000000e+00 : f32
    %1023 = vector.broadcast %cst_265 : f32 to vector<2x32xf32>
    %1024 = arith.addf %1023, %1022 : vector<2x32xf32>
    %1025 = arith.divf %1023, %1024 : vector<2x32xf32>
    %1026 = vector.extract_strided_slice %1019 {offsets = [0, 32], sizes = [2, 32], strides = [1, 1]} : vector<2x128xf32> to vector<2x32xf32>
    %1027 = arith.negf %1026 : vector<2x32xf32>
    %1028 = math.exp %1027 : vector<2x32xf32>
    %cst_266 = arith.constant 1.000000e+00 : f32
    %1029 = vector.broadcast %cst_266 : f32 to vector<2x32xf32>
    %1030 = arith.addf %1029, %1028 : vector<2x32xf32>
    %1031 = arith.divf %1029, %1030 : vector<2x32xf32>
    %1032 = vector.extract_strided_slice %1019 {offsets = [0, 64], sizes = [2, 32], strides = [1, 1]} : vector<2x128xf32> to vector<2x32xf32>
    %1033 = math.tanh %1032 : vector<2x32xf32>
    %1034 = vector.extract_strided_slice %1019 {offsets = [0, 96], sizes = [2, 32], strides = [1, 1]} : vector<2x128xf32> to vector<2x32xf32>
    %1035 = arith.negf %1034 : vector<2x32xf32>
    %1036 = math.exp %1035 : vector<2x32xf32>
    %cst_267 = arith.constant 1.000000e+00 : f32
    %1037 = vector.broadcast %cst_267 : f32 to vector<2x32xf32>
    %1038 = arith.addf %1037, %1036 : vector<2x32xf32>
    %1039 = arith.divf %1037, %1038 : vector<2x32xf32>
    %1040 = arith.mulf %1031, %961 : vector<2x32xf32>
    %1041 = arith.mulf %1025, %1033 : vector<2x32xf32>
    %1042 = arith.addf %1040, %1041 : vector<2x32xf32>
    %1043 = math.tanh %1042 : vector<2x32xf32>
    %1044 = arith.mulf %1039, %1043 : vector<2x32xf32>
    %1045 = vector.extract_strided_slice %1018 {offsets = [2, 128], sizes = [2, 128], strides = [1, 1]} : vector<4x256xf32> to vector<2x128xf32>
    %1046 = vector.extract_strided_slice %1045 {offsets = [0, 0], sizes = [2, 32], strides = [1, 1]} : vector<2x128xf32> to vector<2x32xf32>
    %1047 = arith.negf %1046 : vector<2x32xf32>
    %1048 = math.exp %1047 : vector<2x32xf32>
    %cst_268 = arith.constant 1.000000e+00 : f32
    %1049 = vector.broadcast %cst_268 : f32 to vector<2x32xf32>
    %1050 = arith.addf %1049, %1048 : vector<2x32xf32>
    %1051 = arith.divf %1049, %1050 : vector<2x32xf32>
    %1052 = vector.extract_strided_slice %1045 {offsets = [0, 32], sizes = [2, 32], strides = [1, 1]} : vector<2x128xf32> to vector<2x32xf32>
    %1053 = arith.negf %1052 : vector<2x32xf32>
    %1054 = math.exp %1053 : vector<2x32xf32>
    %cst_269 = arith.constant 1.000000e+00 : f32
    %1055 = vector.broadcast %cst_269 : f32 to vector<2x32xf32>
    %1056 = arith.addf %1055, %1054 : vector<2x32xf32>
    %1057 = arith.divf %1055, %1056 : vector<2x32xf32>
    %1058 = vector.extract_strided_slice %1045 {offsets = [0, 64], sizes = [2, 32], strides = [1, 1]} : vector<2x128xf32> to vector<2x32xf32>
    %1059 = math.tanh %1058 : vector<2x32xf32>
    %1060 = vector.extract_strided_slice %1045 {offsets = [0, 96], sizes = [2, 32], strides = [1, 1]} : vector<2x128xf32> to vector<2x32xf32>
    %1061 = arith.negf %1060 : vector<2x32xf32>
    %1062 = math.exp %1061 : vector<2x32xf32>
    %cst_270 = arith.constant 1.000000e+00 : f32
    %1063 = vector.broadcast %cst_270 : f32 to vector<2x32xf32>
    %1064 = arith.addf %1063, %1062 : vector<2x32xf32>
    %1065 = arith.divf %1063, %1064 : vector<2x32xf32>
    %1066 = arith.mulf %1057, %987 : vector<2x32xf32>
    %1067 = arith.mulf %1051, %1059 : vector<2x32xf32>
    %1068 = arith.addf %1066, %1067 : vector<2x32xf32>
    %1069 = math.tanh %1068 : vector<2x32xf32>
    %1070 = arith.mulf %1065, %1069 : vector<2x32xf32>
    %1071 = arith.index_cast %c5_i32_254 : i32 to index
    %c0_271 = arith.constant 0 : index
    %c0_272 = arith.constant 0 : index
    %1072 = vector.load %arg8[%1071, %c0_271, %c0_272] : memref<8x2x32xf32, #tpu.memory_space<vmem>>, vector<1x2x32xf32>
    %1073 = vector.shape_cast %1072 : vector<1x2x32xf32> to vector<2x32xf32>
    %1074 = vector.shape_cast %1044 : vector<2x32xf32> to vector<1x2x32xf32>
    tpu.vector_store %arg8[%1071, %c0_271, %c0_272], %1074 {strides = array<i32>} : memref<8x2x32xf32, #tpu.memory_space<vmem>>, vector<1x2x32xf32>,
    %c7_i32_273 = arith.constant 7 : i32
    %1075 = arith.subi %c7_i32_273, %c5_i32_254 : i32
    %1076 = arith.index_cast %1075 : i32 to index
    %c0_274 = arith.constant 0 : index
    %c0_275 = arith.constant 0 : index
    %1077 = vector.load %arg9[%1076, %c0_274, %c0_275] : memref<8x2x32xf32, #tpu.memory_space<vmem>>, vector<1x2x32xf32>
    %1078 = vector.shape_cast %1077 : vector<1x2x32xf32> to vector<2x32xf32>
    %1079 = vector.shape_cast %1070 : vector<2x32xf32> to vector<1x2x32xf32>
    tpu.vector_store %arg9[%1076, %c0_274, %c0_275], %1079 {strides = array<i32>} : memref<8x2x32xf32, #tpu.memory_space<vmem>>, vector<1x2x32xf32>,
    %c6_i32_276 = arith.constant 6 : i32
    %1080 = arith.index_cast %c6_i32_276 : i32 to index
    %c0_277 = arith.constant 0 : index
    %c0_278 = arith.constant 0 : index
    %1081 = vector.load %arg6[%1080, %c0_277, %c0_278] : memref<8x2x32xf32, #tpu.memory_space<vmem>>, vector<1x2x32xf32>
    %1082 = vector.shape_cast %1081 : vector<1x2x32xf32> to vector<2x32xf32>
    %1083 = arith.index_cast %c6_i32_276 : i32 to index
    %c0_279 = arith.constant 0 : index
    %c0_280 = arith.constant 0 : index
    %1084 = vector.load %arg7[%1083, %c0_279, %c0_280] : memref<8x2x32xf32, #tpu.memory_space<vmem>>, vector<1x2x32xf32>
    %1085 = vector.shape_cast %1084 : vector<1x2x32xf32> to vector<2x32xf32>
    %1086 = tpu.concatenate %1082, %1085 in 1 : vector<2x32xf32>, vector<2x32xf32> -> vector<2x64xf32>
    %c7_i32_281 = arith.constant 7 : i32
    %1087 = arith.subi %c7_i32_281, %c6_i32_276 : i32
    %1088 = arith.index_cast %1087 : i32 to index
    %c0_282 = arith.constant 0 : index
    %c0_283 = arith.constant 0 : index
    %1089 = vector.load %arg6[%1088, %c0_282, %c0_283] : memref<8x2x32xf32, #tpu.memory_space<vmem>>, vector<1x2x32xf32>
    %1090 = vector.shape_cast %1089 : vector<1x2x32xf32> to vector<2x32xf32>
    %1091 = arith.index_cast %1087 : i32 to index
    %c0_284 = arith.constant 0 : index
    %c0_285 = arith.constant 0 : index
    %1092 = vector.load %arg7[%1091, %c0_284, %c0_285] : memref<8x2x32xf32, #tpu.memory_space<vmem>>, vector<1x2x32xf32>
    %1093 = vector.shape_cast %1092 : vector<1x2x32xf32> to vector<2x32xf32>
    %1094 = tpu.concatenate %1090, %1093 in 1 : vector<2x32xf32>, vector<2x32xf32> -> vector<2x64xf32>
    %1095 = tpu.concatenate %1086, %1044 in 1 : vector<2x64xf32>, vector<2x32xf32> -> vector<2x96xf32>
    %1096 = tpu.concatenate %1094, %1070 in 1 : vector<2x64xf32>, vector<2x32xf32> -> vector<2x96xf32>
    %1097 = tpu.concatenate %1095, %1096 in 0 : vector<2x96xf32>, vector<2x96xf32> -> vector<4x96xf32>
    %cst_286 = arith.constant dense<0.000000e+00> : vector<4x256xf32>
    %1098 = tpu.matmul %1097, %589, %cst_286 {dimension_numbers = #tpu.dot_dimension_numbers<[1], [0], [0], [1], [0, 0, 1, 1], [], []>} : vector<4x96xf32>, vector<96x256xf32>, vector<4x256xf32> -> vector<4x256xf32>
    %1099 = arith.addf %1098, %592 : vector<4x256xf32>
    %1100 = vector.extract_strided_slice %1099 {offsets = [0, 0], sizes = [2, 128], strides = [1, 1]} : vector<4x256xf32> to vector<2x128xf32>
    %1101 = vector.extract_strided_slice %1100 {offsets = [0, 0], sizes = [2, 32], strides = [1, 1]} : vector<2x128xf32> to vector<2x32xf32>
    %1102 = arith.negf %1101 : vector<2x32xf32>
    %1103 = math.exp %1102 : vector<2x32xf32>
    %cst_287 = arith.constant 1.000000e+00 : f32
    %1104 = vector.broadcast %cst_287 : f32 to vector<2x32xf32>
    %1105 = arith.addf %1104, %1103 : vector<2x32xf32>
    %1106 = arith.divf %1104, %1105 : vector<2x32xf32>
    %1107 = vector.extract_strided_slice %1100 {offsets = [0, 32], sizes = [2, 32], strides = [1, 1]} : vector<2x128xf32> to vector<2x32xf32>
    %1108 = arith.negf %1107 : vector<2x32xf32>
    %1109 = math.exp %1108 : vector<2x32xf32>
    %cst_288 = arith.constant 1.000000e+00 : f32
    %1110 = vector.broadcast %cst_288 : f32 to vector<2x32xf32>
    %1111 = arith.addf %1110, %1109 : vector<2x32xf32>
    %1112 = arith.divf %1110, %1111 : vector<2x32xf32>
    %1113 = vector.extract_strided_slice %1100 {offsets = [0, 64], sizes = [2, 32], strides = [1, 1]} : vector<2x128xf32> to vector<2x32xf32>
    %1114 = math.tanh %1113 : vector<2x32xf32>
    %1115 = vector.extract_strided_slice %1100 {offsets = [0, 96], sizes = [2, 32], strides = [1, 1]} : vector<2x128xf32> to vector<2x32xf32>
    %1116 = arith.negf %1115 : vector<2x32xf32>
    %1117 = math.exp %1116 : vector<2x32xf32>
    %cst_289 = arith.constant 1.000000e+00 : f32
    %1118 = vector.broadcast %cst_289 : f32 to vector<2x32xf32>
    %1119 = arith.addf %1118, %1117 : vector<2x32xf32>
    %1120 = arith.divf %1118, %1119 : vector<2x32xf32>
    %1121 = arith.mulf %1112, %1042 : vector<2x32xf32>
    %1122 = arith.mulf %1106, %1114 : vector<2x32xf32>
    %1123 = arith.addf %1121, %1122 : vector<2x32xf32>
    %1124 = math.tanh %1123 : vector<2x32xf32>
    %1125 = arith.mulf %1120, %1124 : vector<2x32xf32>
    %1126 = vector.extract_strided_slice %1099 {offsets = [2, 128], sizes = [2, 128], strides = [1, 1]} : vector<4x256xf32> to vector<2x128xf32>
    %1127 = vector.extract_strided_slice %1126 {offsets = [0, 0], sizes = [2, 32], strides = [1, 1]} : vector<2x128xf32> to vector<2x32xf32>
    %1128 = arith.negf %1127 : vector<2x32xf32>
    %1129 = math.exp %1128 : vector<2x32xf32>
    %cst_290 = arith.constant 1.000000e+00 : f32
    %1130 = vector.broadcast %cst_290 : f32 to vector<2x32xf32>
    %1131 = arith.addf %1130, %1129 : vector<2x32xf32>
    %1132 = arith.divf %1130, %1131 : vector<2x32xf32>
    %1133 = vector.extract_strided_slice %1126 {offsets = [0, 32], sizes = [2, 32], strides = [1, 1]} : vector<2x128xf32> to vector<2x32xf32>
    %1134 = arith.negf %1133 : vector<2x32xf32>
    %1135 = math.exp %1134 : vector<2x32xf32>
    %cst_291 = arith.constant 1.000000e+00 : f32
    %1136 = vector.broadcast %cst_291 : f32 to vector<2x32xf32>
    %1137 = arith.addf %1136, %1135 : vector<2x32xf32>
    %1138 = arith.divf %1136, %1137 : vector<2x32xf32>
    %1139 = vector.extract_strided_slice %1126 {offsets = [0, 64], sizes = [2, 32], strides = [1, 1]} : vector<2x128xf32> to vector<2x32xf32>
    %1140 = math.tanh %1139 : vector<2x32xf32>
    %1141 = vector.extract_strided_slice %1126 {offsets = [0, 96], sizes = [2, 32], strides = [1, 1]} : vector<2x128xf32> to vector<2x32xf32>
    %1142 = arith.negf %1141 : vector<2x32xf32>
    %1143 = math.exp %1142 : vector<2x32xf32>
    %cst_292 = arith.constant 1.000000e+00 : f32
    %1144 = vector.broadcast %cst_292 : f32 to vector<2x32xf32>
    %1145 = arith.addf %1144, %1143 : vector<2x32xf32>
    %1146 = arith.divf %1144, %1145 : vector<2x32xf32>
    %1147 = arith.mulf %1138, %1068 : vector<2x32xf32>
    %1148 = arith.mulf %1132, %1140 : vector<2x32xf32>
    %1149 = arith.addf %1147, %1148 : vector<2x32xf32>
    %1150 = math.tanh %1149 : vector<2x32xf32>
    %1151 = arith.mulf %1146, %1150 : vector<2x32xf32>
    %1152 = arith.index_cast %c6_i32_276 : i32 to index
    %c0_293 = arith.constant 0 : index
    %c0_294 = arith.constant 0 : index
    %1153 = vector.load %arg8[%1152, %c0_293, %c0_294] : memref<8x2x32xf32, #tpu.memory_space<vmem>>, vector<1x2x32xf32>
    %1154 = vector.shape_cast %1153 : vector<1x2x32xf32> to vector<2x32xf32>
    %1155 = vector.shape_cast %1125 : vector<2x32xf32> to vector<1x2x32xf32>
    tpu.vector_store %arg8[%1152, %c0_293, %c0_294], %1155 {strides = array<i32>} : memref<8x2x32xf32, #tpu.memory_space<vmem>>, vector<1x2x32xf32>,
    %c7_i32_295 = arith.constant 7 : i32
    %1156 = arith.subi %c7_i32_295, %c6_i32_276 : i32
    %1157 = arith.index_cast %1156 : i32 to index
    %c0_296 = arith.constant 0 : index
    %c0_297 = arith.constant 0 : index
    %1158 = vector.load %arg9[%1157, %c0_296, %c0_297] : memref<8x2x32xf32, #tpu.memory_space<vmem>>, vector<1x2x32xf32>
    %1159 = vector.shape_cast %1158 : vector<1x2x32xf32> to vector<2x32xf32>
    %1160 = vector.shape_cast %1151 : vector<2x32xf32> to vector<1x2x32xf32>
    tpu.vector_store %arg9[%1157, %c0_296, %c0_297], %1160 {strides = array<i32>} : memref<8x2x32xf32, #tpu.memory_space<vmem>>, vector<1x2x32xf32>,
    %c7_i32_298 = arith.constant 7 : i32
    %1161 = arith.index_cast %c7_i32_298 : i32 to index
    %c0_299 = arith.constant 0 : index
    %c0_300 = arith.constant 0 : index
    %1162 = vector.load %arg6[%1161, %c0_299, %c0_300] : memref<8x2x32xf32, #tpu.memory_space<vmem>>, vector<1x2x32xf32>
    %1163 = vector.shape_cast %1162 : vector<1x2x32xf32> to vector<2x32xf32>
    %1164 = arith.index_cast %c7_i32_298 : i32 to index
    %c0_301 = arith.constant 0 : index
    %c0_302 = arith.constant 0 : index
    %1165 = vector.load %arg7[%1164, %c0_301, %c0_302] : memref<8x2x32xf32, #tpu.memory_space<vmem>>, vector<1x2x32xf32>
    %1166 = vector.shape_cast %1165 : vector<1x2x32xf32> to vector<2x32xf32>
    %1167 = tpu.concatenate %1163, %1166 in 1 : vector<2x32xf32>, vector<2x32xf32> -> vector<2x64xf32>
    %c7_i32_303 = arith.constant 7 : i32
    %1168 = arith.subi %c7_i32_303, %c7_i32_298 : i32
    %1169 = arith.index_cast %1168 : i32 to index
    %c0_304 = arith.constant 0 : index
    %c0_305 = arith.constant 0 : index
    %1170 = vector.load %arg6[%1169, %c0_304, %c0_305] : memref<8x2x32xf32, #tpu.memory_space<vmem>>, vector<1x2x32xf32>
    %1171 = vector.shape_cast %1170 : vector<1x2x32xf32> to vector<2x32xf32>
    %1172 = arith.index_cast %1168 : i32 to index
    %c0_306 = arith.constant 0 : index
    %c0_307 = arith.constant 0 : index
    %1173 = vector.load %arg7[%1172, %c0_306, %c0_307] : memref<8x2x32xf32, #tpu.memory_space<vmem>>, vector<1x2x32xf32>
    %1174 = vector.shape_cast %1173 : vector<1x2x32xf32> to vector<2x32xf32>
    %1175 = tpu.concatenate %1171, %1174 in 1 : vector<2x32xf32>, vector<2x32xf32> -> vector<2x64xf32>
    %1176 = tpu.concatenate %1167, %1125 in 1 : vector<2x64xf32>, vector<2x32xf32> -> vector<2x96xf32>
    %1177 = tpu.concatenate %1175, %1151 in 1 : vector<2x64xf32>, vector<2x32xf32> -> vector<2x96xf32>
    %1178 = tpu.concatenate %1176, %1177 in 0 : vector<2x96xf32>, vector<2x96xf32> -> vector<4x96xf32>
    %cst_308 = arith.constant dense<0.000000e+00> : vector<4x256xf32>
    %1179 = tpu.matmul %1178, %589, %cst_308 {dimension_numbers = #tpu.dot_dimension_numbers<[1], [0], [0], [1], [0, 0, 1, 1], [], []>} : vector<4x96xf32>, vector<96x256xf32>, vector<4x256xf32> -> vector<4x256xf32>
    %1180 = arith.addf %1179, %592 : vector<4x256xf32>
    %1181 = vector.extract_strided_slice %1180 {offsets = [0, 0], sizes = [2, 128], strides = [1, 1]} : vector<4x256xf32> to vector<2x128xf32>
    %1182 = vector.extract_strided_slice %1181 {offsets = [0, 0], sizes = [2, 32], strides = [1, 1]} : vector<2x128xf32> to vector<2x32xf32>
    %1183 = arith.negf %1182 : vector<2x32xf32>
    %1184 = math.exp %1183 : vector<2x32xf32>
    %cst_309 = arith.constant 1.000000e+00 : f32
    %1185 = vector.broadcast %cst_309 : f32 to vector<2x32xf32>
    %1186 = arith.addf %1185, %1184 : vector<2x32xf32>
    %1187 = arith.divf %1185, %1186 : vector<2x32xf32>
    %1188 = vector.extract_strided_slice %1181 {offsets = [0, 32], sizes = [2, 32], strides = [1, 1]} : vector<2x128xf32> to vector<2x32xf32>
    %1189 = arith.negf %1188 : vector<2x32xf32>
    %1190 = math.exp %1189 : vector<2x32xf32>
    %cst_310 = arith.constant 1.000000e+00 : f32
    %1191 = vector.broadcast %cst_310 : f32 to vector<2x32xf32>
    %1192 = arith.addf %1191, %1190 : vector<2x32xf32>
    %1193 = arith.divf %1191, %1192 : vector<2x32xf32>
    %1194 = vector.extract_strided_slice %1181 {offsets = [0, 64], sizes = [2, 32], strides = [1, 1]} : vector<2x128xf32> to vector<2x32xf32>
    %1195 = math.tanh %1194 : vector<2x32xf32>
    %1196 = vector.extract_strided_slice %1181 {offsets = [0, 96], sizes = [2, 32], strides = [1, 1]} : vector<2x128xf32> to vector<2x32xf32>
    %1197 = arith.negf %1196 : vector<2x32xf32>
    %1198 = math.exp %1197 : vector<2x32xf32>
    %cst_311 = arith.constant 1.000000e+00 : f32
    %1199 = vector.broadcast %cst_311 : f32 to vector<2x32xf32>
    %1200 = arith.addf %1199, %1198 : vector<2x32xf32>
    %1201 = arith.divf %1199, %1200 : vector<2x32xf32>
    %1202 = arith.mulf %1193, %1123 : vector<2x32xf32>
    %1203 = arith.mulf %1187, %1195 : vector<2x32xf32>
    %1204 = arith.addf %1202, %1203 : vector<2x32xf32>
    %1205 = math.tanh %1204 : vector<2x32xf32>
    %1206 = arith.mulf %1201, %1205 : vector<2x32xf32>
    %1207 = vector.extract_strided_slice %1180 {offsets = [2, 128], sizes = [2, 128], strides = [1, 1]} : vector<4x256xf32> to vector<2x128xf32>
    %1208 = vector.extract_strided_slice %1207 {offsets = [0, 0], sizes = [2, 32], strides = [1, 1]} : vector<2x128xf32> to vector<2x32xf32>
    %1209 = arith.negf %1208 : vector<2x32xf32>
    %1210 = math.exp %1209 : vector<2x32xf32>
    %cst_312 = arith.constant 1.000000e+00 : f32
    %1211 = vector.broadcast %cst_312 : f32 to vector<2x32xf32>
    %1212 = arith.addf %1211, %1210 : vector<2x32xf32>
    %1213 = arith.divf %1211, %1212 : vector<2x32xf32>
    %1214 = vector.extract_strided_slice %1207 {offsets = [0, 32], sizes = [2, 32], strides = [1, 1]} : vector<2x128xf32> to vector<2x32xf32>
    %1215 = arith.negf %1214 : vector<2x32xf32>
    %1216 = math.exp %1215 : vector<2x32xf32>
    %cst_313 = arith.constant 1.000000e+00 : f32
    %1217 = vector.broadcast %cst_313 : f32 to vector<2x32xf32>
    %1218 = arith.addf %1217, %1216 : vector<2x32xf32>
    %1219 = arith.divf %1217, %1218 : vector<2x32xf32>
    %1220 = vector.extract_strided_slice %1207 {offsets = [0, 64], sizes = [2, 32], strides = [1, 1]} : vector<2x128xf32> to vector<2x32xf32>
    %1221 = math.tanh %1220 : vector<2x32xf32>
    %1222 = vector.extract_strided_slice %1207 {offsets = [0, 96], sizes = [2, 32], strides = [1, 1]} : vector<2x128xf32> to vector<2x32xf32>
    %1223 = arith.negf %1222 : vector<2x32xf32>
    %1224 = math.exp %1223 : vector<2x32xf32>
    %cst_314 = arith.constant 1.000000e+00 : f32
    %1225 = vector.broadcast %cst_314 : f32 to vector<2x32xf32>
    %1226 = arith.addf %1225, %1224 : vector<2x32xf32>
    %1227 = arith.divf %1225, %1226 : vector<2x32xf32>
    %1228 = arith.mulf %1219, %1149 : vector<2x32xf32>
    %1229 = arith.mulf %1213, %1221 : vector<2x32xf32>
    %1230 = arith.addf %1228, %1229 : vector<2x32xf32>
    %1231 = math.tanh %1230 : vector<2x32xf32>
    %1232 = arith.mulf %1227, %1231 : vector<2x32xf32>
    %1233 = arith.index_cast %c7_i32_298 : i32 to index
    %c0_315 = arith.constant 0 : index
    %c0_316 = arith.constant 0 : index
    %1234 = vector.load %arg8[%1233, %c0_315, %c0_316] : memref<8x2x32xf32, #tpu.memory_space<vmem>>, vector<1x2x32xf32>
    %1235 = vector.shape_cast %1234 : vector<1x2x32xf32> to vector<2x32xf32>
    %1236 = vector.shape_cast %1206 : vector<2x32xf32> to vector<1x2x32xf32>
    tpu.vector_store %arg8[%1233, %c0_315, %c0_316], %1236 {strides = array<i32>} : memref<8x2x32xf32, #tpu.memory_space<vmem>>, vector<1x2x32xf32>,
    %c7_i32_317 = arith.constant 7 : i32
    %1237 = arith.subi %c7_i32_317, %c7_i32_298 : i32
    %1238 = arith.index_cast %1237 : i32 to index
    %c0_318 = arith.constant 0 : index
    %c0_319 = arith.constant 0 : index
    %1239 = vector.load %arg9[%1238, %c0_318, %c0_319] : memref<8x2x32xf32, #tpu.memory_space<vmem>>, vector<1x2x32xf32>
    %1240 = vector.shape_cast %1239 : vector<1x2x32xf32> to vector<2x32xf32>
    %1241 = vector.shape_cast %1232 : vector<2x32xf32> to vector<1x2x32xf32>
    tpu.vector_store %arg9[%1238, %c0_318, %c0_319], %1241 {strides = array<i32>} : memref<8x2x32xf32, #tpu.memory_space<vmem>>, vector<1x2x32xf32>,
    %c8_i32_320 = arith.constant 8 : i32
    %c0_321 = arith.constant 0 : index
    %c0_322 = arith.constant 0 : index
    %c0_323 = arith.constant 0 : index
    %1242 = vector.load %arg8[%c0_321, %c0_322, %c0_323] : memref<8x2x32xf32, #tpu.memory_space<vmem>>, vector<8x2x32xf32>
    %c0_324 = arith.constant 0 : index
    %c0_325 = arith.constant 0 : index
    %c0_326 = arith.constant 0 : index
    %1243 = vector.load %arg9[%c0_324, %c0_325, %c0_326] : memref<8x2x32xf32, #tpu.memory_space<vmem>>, vector<8x2x32xf32>
    %1244 = tpu.concatenate %1242, %1243 in 2 : vector<8x2x32xf32>, vector<8x2x32xf32> -> vector<8x2x64xf32>
    %1245 = vector.extract_strided_slice %1244 {offsets = [0, 0, 0], sizes = [8, 1, 64], strides = [1, 1, 1]} : vector<8x2x64xf32> to vector<8x1x64xf32>
    %1246 = vector.shape_cast %1245 : vector<8x1x64xf32> to vector<8x64xf32>
    %c0_327 = arith.constant 0 : index
    %c0_328 = arith.constant 0 : index
    %c0_329 = arith.constant 0 : index
    %1247 = vector.load %arg5[%c0_327, %c0_328, %c0_329] : memref<2x8x64xf32, #tpu.memory_space<vmem>>, vector<1x8x64xf32>
    %1248 = vector.shape_cast %1247 : vector<1x8x64xf32> to vector<8x64xf32>
    %1249 = vector.shape_cast %1246 : vector<8x64xf32> to vector<1x8x64xf32>
    tpu.vector_store %arg5[%c0_327, %c0_328, %c0_329], %1249 {strides = array<i32>} : memref<2x8x64xf32, #tpu.memory_space<vmem>>, vector<1x8x64xf32>,
    %1250 = vector.extract_strided_slice %1244 {offsets = [0, 1, 0], sizes = [8, 1, 64], strides = [1, 1, 1]} : vector<8x2x64xf32> to vector<8x1x64xf32>
    %1251 = vector.shape_cast %1250 : vector<8x1x64xf32> to vector<8x64xf32>
    %c1 = arith.constant 1 : index
    %c0_330 = arith.constant 0 : index
    %c0_331 = arith.constant 0 : index
    %1252 = vector.load %arg5[%c1, %c0_330, %c0_331] : memref<2x8x64xf32, #tpu.memory_space<vmem>>, vector<1x8x64xf32>
    %1253 = vector.shape_cast %1252 : vector<1x8x64xf32> to vector<8x64xf32>
    %1254 = vector.shape_cast %1251 : vector<8x64xf32> to vector<1x8x64xf32>
    tpu.vector_store %arg5[%c1, %c0_330, %c0_331], %1254 {strides = array<i32>} : memref<2x8x64xf32, #tpu.memory_space<vmem>>, vector<1x8x64xf32>,
    return
  }
}

</mosaic_0001>

<llo_original>
// kernel: sequence_encoder_forward.1
$region0: #{sequence_encoder_forward.1}
  #allocation0 [shape = 'u32[]', space=smem, size = 0x4, offset = 0x4, fixed_abs, tag = 'smem constant byte address 0x4 - core index']
  #allocation1 [shape = 'u32[72,128]{1,0:T(1,128)}', space=vmem, size = 0x9000, scoped, tag = 'internal scratch']
  #allocation2 [shape = 'f32[8,2,32]{2,1,0:T(2,128)}', space=vmem, size = 0x2000, scoped, tag = 'scratch operand']
  #allocation3 [shape = 'f32[8,2,32]{2,1,0:T(2,128)}', space=vmem, size = 0x2000, scoped, tag = 'scratch operand']
  #allocation4 [shape = 'f32[8,2,32]{2,1,0:T(2,128)}', space=vmem, size = 0x2000, scoped, tag = 'scratch operand']
  #allocation5 [shape = 'f32[8,2,32]{2,1,0:T(2,128)}', space=vmem, size = 0x2000, scoped, tag = 'scratch operand']
  %s0 = inlined_call_operand.vmem [shape: f32[8,2,64], index: 0, kind: input, shape index: {}]
  %s1 = inlined_call_operand.vmem [shape: f32[96,256], index: 1, kind: input, shape index: {}]
  %s2 = inlined_call_operand.vmem [shape: f32[1,256], index: 2, kind: input, shape index: {}]
  %s3 = inlined_call_operand.vmem [shape: f32[96,256], index: 3, kind: input, shape index: {}]
  %s4 = inlined_call_operand.vmem [shape: f32[1,256], index: 4, kind: input, shape index: {}]
  %s5 = inlined_call_operand.hbm [shape: f32[2,8,64], index: 5, kind: output, shape index: {}]
  %s6 = sld [smem:[#allocation0]]
  $region30: #{sequence_encoder_forward.1} parent=0
    _
  %s8 = ssub.s32 1, %s6
  %s9 = scalar_select 0, %s8, %s6
  $region1: #{sequence_encoder_forward.1} parent=0
    #allocation6 [shape = 'u8[8192]{0}', space=vmem, size = 0x2000, scoped, tag = 'output window, operand 0, single buffered']
    #allocation7 [shape = 's32[1]{0}', space=sflag, size = 0x4, scoped, tag = 'scoped memory for sequence_encoder_forward.1']
    %10 = vsyncpa [#allocation7], 0
    // Predicated region
    $region2: #{sequence_encoder_forward.1} parent=1 // pred_check
      _
    $region3: #{sequence_encoder_forward.1} parent=1 // pred_check_branch
      %12 = sbr.rel (0) target = $region5
    $region4: #{sequence_encoder_forward.1} parent=1 // pred_region
      _
    $region5: #{sequence_encoder_forward.1} parent=1 // pred_fallthru
      _
    // Predicated region
    $region6: #{sequence_encoder_forward.1} parent=1 // pred_check
      _
    $region7: #{sequence_encoder_forward.1} parent=1 // pred_check_branch
      %14 = sbr.rel (0) target = $region9
    $region8: #{sequence_encoder_forward.1} parent=1 // pred_region
      _
    $region9: #{sequence_encoder_forward.1} parent=1 // pred_fallthru
      _
    // Predicated region
    $region10: #{sequence_encoder_forward.1} parent=1 // pred_check
      _
    $region11: #{sequence_encoder_forward.1} parent=1 // pred_check_branch
      %16 = sbr.rel (0) target = $region13
    $region12: #{sequence_encoder_forward.1} parent=1 // pred_region
      _
    $region13: #{sequence_encoder_forward.1} parent=1 // pred_fallthru
      _
    // Predicated region
    $region14: #{sequence_encoder_forward.1} parent=1 // pred_check
      _
    $region15: #{sequence_encoder_forward.1} parent=1 // pred_check_branch
      %18 = sbr.rel (0) target = $region17
    $region16: #{sequence_encoder_forward.1} parent=1 // pred_region
      _
    $region17: #{sequence_encoder_forward.1} parent=1 // pred_fallthru
      _
    // Predicated region
    $region18: #{sequence_encoder_forward.1} parent=1 // pred_check
      _
    $region19: #{sequence_encoder_forward.1} parent=1 // pred_check_branch
      %20 = sbr.rel (0) target = $region21
    $region20: #{sequence_encoder_forward.1} parent=1 // pred_region
      _
    $region21: #{sequence_encoder_forward.1} parent=1 // pred_fallthru
      _
    %v21 = vld [vmem:[%s1] sm:$0xff]
    %v22 = vld [vmem:[%s1 + $0x8] sm:$0xff]
    %v23 = vld [vmem:[%s1 + $0x10] sm:$0xff]
    %v24 = vld [vmem:[%s1 + $0x18] sm:$0xff]
    %v25 = vld [vmem:[%s1 + $0x20] sm:$0xff]
    %v26 = vld [vmem:[%s1 + $0x28] sm:$0xff]
    %v27 = vld [vmem:[%s1 + $0x30] sm:$0xff]
    %v28 = vld [vmem:[%s1 + $0x38] sm:$0xff]
    %v29 = vld [vmem:[%s1 + $0x40] sm:$0xff]
    %v30 = vld [vmem:[%s1 + $0x48] sm:$0xff]
    %v31 = vld [vmem:[%s1 + $0x50] sm:$0xff]
    %v32 = vld [vmem:[%s1 + $0x58] sm:$0xff]
    %v33 = vld [vmem:[%s1 + $0x60] sm:$0xff]
    %v34 = vld [vmem:[%s1 + $0x68] sm:$0xff]
    %v35 = vld [vmem:[%s1 + $0x70] sm:$0xff]
    %v36 = vld [vmem:[%s1 + $0x78] sm:$0xff]
    %v37 = vld [vmem:[%s1 + $0x80] sm:$0xff]
    %v38 = vld [vmem:[%s1 + $0x88] sm:$0xff]
    %v39 = vld [vmem:[%s1 + $0x90] sm:$0xff]
    %v40 = vld [vmem:[%s1 + $0x98] sm:$0xff]
    %v41 = vld [vmem:[%s1 + $0xa0] sm:$0xff]
    %v42 = vld [vmem:[%s1 + $0xa8] sm:$0xff]
    %v43 = vld [vmem:[%s1 + $0xb0] sm:$0xff]
    %v44 = vld [vmem:[%s1 + $0xb8] sm:$0xff]
    %v45 = vld [vmem:[%s2] sm:$0x3]
    %v47 = vperm.slane %v45, 0
    %v48 = vperm.slane %v45, 1
    %v51 = vld [vmem:[%s0] sm:$0x3]
    %s52 = scalar_lea.vmem %s0, 14
    %v53 = vld [vmem:[%s52] sm:$0x3]
    %vm54 = vcmask 523264
    %v55 = vsel %vm54, %v51, 0.0
    %v56 = vsel %vm54, %v53, 0.0
    %v58 = vrot.slane %v56, 6
    %vm60 = vcmask 1041408
    %v61 = vsel %vm60, %v55, %v58
    %vm62 = vcmask 785408
    %v64 = vsel %vm62, %v61, 0
    %66 = vmatpush.msra.mxu0 0.0
    %67 = vmatpush.msra.mxu0 0.0
    %68 = vmatpush.msra.mxu0 0.0
    %69 = vmatpush.msra.mxu0 0.0
    %70 = vmatpush.msra.mxu0 %v43
    %71 = vmatpush.msra.mxu0 %v41
    %72 = vmatpush.msra.mxu0 %v39
    %73 = vmatpush.msra.mxu0 %v37
    %74 = vmatpush.msra.mxu0 %v35
    %75 = vmatpush.msra.mxu0 %v33
    %76 = vmatpush.msra.mxu0 %v31
    %77 = vmatpush.msra.mxu0 %v29
    %78 = vmatpush.msra.mxu0 %v27
    %79 = vmatpush.msra.mxu0 %v25
    %80 = vmatpush.msra.mxu0 %v23
    %81 = vmatpush.msra.mxu0 %v21
    %82 = vmatmul.f32.gmra.mxu0 %v64
    %v83 = vpop.f32.mrf.mxu0
    %v84 = vadd.f32 %v47, %v83
    %85 = vdwg.mxu0
    %86 = vmatpush.msra.mxu0 0.0
    %87 = vmatpush.msra.mxu0 0.0
    %88 = vmatpush.msra.mxu0 0.0
    %89 = vmatpush.msra.mxu0 0.0
    %90 = vmatpush.msra.mxu0 %v44
    %91 = vmatpush.msra.mxu0 %v42
    %92 = vmatpush.msra.mxu0 %v40
    %93 = vmatpush.msra.mxu0 %v38
    %94 = vmatpush.msra.mxu0 %v36
    %95 = vmatpush.msra.mxu0 %v34
    %96 = vmatpush.msra.mxu0 %v32
    %97 = vmatpush.msra.mxu0 %v30
    %98 = vmatpush.msra.mxu0 %v28
    %99 = vmatpush.msra.mxu0 %v26
    %100 = vmatpush.msra.mxu0 %v24
    %101 = vmatpush.msra.mxu0 %v22
    %102 = vmatmul.f32.gmra.mxu0 %v64
    %v103 = vpop.f32.mrf.mxu0
    %v104 = vadd.f32 %v48, %v103
    %105 = vdwg.mxu0
    %v106 = vxor.u32 %v84, 2147483648
    %v107 = vmul.f32 %v106, 1.442695
    %v108 = vpow.pop %v107
    %v109 = vadd.f32 %v108, 1.0
    %v110 = vrcp.pop %v109
    %v111 = vmul.f32 %v109, %v110
    %v112 = vsub.f32 1.0, %v111
    %v113 = vmul.f32 %v110, %v112
    %v114 = vadd.f32 %v110, %v113
    %vm115 = vweird.f32 %v109
    %vm116 = vweird.f32 %v110
    %vm117 = vmor %vm115, %vm116
    %v118 = vsel %vm117, %v110, %v114
    %v119 = vand.u32 2147483647, %v109
    %vm120 = vcmp.eq.f32.partialorder %v119, 8.507059e+37
    %v121 = vand.u32 %v109, 2147483648
    %v122 = vor.u32 1.1754944e-38, %v121
    %v123 = vsel %vm120, %v122, %v118
    %v124 = vmul.f32 1.0, %v123
    %v125 = vtanh.pop %v84
    %v126 = vmul.f32 %v124, 0.0
    %128 = vrot.lane.b32.xlu0 %v125, 64
    %v129 = vpop.permute.xlu0 %128
    %v131 = vmul.f32 %v124, %v129
    %133 = vrot.lane.b32.xlu0 %v131, 32
    %v134 = vpop.permute.xlu0 %133
    %v136 = vadd.f32 %v126, %v134
    %v137 = vtanh.pop %v136
    %139 = vrot.lane.b32.xlu0 %v137, 64
    %v140 = vpop.permute.xlu0 %139
    %v142 = vmul.f32 %v124, %v140
    %v143 = vxor.u32 %v104, 2147483648
    %v144 = vmul.f32 %v143, 1.442695
    %v145 = vpow.pop %v144
    %v146 = vadd.f32 %v145, 1.0
    %v147 = vrcp.pop %v146
    %v148 = vmul.f32 %v146, %v147
    %v149 = vsub.f32 1.0, %v148
    %v150 = vmul.f32 %v147, %v149
    %v151 = vadd.f32 %v147, %v150
    %vm152 = vweird.f32 %v146
    %vm153 = vweird.f32 %v147
    %vm154 = vmor %vm152, %vm153
    %v155 = vsel %vm154, %v147, %v151
    %v156 = vand.u32 2147483647, %v146
    %vm157 = vcmp.eq.f32.partialorder %v156, 8.507059e+37
    %v158 = vand.u32 %v146, 2147483648
    %v159 = vor.u32 1.1754944e-38, %v158
    %v160 = vsel %vm157, %v159, %v155
    %v161 = vmul.f32 1.0, %v160
    %v162 = vtanh.pop %v104
    %v163 = vmul.f32 %v161, 0.0
    %165 = vrot.lane.b32.xlu0 %v162, 64
    %v166 = vpop.permute.xlu0 %165
    %v168 = vmul.f32 %v161, %v166
    %170 = vrot.lane.b32.xlu0 %v168, 32
    %v171 = vpop.permute.xlu0 %170
    %v173 = vadd.f32 %v163, %v171
    %v174 = vtanh.pop %v173
    %176 = vrot.lane.b32.xlu0 %v174, 64
    %v177 = vpop.permute.xlu0 %176
    %v179 = vmul.f32 %v161, %v177
    %181 = vrot.lane.b32.xlu0 %v142, 32
    %v182 = vpop.permute.xlu0 %181
    %vm184 = vcmask 254976
    %185 = vst.msk [vmem:[#allocation2] sm:$0x3] %vm184, %v182
    %187 = vrot.lane.b32.xlu0 %v179, 32
    %v188 = vpop.permute.xlu0 %187
    %s190 = scalar_lea.vmem [#allocation3], 14
    %vm191 = vcmask 257026
    %192 = vst.msk [vmem:[%s190 - $0x2] sm:$0xc] %vm191, %v188
    %s193 = scalar_lea.vmem %s0, 2
    %v194 = vld [vmem:[%s193] sm:$0x3]
    %s195 = scalar_lea.vmem %s0, 12
    %v196 = vld [vmem:[%s195] sm:$0x3]
    %197 = vrot.lane.b32.xlu0 %v142, 96
    %v198 = vpop.permute.xlu0 %197
    %v200 = vsel %vm54, %v194, %v198
    %v201 = vrot.slane %v179, 2
    %202 = vrot.lane.b32.xlu0 %v201, 96
    %v203 = vpop.permute.xlu0 %202
    %v205 = vsel %vm54, %v196, %v203
    %v207 = vrot.slane %v205, 6
    %v209 = vsel %vm60, %v200, %v207
    %v211 = vsel %vm62, %v209, 0
    %213 = vmatpush.msra.mxu0 0.0
    %214 = vmatpush.msra.mxu0 0.0
    %215 = vmatpush.msra.mxu0 0.0
    %216 = vmatpush.msra.mxu0 0.0
    %217 = vmatpush.msra.mxu0 %v43
    %218 = vmatpush.msra.mxu0 %v41
    %219 = vmatpush.msra.mxu0 %v39
    %220 = vmatpush.msra.mxu0 %v37
    %221 = vmatpush.msra.mxu0 %v35
    %222 = vmatpush.msra.mxu0 %v33
    %223 = vmatpush.msra.mxu0 %v31
    %224 = vmatpush.msra.mxu0 %v29
    %225 = vmatpush.msra.mxu0 %v27
    %226 = vmatpush.msra.mxu0 %v25
    %227 = vmatpush.msra.mxu0 %v23
    %228 = vmatpush.msra.mxu0 %v21
    %229 = vmatmul.f32.gmra.mxu0 %v211
    %v230 = vpop.f32.mrf.mxu0
    %v231 = vadd.f32 %v47, %v230
    %232 = vdwg.mxu0
    %233 = vmatpush.msra.mxu0 0.0
    %234 = vmatpush.msra.mxu0 0.0
    %235 = vmatpush.msra.mxu0 0.0
    %236 = vmatpush.msra.mxu0 0.0
    %237 = vmatpush.msra.mxu0 %v44
    %238 = vmatpush.msra.mxu0 %v42
    %239 = vmatpush.msra.mxu0 %v40
    %240 = vmatpush.msra.mxu0 %v38
    %241 = vmatpush.msra.mxu0 %v36
    %242 = vmatpush.msra.mxu0 %v34
    %243 = vmatpush.msra.mxu0 %v32
    %244 = vmatpush.msra.mxu0 %v30
    %245 = vmatpush.msra.mxu0 %v28
    %246 = vmatpush.msra.mxu0 %v26
    %247 = vmatpush.msra.mxu0 %v24
    %248 = vmatpush.msra.mxu0 %v22
    %249 = vmatmul.f32.gmra.mxu0 %v211
    %v250 = vpop.f32.mrf.mxu0
    %v251 = vadd.f32 %v48, %v250
    %252 = vdwg.mxu0
    %v253 = vxor.u32 %v231, 2147483648
    %v254 = vmul.f32 %v253, 1.442695
    %v255 = vpow.pop %v254
    %v256 = vadd.f32 %v255, 1.0
    %v257 = vrcp.pop %v256
    %v258 = vmul.f32 %v256, %v257
    %v259 = vsub.f32 1.0, %v258
    %v260 = vmul.f32 %v257, %v259
    %v261 = vadd.f32 %v257, %v260
    %vm262 = vweird.f32 %v256
    %vm263 = vweird.f32 %v257
    %vm264 = vmor %vm262, %vm263
    %v265 = vsel %vm264, %v257, %v261
    %v266 = vand.u32 2147483647, %v256
    %vm267 = vcmp.eq.f32.partialorder %v266, 8.507059e+37
    %v268 = vand.u32 %v256, 2147483648
    %v269 = vor.u32 1.1754944e-38, %v268
    %v270 = vsel %vm267, %v269, %v265
    %v271 = vmul.f32 1.0, %v270
    %v272 = vtanh.pop %v231
    %v273 = vmul.f32 %v271, %v136
    %275 = vrot.lane.b32.xlu0 %v272, 64
    %v276 = vpop.permute.xlu0 %275
    %v278 = vmul.f32 %v271, %v276
    %280 = vrot.lane.b32.xlu0 %v278, 32
    %v281 = vpop.permute.xlu0 %280
    %v283 = vadd.f32 %v273, %v281
    %v284 = vtanh.pop %v283
    %286 = vrot.lane.b32.xlu0 %v284, 64
    %v287 = vpop.permute.xlu0 %286
    %v289 = vmul.f32 %v271, %v287
    %v290 = vxor.u32 %v251, 2147483648
    %v291 = vmul.f32 %v290, 1.442695
    %v292 = vpow.pop %v291
    %v293 = vadd.f32 %v292, 1.0
    %v294 = vrcp.pop %v293
    %v295 = vmul.f32 %v293, %v294
    %v296 = vsub.f32 1.0, %v295
    %v297 = vmul.f32 %v294, %v296
    %v298 = vadd.f32 %v294, %v297
    %vm299 = vweird.f32 %v293
    %vm300 = vweird.f32 %v294
    %vm301 = vmor %vm299, %vm300
    %v302 = vsel %vm301, %v294, %v298
    %v303 = vand.u32 2147483647, %v293
    %vm304 = vcmp.eq.f32.partialorder %v303, 8.507059e+37
    %v305 = vand.u32 %v293, 2147483648
    %v306 = vor.u32 1.1754944e-38, %v305
    %v307 = vsel %vm304, %v306, %v302
    %v308 = vmul.f32 1.0, %v307
    %v309 = vtanh.pop %v251
    %v310 = vmul.f32 %v308, %v173
    %312 = vrot.lane.b32.xlu0 %v309, 64
    %v313 = vpop.permute.xlu0 %312
    %v315 = vmul.f32 %v308, %v313
    %317 = vrot.lane.b32.xlu0 %v315, 32
    %v318 = vpop.permute.xlu0 %317
    %v320 = vadd.f32 %v310, %v318
    %v321 = vtanh.pop %v320
    %323 = vrot.lane.b32.xlu0 %v321, 64
    %v324 = vpop.permute.xlu0 %323
    %v326 = vmul.f32 %v308, %v324
    %328 = vrot.lane.b32.xlu0 %v289, 32
    %v329 = vpop.permute.xlu0 %328
    %s331 = scalar_lea.vmem [#allocation2], 2
    %332 = vst.msk [vmem:[%s331] sm:$0x3] %vm184, %v329
    %334 = vrot.lane.b32.xlu0 %v326, 32
    %v335 = vpop.permute.xlu0 %334
    %s337 = scalar_lea.vmem [#allocation3], 12
    %338 = vst.msk [vmem:[%s337 - $0x2] sm:$0xc] %vm191, %v335
    %s339 = scalar_lea.vmem %s0, 4
    %v340 = vld [vmem:[%s339] sm:$0x3]
    %s341 = scalar_lea.vmem %s0, 10
    %v342 = vld [vmem:[%s341] sm:$0x3]
    %343 = vrot.lane.b32.xlu0 %v289, 96
    %v344 = vpop.permute.xlu0 %343
    %v346 = vsel %vm54, %v340, %v344
    %v347 = vrot.slane %v326, 2
    %348 = vrot.lane.b32.xlu0 %v347, 96
    %v349 = vpop.permute.xlu0 %348
    %v351 = vsel %vm54, %v342, %v349
    %v353 = vrot.slane %v351, 6
    %v355 = vsel %vm60, %v346, %v353
    %v357 = vsel %vm62, %v355, 0
    %359 = vmatpush.msra.mxu0 0.0
    %360 = vmatpush.msra.mxu0 0.0
    %361 = vmatpush.msra.mxu0 0.0
    %362 = vmatpush.msra.mxu0 0.0
    %363 = vmatpush.msra.mxu0 %v43
    %364 = vmatpush.msra.mxu0 %v41
    %365 = vmatpush.msra.mxu0 %v39
    %366 = vmatpush.msra.mxu0 %v37
    %367 = vmatpush.msra.mxu0 %v35
    %368 = vmatpush.msra.mxu0 %v33
    %369 = vmatpush.msra.mxu0 %v31
    %370 = vmatpush.msra.mxu0 %v29
    %371 = vmatpush.msra.mxu0 %v27
    %372 = vmatpush.msra.mxu0 %v25
    %373 = vmatpush.msra.mxu0 %v23
    %374 = vmatpush.msra.mxu0 %v21
    %375 = vmatmul.f32.gmra.mxu0 %v357
    %v376 = vpop.f32.mrf.mxu0
    %v377 = vadd.f32 %v47, %v376
    %378 = vdwg.mxu0
    %379 = vmatpush.msra.mxu0 0.0
    %380 = vmatpush.msra.mxu0 0.0
    %381 = vmatpush.msra.mxu0 0.0
    %382 = vmatpush.msra.mxu0 0.0
    %383 = vmatpush.msra.mxu0 %v44
    %384 = vmatpush.msra.mxu0 %v42
    %385 = vmatpush.msra.mxu0 %v40
    %386 = vmatpush.msra.mxu0 %v38
    %387 = vmatpush.msra.mxu0 %v36
    %388 = vmatpush.msra.mxu0 %v34
    %389 = vmatpush.msra.mxu0 %v32
    %390 = vmatpush.msra.mxu0 %v30
    %391 = vmatpush.msra.mxu0 %v28
    %392 = vmatpush.msra.mxu0 %v26
    %393 = vmatpush.msra.mxu0 %v24
    %394 = vmatpush.msra.mxu0 %v22
    %395 = vmatmul.f32.gmra.mxu0 %v357
    %v396 = vpop.f32.mrf.mxu0
    %v397 = vadd.f32 %v48, %v396
    %398 = vdwg.mxu0
    %v399 = vxor.u32 %v377, 2147483648
    %v400 = vmul.f32 %v399, 1.442695
    %v401 = vpow.pop %v400
    %v402 = vadd.f32 %v401, 1.0
    %v403 = vrcp.pop %v402
    %v404 = vmul.f32 %v402, %v403
    %v405 = vsub.f32 1.0, %v404
    %v406 = vmul.f32 %v403, %v405
    %v407 = vadd.f32 %v403, %v406
    %vm408 = vweird.f32 %v402
    %vm409 = vweird.f32 %v403
    %vm410 = vmor %vm408, %vm409
    %v411 = vsel %vm410, %v403, %v407
    %v412 = vand.u32 2147483647, %v402
    %vm413 = vcmp.eq.f32.partialorder %v412, 8.507059e+37
    %v414 = vand.u32 %v402, 2147483648
    %v415 = vor.u32 1.1754944e-38, %v414
    %v416 = vsel %vm413, %v415, %v411
    %v417 = vmul.f32 1.0, %v416
    %v418 = vtanh.pop %v377
    %v419 = vmul.f32 %v417, %v283
    %421 = vrot.lane.b32.xlu0 %v418, 64
    %v422 = vpop.permute.xlu0 %421
    %v424 = vmul.f32 %v417, %v422
    %426 = vrot.lane.b32.xlu0 %v424, 32
    %v427 = vpop.permute.xlu0 %426
    %v429 = vadd.f32 %v419, %v427
    %v430 = vtanh.pop %v429
    %432 = vrot.lane.b32.xlu0 %v430, 64
    %v433 = vpop.permute.xlu0 %432
    %v435 = vmul.f32 %v417, %v433
    %v436 = vxor.u32 %v397, 2147483648
    %v437 = vmul.f32 %v436, 1.442695
    %v438 = vpow.pop %v437
    %v439 = vadd.f32 %v438, 1.0
    %v440 = vrcp.pop %v439
    %v441 = vmul.f32 %v439, %v440
    %v442 = vsub.f32 1.0, %v441
    %v443 = vmul.f32 %v440, %v442
    %v444 = vadd.f32 %v440, %v443
    %vm445 = vweird.f32 %v439
    %vm446 = vweird.f32 %v440
    %vm447 = vmor %vm445, %vm446
    %v448 = vsel %vm447, %v440, %v444
    %v449 = vand.u32 2147483647, %v439
    %vm450 = vcmp.eq.f32.partialorder %v449, 8.507059e+37
    %v451 = vand.u32 %v439, 2147483648
    %v452 = vor.u32 1.1754944e-38, %v451
    %v453 = vsel %vm450, %v452, %v448
    %v454 = vmul.f32 1.0, %v453
    %v455 = vtanh.pop %v397
    %v456 = vmul.f32 %v454, %v320
    %458 = vrot.lane.b32.xlu0 %v455, 64
    %v459 = vpop.permute.xlu0 %458
    %v461 = vmul.f32 %v454, %v459
    %463 = vrot.lane.b32.xlu0 %v461, 32
    %v464 = vpop.permute.xlu0 %463
    %v466 = vadd.f32 %v456, %v464
    %v467 = vtanh.pop %v466
    %469 = vrot.lane.b32.xlu0 %v467, 64
    %v470 = vpop.permute.xlu0 %469
    %v472 = vmul.f32 %v454, %v470
    %474 = vrot.lane.b32.xlu0 %v435, 32
    %v475 = vpop.permute.xlu0 %474
    %s477 = scalar_lea.vmem [#allocation2], 4
    %478 = vst.msk [vmem:[%s477] sm:$0x3] %vm184, %v475
    %480 = vrot.lane.b32.xlu0 %v472, 32
    %v481 = vpop.permute.xlu0 %480
    %s483 = scalar_lea.vmem [#allocation3], 10
    %484 = vst.msk [vmem:[%s483 - $0x2] sm:$0xc] %vm191, %v481
    %s485 = scalar_lea.vmem %s0, 6
    %v486 = vld [vmem:[%s485] sm:$0x3]
    %s487 = scalar_lea.vmem %s0, 8
    %v488 = vld [vmem:[%s487] sm:$0x3]
    %489 = vrot.lane.b32.xlu0 %v435, 96
    %v490 = vpop.permute.xlu0 %489
    %v492 = vsel %vm54, %v486, %v490
    %v493 = vrot.slane %v472, 2
    %494 = vrot.lane.b32.xlu0 %v493, 96
    %v495 = vpop.permute.xlu0 %494
    %v497 = vsel %vm54, %v488, %v495
    %v499 = vrot.slane %v497, 6
    %v501 = vsel %vm60, %v492, %v499
    %v503 = vsel %vm62, %v501, 0
    %505 = vmatpush.msra.mxu0 0.0
    %506 = vmatpush.msra.mxu0 0.0
    %507 = vmatpush.msra.mxu0 0.0
    %508 = vmatpush.msra.mxu0 0.0
    %509 = vmatpush.msra.mxu0 %v43
    %510 = vmatpush.msra.mxu0 %v41
    %511 = vmatpush.msra.mxu0 %v39
    %512 = vmatpush.msra.mxu0 %v37
    %513 = vmatpush.msra.mxu0 %v35
    %514 = vmatpush.msra.mxu0 %v33
    %515 = vmatpush.msra.mxu0 %v31
    %516 = vmatpush.msra.mxu0 %v29
    %517 = vmatpush.msra.mxu0 %v27
    %518 = vmatpush.msra.mxu0 %v25
    %519 = vmatpush.msra.mxu0 %v23
    %520 = vmatpush.msra.mxu0 %v21
    %521 = vmatmul.f32.gmra.mxu0 %v503
    %v522 = vpop.f32.mrf.mxu0
    %v523 = vadd.f32 %v47, %v522
    %524 = vdwg.mxu0
    %525 = vmatpush.msra.mxu0 0.0
    %526 = vmatpush.msra.mxu0 0.0
    %527 = vmatpush.msra.mxu0 0.0
    %528 = vmatpush.msra.mxu0 0.0
    %529 = vmatpush.msra.mxu0 %v44
    %530 = vmatpush.msra.mxu0 %v42
    %531 = vmatpush.msra.mxu0 %v40
    %532 = vmatpush.msra.mxu0 %v38
    %533 = vmatpush.msra.mxu0 %v36
    %534 = vmatpush.msra.mxu0 %v34
    %535 = vmatpush.msra.mxu0 %v32
    %536 = vmatpush.msra.mxu0 %v30
    %537 = vmatpush.msra.mxu0 %v28
    %538 = vmatpush.msra.mxu0 %v26
    %539 = vmatpush.msra.mxu0 %v24
    %540 = vmatpush.msra.mxu0 %v22
    %541 = vmatmul.f32.gmra.mxu0 %v503
    %v542 = vpop.f32.mrf.mxu0
    %v543 = vadd.f32 %v48, %v542
    %544 = vdwg.mxu0
    %v545 = vxor.u32 %v523, 2147483648
    %v546 = vmul.f32 %v545, 1.442695
    %v547 = vpow.pop %v546
    %v548 = vadd.f32 %v547, 1.0
    %v549 = vrcp.pop %v548
    %v550 = vmul.f32 %v548, %v549
    %v551 = vsub.f32 1.0, %v550
    %v552 = vmul.f32 %v549, %v551
    %v553 = vadd.f32 %v549, %v552
    %vm554 = vweird.f32 %v548
    %vm555 = vweird.f32 %v549
    %vm556 = vmor %vm554, %vm555
    %v557 = vsel %vm556, %v549, %v553
    %v558 = vand.u32 2147483647, %v548
    %vm559 = vcmp.eq.f32.partialorder %v558, 8.507059e+37
    %v560 = vand.u32 %v548, 2147483648
    %v561 = vor.u32 1.1754944e-38, %v560
    %v562 = vsel %vm559, %v561, %v557
    %v563 = vmul.f32 1.0, %v562
    %v564 = vtanh.pop %v523
    %v565 = vmul.f32 %v563, %v429
    %567 = vrot.lane.b32.xlu0 %v564, 64
    %v568 = vpop.permute.xlu0 %567
    %v570 = vmul.f32 %v563, %v568
    %572 = vrot.lane.b32.xlu0 %v570, 32
    %v573 = vpop.permute.xlu0 %572
    %v575 = vadd.f32 %v565, %v573
    %v576 = vtanh.pop %v575
    %578 = vrot.lane.b32.xlu0 %v576, 64
    %v579 = vpop.permute.xlu0 %578
    %v581 = vmul.f32 %v563, %v579
    %v582 = vxor.u32 %v543, 2147483648
    %v583 = vmul.f32 %v582, 1.442695
    %v584 = vpow.pop %v583
    %v585 = vadd.f32 %v584, 1.0
    %v586 = vrcp.pop %v585
    %v587 = vmul.f32 %v585, %v586
    %v588 = vsub.f32 1.0, %v587
    %v589 = vmul.f32 %v586, %v588
    %v590 = vadd.f32 %v586, %v589
    %vm591 = vweird.f32 %v585
    %vm592 = vweird.f32 %v586
    %vm593 = vmor %vm591, %vm592
    %v594 = vsel %vm593, %v586, %v590
    %v595 = vand.u32 2147483647, %v585
    %vm596 = vcmp.eq.f32.partialorder %v595, 8.507059e+37
    %v597 = vand.u32 %v585, 2147483648
    %v598 = vor.u32 1.1754944e-38, %v597
    %v599 = vsel %vm596, %v598, %v594
    %v600 = vmul.f32 1.0, %v599
    %v601 = vtanh.pop %v543
    %v602 = vmul.f32 %v600, %v466
    %604 = vrot.lane.b32.xlu0 %v601, 64
    %v605 = vpop.permute.xlu0 %604
    %v607 = vmul.f32 %v600, %v605
    %609 = vrot.lane.b32.xlu0 %v607, 32
    %v610 = vpop.permute.xlu0 %609
    %v612 = vadd.f32 %v602, %v610
    %v613 = vtanh.pop %v612
    %615 = vrot.lane.b32.xlu0 %v613, 64
    %v616 = vpop.permute.xlu0 %615
    %v618 = vmul.f32 %v600, %v616
    %620 = vrot.lane.b32.xlu0 %v581, 32
    %v621 = vpop.permute.xlu0 %620
    %s623 = scalar_lea.vmem [#allocation2], 6
    %624 = vst.msk [vmem:[%s623] sm:$0x3] %vm184, %v621
    %626 = vrot.lane.b32.xlu0 %v618, 32
    %v627 = vpop.permute.xlu0 %626
    %s629 = scalar_lea.vmem [#allocation3], 8
    %630 = vst.msk [vmem:[%s629 - $0x2] sm:$0xc] %vm191, %v627
    %v631 = vld [vmem:[%s487] sm:$0x3]
    %v632 = vld [vmem:[%s485] sm:$0x3]
    %633 = vrot.lane.b32.xlu0 %v581, 96
    %v634 = vpop.permute.xlu0 %633
    %v636 = vsel %vm54, %v631, %v634
    %v637 = vrot.slane %v618, 2
    %638 = vrot.lane.b32.xlu0 %v637, 96
    %v639 = vpop.permute.xlu0 %638
    %v641 = vsel %vm54, %v632, %v639
    %v643 = vrot.slane %v641, 6
    %v645 = vsel %vm60, %v636, %v643
    %v647 = vsel %vm62, %v645, 0
    %649 = vmatpush.msra.mxu0 0.0
    %650 = vmatpush.msra.mxu0 0.0
    %651 = vmatpush.msra.mxu0 0.0
    %652 = vmatpush.msra.mxu0 0.0
    %653 = vmatpush.msra.mxu0 %v43
    %654 = vmatpush.msra.mxu0 %v41
    %655 = vmatpush.msra.mxu0 %v39
    %656 = vmatpush.msra.mxu0 %v37
    %657 = vmatpush.msra.mxu0 %v35
    %658 = vmatpush.msra.mxu0 %v33
    %659 = vmatpush.msra.mxu0 %v31
    %660 = vmatpush.msra.mxu0 %v29
    %661 = vmatpush.msra.mxu0 %v27
    %662 = vmatpush.msra.mxu0 %v25
    %663 = vmatpush.msra.mxu0 %v23
    %664 = vmatpush.msra.mxu0 %v21
    %665 = vmatmul.f32.gmra.mxu0 %v647
    %v666 = vpop.f32.mrf.mxu0
    %v667 = vadd.f32 %v47, %v666
    %668 = vdwg.mxu0
    %669 = vmatpush.msra.mxu0 0.0
    %670 = vmatpush.msra.mxu0 0.0
    %671 = vmatpush.msra.mxu0 0.0
    %672 = vmatpush.msra.mxu0 0.0
    %673 = vmatpush.msra.mxu0 %v44
    %674 = vmatpush.msra.mxu0 %v42
    %675 = vmatpush.msra.mxu0 %v40
    %676 = vmatpush.msra.mxu0 %v38
    %677 = vmatpush.msra.mxu0 %v36
    %678 = vmatpush.msra.mxu0 %v34
    %679 = vmatpush.msra.mxu0 %v32
    %680 = vmatpush.msra.mxu0 %v30
    %681 = vmatpush.msra.mxu0 %v28
    %682 = vmatpush.msra.mxu0 %v26
    %683 = vmatpush.msra.mxu0 %v24
    %684 = vmatpush.msra.mxu0 %v22
    %685 = vmatmul.f32.gmra.mxu0 %v647
    %v686 = vpop.f32.mrf.mxu0
    %v687 = vadd.f32 %v48, %v686
    %688 = vdwg.mxu0
    %v689 = vxor.u32 %v667, 2147483648
    %v690 = vmul.f32 %v689, 1.442695
    %v691 = vpow.pop %v690
    %v692 = vadd.f32 %v691, 1.0
    %v693 = vrcp.pop %v692
    %v694 = vmul.f32 %v692, %v693
    %v695 = vsub.f32 1.0, %v694
    %v696 = vmul.f32 %v693, %v695
    %v697 = vadd.f32 %v693, %v696
    %vm698 = vweird.f32 %v692
    %vm699 = vweird.f32 %v693
    %vm700 = vmor %vm698, %vm699
    %v701 = vsel %vm700, %v693, %v697
    %v702 = vand.u32 2147483647, %v692
    %vm703 = vcmp.eq.f32.partialorder %v702, 8.507059e+37
    %v704 = vand.u32 %v692, 2147483648
    %v705 = vor.u32 1.1754944e-38, %v704
    %v706 = vsel %vm703, %v705, %v701
    %v707 = vmul.f32 1.0, %v706
    %v708 = vtanh.pop %v667
    %v709 = vmul.f32 %v707, %v575
    %711 = vrot.lane.b32.xlu0 %v708, 64
    %v712 = vpop.permute.xlu0 %711
    %v714 = vmul.f32 %v707, %v712
    %716 = vrot.lane.b32.xlu0 %v714, 32
    %v717 = vpop.permute.xlu0 %716
    %v719 = vadd.f32 %v709, %v717
    %v720 = vtanh.pop %v719
    %722 = vrot.lane.b32.xlu0 %v720, 64
    %v723 = vpop.permute.xlu0 %722
    %v725 = vmul.f32 %v707, %v723
    %v726 = vxor.u32 %v687, 2147483648
    %v727 = vmul.f32 %v726, 1.442695
    %v728 = vpow.pop %v727
    %v729 = vadd.f32 %v728, 1.0
    %v730 = vrcp.pop %v729
    %v731 = vmul.f32 %v729, %v730
    %v732 = vsub.f32 1.0, %v731
    %v733 = vmul.f32 %v730, %v732
    %v734 = vadd.f32 %v730, %v733
    %vm735 = vweird.f32 %v729
    %vm736 = vweird.f32 %v730
    %vm737 = vmor %vm735, %vm736
    %v738 = vsel %vm737, %v730, %v734
    %v739 = vand.u32 2147483647, %v729
    %vm740 = vcmp.eq.f32.partialorder %v739, 8.507059e+37
    %v741 = vand.u32 %v729, 2147483648
    %v742 = vor.u32 1.1754944e-38, %v741
    %v743 = vsel %vm740, %v742, %v738
    %v744 = vmul.f32 1.0, %v743
    %v745 = vtanh.pop %v687
    %v746 = vmul.f32 %v744, %v612
    %748 = vrot.lane.b32.xlu0 %v745, 64
    %v749 = vpop.permute.xlu0 %748
    %v751 = vmul.f32 %v744, %v749
    %753 = vrot.lane.b32.xlu0 %v751, 32
    %v754 = vpop.permute.xlu0 %753
    %v756 = vadd.f32 %v746, %v754
    %v757 = vtanh.pop %v756
    %759 = vrot.lane.b32.xlu0 %v757, 64
    %v760 = vpop.permute.xlu0 %759
    %v762 = vmul.f32 %v744, %v760
    %764 = vrot.lane.b32.xlu0 %v725, 32
    %v765 = vpop.permute.xlu0 %764
    %s767 = scalar_lea.vmem [#allocation2], 8
    %768 = vst.msk [vmem:[%s767] sm:$0x3] %vm184, %v765
    %770 = vrot.lane.b32.xlu0 %v762, 32
    %v771 = vpop.permute.xlu0 %770
    %s773 = scalar_lea.vmem [#allocation3], 6
    %774 = vst.msk [vmem:[%s773 - $0x2] sm:$0xc] %vm191, %v771
    %v775 = vld [vmem:[%s341] sm:$0x3]
    %v776 = vld [vmem:[%s339] sm:$0x3]
    %777 = vrot.lane.b32.xlu0 %v725, 96
    %v778 = vpop.permute.xlu0 %777
    %v780 = vsel %vm54, %v775, %v778
    %v781 = vrot.slane %v762, 2
    %782 = vrot.lane.b32.xlu0 %v781, 96
    %v783 = vpop.permute.xlu0 %782
    %v785 = vsel %vm54, %v776, %v783
    %v787 = vrot.slane %v785, 6
    %v789 = vsel %vm60, %v780, %v787
    %v791 = vsel %vm62, %v789, 0
    %793 = vmatpush.msra.mxu0 0.0
    %794 = vmatpush.msra.mxu0 0.0
    %795 = vmatpush.msra.mxu0 0.0
    %796 = vmatpush.msra.mxu0 0.0
    %797 = vmatpush.msra.mxu0 %v43
    %798 = vmatpush.msra.mxu0 %v41
    %799 = vmatpush.msra.mxu0 %v39
    %800 = vmatpush.msra.mxu0 %v37
    %801 = vmatpush.msra.mxu0 %v35
    %802 = vmatpush.msra.mxu0 %v33
    %803 = vmatpush.msra.mxu0 %v31
    %804 = vmatpush.msra.mxu0 %v29
    %805 = vmatpush.msra.mxu0 %v27
    %806 = vmatpush.msra.mxu0 %v25
    %807 = vmatpush.msra.mxu0 %v23
    %808 = vmatpush.msra.mxu0 %v21
    %809 = vmatmul.f32.gmra.mxu0 %v791
    %v810 = vpop.f32.mrf.mxu0
    %v811 = vadd.f32 %v47, %v810
    %812 = vdwg.mxu0
    %813 = vmatpush.msra.mxu0 0.0
    %814 = vmatpush.msra.mxu0 0.0
    %815 = vmatpush.msra.mxu0 0.0
    %816 = vmatpush.msra.mxu0 0.0
    %817 = vmatpush.msra.mxu0 %v44
    %818 = vmatpush.msra.mxu0 %v42
    %819 = vmatpush.msra.mxu0 %v40
    %820 = vmatpush.msra.mxu0 %v38
    %821 = vmatpush.msra.mxu0 %v36
    %822 = vmatpush.msra.mxu0 %v34
    %823 = vmatpush.msra.mxu0 %v32
    %824 = vmatpush.msra.mxu0 %v30
    %825 = vmatpush.msra.mxu0 %v28
    %826 = vmatpush.msra.mxu0 %v26
    %827 = vmatpush.msra.mxu0 %v24
    %828 = vmatpush.msra.mxu0 %v22
    %829 = vmatmul.f32.gmra.mxu0 %v791
    %v830 = vpop.f32.mrf.mxu0
    %v831 = vadd.f32 %v48, %v830
    %832 = vdwg.mxu0
    %v833 = vxor.u32 %v811, 2147483648
    %v834 = vmul.f32 %v833, 1.442695
    %v835 = vpow.pop %v834
    %v836 = vadd.f32 %v835, 1.0
    %v837 = vrcp.pop %v836
    %v838 = vmul.f32 %v836, %v837
    %v839 = vsub.f32 1.0, %v838
    %v840 = vmul.f32 %v837, %v839
    %v841 = vadd.f32 %v837, %v840
    %vm842 = vweird.f32 %v836
    %vm843 = vweird.f32 %v837
    %vm844 = vmor %vm842, %vm843
    %v845 = vsel %vm844, %v837, %v841
    %v846 = vand.u32 2147483647, %v836
    %vm847 = vcmp.eq.f32.partialorder %v846, 8.507059e+37
    %v848 = vand.u32 %v836, 2147483648
    %v849 = vor.u32 1.1754944e-38, %v848
    %v850 = vsel %vm847, %v849, %v845
    %v851 = vmul.f32 1.0, %v850
    %v852 = vtanh.pop %v811
    %v853 = vmul.f32 %v851, %v719
    %855 = vrot.lane.b32.xlu0 %v852, 64
    %v856 = vpop.permute.xlu0 %855
    %v858 = vmul.f32 %v851, %v856
    %860 = vrot.lane.b32.xlu0 %v858, 32
    %v861 = vpop.permute.xlu0 %860
    %v863 = vadd.f32 %v853, %v861
    %v864 = vtanh.pop %v863
    %866 = vrot.lane.b32.xlu0 %v864, 64
    %v867 = vpop.permute.xlu0 %866
    %v869 = vmul.f32 %v851, %v867
    %v870 = vxor.u32 %v831, 2147483648
    %v871 = vmul.f32 %v870, 1.442695
    %v872 = vpow.pop %v871
    %v873 = vadd.f32 %v872, 1.0
    %v874 = vrcp.pop %v873
    %v875 = vmul.f32 %v873, %v874
    %v876 = vsub.f32 1.0, %v875
    %v877 = vmul.f32 %v874, %v876
    %v878 = vadd.f32 %v874, %v877
    %vm879 = vweird.f32 %v873
    %vm880 = vweird.f32 %v874
    %vm881 = vmor %vm879, %vm880
    %v882 = vsel %vm881, %v874, %v878
    %v883 = vand.u32 2147483647, %v873
    %vm884 = vcmp.eq.f32.partialorder %v883, 8.507059e+37
    %v885 = vand.u32 %v873, 2147483648
    %v886 = vor.u32 1.1754944e-38, %v885
    %v887 = vsel %vm884, %v886, %v882
    %v888 = vmul.f32 1.0, %v887
    %v889 = vtanh.pop %v831
    %v890 = vmul.f32 %v888, %v756
    %892 = vrot.lane.b32.xlu0 %v889, 64
    %v893 = vpop.permute.xlu0 %892
    %v895 = vmul.f32 %v888, %v893
    %897 = vrot.lane.b32.xlu0 %v895, 32
    %v898 = vpop.permute.xlu0 %897
    %v900 = vadd.f32 %v890, %v898
    %v901 = vtanh.pop %v900
    %903 = vrot.lane.b32.xlu0 %v901, 64
    %v904 = vpop.permute.xlu0 %903
    %v906 = vmul.f32 %v888, %v904
    %908 = vrot.lane.b32.xlu0 %v869, 32
    %v909 = vpop.permute.xlu0 %908
    %s911 = scalar_lea.vmem [#allocation2], 10
    %912 = vst.msk [vmem:[%s911] sm:$0x3] %vm184, %v909
    %914 = vrot.lane.b32.xlu0 %v906, 32
    %v915 = vpop.permute.xlu0 %914
    %s917 = scalar_lea.vmem [#allocation3], 4
    %918 = vst.msk [vmem:[%s917 - $0x2] sm:$0xc] %vm191, %v915
    %v919 = vld [vmem:[%s195] sm:$0x3]
    %v920 = vld [vmem:[%s193] sm:$0x3]
    %921 = vrot.lane.b32.xlu0 %v869, 96
    %v922 = vpop.permute.xlu0 %921
    %v924 = vsel %vm54, %v919, %v922
    %v925 = vrot.slane %v906, 2
    %926 = vrot.lane.b32.xlu0 %v925, 96
    %v927 = vpop.permute.xlu0 %926
    %v929 = vsel %vm54, %v920, %v927
    %v931 = vrot.slane %v929, 6
    %v933 = vsel %vm60, %v924, %v931
    %v935 = vsel %vm62, %v933, 0
    %937 = vmatpush.msra.mxu0 0.0
    %938 = vmatpush.msra.mxu0 0.0
    %939 = vmatpush.msra.mxu0 0.0
    %940 = vmatpush.msra.mxu0 0.0
    %941 = vmatpush.msra.mxu0 %v43
    %942 = vmatpush.msra.mxu0 %v41
    %943 = vmatpush.msra.mxu0 %v39
    %944 = vmatpush.msra.mxu0 %v37
    %945 = vmatpush.msra.mxu0 %v35
    %946 = vmatpush.msra.mxu0 %v33
    %947 = vmatpush.msra.mxu0 %v31
    %948 = vmatpush.msra.mxu0 %v29
    %949 = vmatpush.msra.mxu0 %v27
    %950 = vmatpush.msra.mxu0 %v25
    %951 = vmatpush.msra.mxu0 %v23
    %952 = vmatpush.msra.mxu0 %v21
    %953 = vmatmul.f32.gmra.mxu0 %v935
    %v954 = vpop.f32.mrf.mxu0
    %v955 = vadd.f32 %v47, %v954
    %956 = vdwg.mxu0
    %957 = vmatpush.msra.mxu0 0.0
    %958 = vmatpush.msra.mxu0 0.0
    %959 = vmatpush.msra.mxu0 0.0
    %960 = vmatpush.msra.mxu0 0.0
    %961 = vmatpush.msra.mxu0 %v44
    %962 = vmatpush.msra.mxu0 %v42
    %963 = vmatpush.msra.mxu0 %v40
    %964 = vmatpush.msra.mxu0 %v38
    %965 = vmatpush.msra.mxu0 %v36
    %966 = vmatpush.msra.mxu0 %v34
    %967 = vmatpush.msra.mxu0 %v32
    %968 = vmatpush.msra.mxu0 %v30
    %969 = vmatpush.msra.mxu0 %v28
    %970 = vmatpush.msra.mxu0 %v26
    %971 = vmatpush.msra.mxu0 %v24
    %972 = vmatpush.msra.mxu0 %v22
    %973 = vmatmul.f32.gmra.mxu0 %v935
    %v974 = vpop.f32.mrf.mxu0
    %v975 = vadd.f32 %v48, %v974
    %976 = vdwg.mxu0
    %v977 = vxor.u32 %v955, 2147483648
    %v978 = vmul.f32 %v977, 1.442695
    %v979 = vpow.pop %v978
    %v980 = vadd.f32 %v979, 1.0
    %v981 = vrcp.pop %v980
    %v982 = vmul.f32 %v980, %v981
    %v983 = vsub.f32 1.0, %v982
    %v984 = vmul.f32 %v981, %v983
    %v985 = vadd.f32 %v981, %v984
    %vm986 = vweird.f32 %v980
    %vm987 = vweird.f32 %v981
    %vm988 = vmor %vm986, %vm987
    %v989 = vsel %vm988, %v981, %v985
    %v990 = vand.u32 2147483647, %v980
    %vm991 = vcmp.eq.f32.partialorder %v990, 8.507059e+37
    %v992 = vand.u32 %v980, 2147483648
    %v993 = vor.u32 1.1754944e-38, %v992
    %v994 = vsel %vm991, %v993, %v989
    %v995 = vmul.f32 1.0, %v994
    %v996 = vtanh.pop %v955
    %v997 = vmul.f32 %v995, %v863
    %999 = vrot.lane.b32.xlu0 %v996, 64
    %v1000 = vpop.permute.xlu0 %999
    %v1002 = vmul.f32 %v995, %v1000
    %1004 = vrot.lane.b32.xlu0 %v1002, 32
    %v1005 = vpop.permute.xlu0 %1004
    %v1007 = vadd.f32 %v997, %v1005
    %v1008 = vtanh.pop %v1007
    %1010 = vrot.lane.b32.xlu0 %v1008, 64
    %v1011 = vpop.permute.xlu0 %1010
    %v1013 = vmul.f32 %v995, %v1011
    %v1014 = vxor.u32 %v975, 2147483648
    %v1015 = vmul.f32 %v1014, 1.442695
    %v1016 = vpow.pop %v1015
    %v1017 = vadd.f32 %v1016, 1.0
    %v1018 = vrcp.pop %v1017
    %v1019 = vmul.f32 %v1017, %v1018
    %v1020 = vsub.f32 1.0, %v1019
    %v1021 = vmul.f32 %v1018, %v1020
    %v1022 = vadd.f32 %v1018, %v1021
    %vm1023 = vweird.f32 %v1017
    %vm1024 = vweird.f32 %v1018
    %vm1025 = vmor %vm1023, %vm1024
    %v1026 = vsel %vm1025, %v1018, %v1022
    %v1027 = vand.u32 2147483647, %v1017
    %vm1028 = vcmp.eq.f32.partialorder %v1027, 8.507059e+37
    %v1029 = vand.u32 %v1017, 2147483648
    %v1030 = vor.u32 1.1754944e-38, %v1029
    %v1031 = vsel %vm1028, %v1030, %v1026
    %v1032 = vmul.f32 1.0, %v1031
    %v1033 = vtanh.pop %v975
    %v1034 = vmul.f32 %v1032, %v900
    %1036 = vrot.lane.b32.xlu0 %v1033, 64
    %v1037 = vpop.permute.xlu0 %1036
    %v1039 = vmul.f32 %v1032, %v1037
    %1041 = vrot.lane.b32.xlu0 %v1039, 32
    %v1042 = vpop.permute.xlu0 %1041
    %v1044 = vadd.f32 %v1034, %v1042
    %v1045 = vtanh.pop %v1044
    %1047 = vrot.lane.b32.xlu0 %v1045, 64
    %v1048 = vpop.permute.xlu0 %1047
    %v1050 = vmul.f32 %v1032, %v1048
    %1052 = vrot.lane.b32.xlu0 %v1013, 32
    %v1053 = vpop.permute.xlu0 %1052
    %s1055 = scalar_lea.vmem [#allocation2], 12
    %1056 = vst.msk [vmem:[%s1055] sm:$0x3] %vm184, %v1053
    %1058 = vrot.lane.b32.xlu0 %v1050, 32
    %v1059 = vpop.permute.xlu0 %1058
    %s1061 = scalar_lea.vmem [#allocation3], 2
    %1062 = vst.msk [vmem:[%s1061 - $0x2] sm:$0xc] %vm191, %v1059
    %v1063 = vld [vmem:[%s52] sm:$0x3]
    %v1064 = vld [vmem:[%s0] sm:$0x3]
    %1065 = vrot.lane.b32.xlu0 %v1013, 96
    %v1066 = vpop.permute.xlu0 %1065
    %v1068 = vsel %vm54, %v1063, %v1066
    %v1069 = vrot.slane %v1050, 2
    %1070 = vrot.lane.b32.xlu0 %v1069, 96
    %v1071 = vpop.permute.xlu0 %1070
    %v1073 = vsel %vm54, %v1064, %v1071
    %v1075 = vrot.slane %v1073, 6
    %v1077 = vsel %vm60, %v1068, %v1075
    %v1079 = vsel %vm62, %v1077, 0
    %1081 = vmatpush.msra.mxu0 0.0
    %1082 = vmatpush.msra.mxu0 0.0
    %1083 = vmatpush.msra.mxu0 0.0
    %1084 = vmatpush.msra.mxu0 0.0
    %1085 = vmatpush.msra.mxu0 %v43
    %1086 = vmatpush.msra.mxu0 %v41
    %1087 = vmatpush.msra.mxu0 %v39
    %1088 = vmatpush.msra.mxu0 %v37
    %1089 = vmatpush.msra.mxu0 %v35
    %1090 = vmatpush.msra.mxu0 %v33
    %1091 = vmatpush.msra.mxu0 %v31
    %1092 = vmatpush.msra.mxu0 %v29
    %1093 = vmatpush.msra.mxu0 %v27
    %1094 = vmatpush.msra.mxu0 %v25
    %1095 = vmatpush.msra.mxu0 %v23
    %1096 = vmatpush.msra.mxu0 %v21
    %1097 = vmatmul.f32.gmra.mxu0 %v1079
    %v1098 = vpop.f32.mrf.mxu0
    %v1099 = vadd.f32 %v47, %v1098
    %1100 = vdwg.mxu0
    %1101 = vmatpush.msra.mxu0 0.0
    %1102 = vmatpush.msra.mxu0 0.0
    %1103 = vmatpush.msra.mxu0 0.0
    %1104 = vmatpush.msra.mxu0 0.0
    %1105 = vmatpush.msra.mxu0 %v44
    %1106 = vmatpush.msra.mxu0 %v42
    %1107 = vmatpush.msra.mxu0 %v40
    %1108 = vmatpush.msra.mxu0 %v38
    %1109 = vmatpush.msra.mxu0 %v36
    %1110 = vmatpush.msra.mxu0 %v34
    %1111 = vmatpush.msra.mxu0 %v32
    %1112 = vmatpush.msra.mxu0 %v30
    %1113 = vmatpush.msra.mxu0 %v28
    %1114 = vmatpush.msra.mxu0 %v26
    %1115 = vmatpush.msra.mxu0 %v24
    %1116 = vmatpush.msra.mxu0 %v22
    %1117 = vmatmul.f32.gmra.mxu0 %v1079
    %v1118 = vpop.f32.mrf.mxu0
    %v1119 = vadd.f32 %v48, %v1118
    %1120 = vdwg.mxu0
    %v1121 = vxor.u32 %v1099, 2147483648
    %v1122 = vmul.f32 %v1121, 1.442695
    %v1123 = vpow.pop %v1122
    %v1124 = vadd.f32 %v1123, 1.0
    %v1125 = vrcp.pop %v1124
    %v1126 = vmul.f32 %v1124, %v1125
    %v1127 = vsub.f32 1.0, %v1126
    %v1128 = vmul.f32 %v1125, %v1127
    %v1129 = vadd.f32 %v1125, %v1128
    %vm1130 = vweird.f32 %v1124
    %vm1131 = vweird.f32 %v1125
    %vm1132 = vmor %vm1130, %vm1131
    %v1133 = vsel %vm1132, %v1125, %v1129
    %v1134 = vand.u32 2147483647, %v1124
    %vm1135 = vcmp.eq.f32.partialorder %v1134, 8.507059e+37
    %v1136 = vand.u32 %v1124, 2147483648
    %v1137 = vor.u32 1.1754944e-38, %v1136
    %v1138 = vsel %vm1135, %v1137, %v1133
    %v1139 = vmul.f32 1.0, %v1138
    %v1140 = vtanh.pop %v1099
    %v1141 = vmul.f32 %v1139, %v1007
    %1143 = vrot.lane.b32.xlu0 %v1140, 64
    %v1144 = vpop.permute.xlu0 %1143
    %v1146 = vmul.f32 %v1139, %v1144
    %1148 = vrot.lane.b32.xlu0 %v1146, 32
    %v1149 = vpop.permute.xlu0 %1148
    %v1151 = vadd.f32 %v1141, %v1149
    %v1152 = vtanh.pop %v1151
    %1154 = vrot.lane.b32.xlu0 %v1152, 64
    %v1155 = vpop.permute.xlu0 %1154
    %v1157 = vmul.f32 %v1139, %v1155
    %v1158 = vxor.u32 %v1119, 2147483648
    %v1159 = vmul.f32 %v1158, 1.442695
    %v1160 = vpow.pop %v1159
    %v1161 = vadd.f32 %v1160, 1.0
    %v1162 = vrcp.pop %v1161
    %v1163 = vmul.f32 %v1161, %v1162
    %v1164 = vsub.f32 1.0, %v1163
    %v1165 = vmul.f32 %v1162, %v1164
    %v1166 = vadd.f32 %v1162, %v1165
    %vm1167 = vweird.f32 %v1161
    %vm1168 = vweird.f32 %v1162
    %vm1169 = vmor %vm1167, %vm1168
    %v1170 = vsel %vm1169, %v1162, %v1166
    %v1171 = vand.u32 2147483647, %v1161
    %vm1172 = vcmp.eq.f32.partialorder %v1171, 8.507059e+37
    %v1173 = vand.u32 %v1161, 2147483648
    %v1174 = vor.u32 1.1754944e-38, %v1173
    %v1175 = vsel %vm1172, %v1174, %v1170
    %v1176 = vmul.f32 1.0, %v1175
    %v1177 = vtanh.pop %v1119
    %v1178 = vmul.f32 %v1176, %v1044
    %1180 = vrot.lane.b32.xlu0 %v1177, 64
    %v1181 = vpop.permute.xlu0 %1180
    %v1183 = vmul.f32 %v1176, %v1181
    %1185 = vrot.lane.b32.xlu0 %v1183, 32
    %v1186 = vpop.permute.xlu0 %1185
    %v1188 = vadd.f32 %v1178, %v1186
    %v1189 = vtanh.pop %v1188
    %1191 = vrot.lane.b32.xlu0 %v1189, 64
    %v1192 = vpop.permute.xlu0 %1191
    %v1194 = vmul.f32 %v1176, %v1192
    %1196 = vrot.lane.b32.xlu0 %v1157, 32
    %v1197 = vpop.permute.xlu0 %1196
    %s1199 = scalar_lea.vmem [#allocation2], 14
    %1200 = vst.msk [vmem:[%s1199] sm:$0x3] %vm184, %v1197
    %1202 = vrot.lane.b32.xlu0 %v1194, 32
    %v1203 = vpop.permute.xlu0 %1202
    %1205 = vst.msk [vmem:[#allocation3 - $0x2] sm:$0xc] %vm191, %v1203
    %v1206 = vld [vmem:[%s3] sm:$0xff]
    %v1207 = vld [vmem:[%s3 + $0x8] sm:$0xff]
    %v1208 = vld [vmem:[%s3 + $0x10] sm:$0xff]
    %v1209 = vld [vmem:[%s3 + $0x18] sm:$0xff]
    %v1210 = vld [vmem:[%s3 + $0x20] sm:$0xff]
    %v1211 = vld [vmem:[%s3 + $0x28] sm:$0xff]
    %v1212 = vld [vmem:[%s3 + $0x30] sm:$0xff]
    %v1213 = vld [vmem:[%s3 + $0x38] sm:$0xff]
    %v1214 = vld [vmem:[%s3 + $0x40] sm:$0xff]
    %v1215 = vld [vmem:[%s3 + $0x48] sm:$0xff]
    %v1216 = vld [vmem:[%s3 + $0x50] sm:$0xff]
    %v1217 = vld [vmem:[%s3 + $0x58] sm:$0xff]
    %v1218 = vld [vmem:[%s3 + $0x60] sm:$0xff]
    %v1219 = vld [vmem:[%s3 + $0x68] sm:$0xff]
    %v1220 = vld [vmem:[%s3 + $0x70] sm:$0xff]
    %v1221 = vld [vmem:[%s3 + $0x78] sm:$0xff]
    %v1222 = vld [vmem:[%s3 + $0x80] sm:$0xff]
    %v1223 = vld [vmem:[%s3 + $0x88] sm:$0xff]
    %v1224 = vld [vmem:[%s3 + $0x90] sm:$0xff]
    %v1225 = vld [vmem:[%s3 + $0x98] sm:$0xff]
    %v1226 = vld [vmem:[%s3 + $0xa0] sm:$0xff]
    %v1227 = vld [vmem:[%s3 + $0xa8] sm:$0xff]
    %v1228 = vld [vmem:[%s3 + $0xb0] sm:$0xff]
    %v1229 = vld [vmem:[%s3 + $0xb8] sm:$0xff]
    %v1230 = vld [vmem:[%s4] sm:$0x3]
    %v1232 = vperm.slane %v1230, 0
    %v1233 = vperm.slane %v1230, 1
    %v1236 = vld [vmem:[#allocation2] sm:$0x3]
    %v1237 = vld [vmem:[#allocation3] sm:$0x3]
    %1239 = vrot.lane.b32.xlu0 %v1237, 32
    %v1240 = vpop.permute.xlu0 %1239
    %vm1242 = vcmask 261120
    %v1243 = vsel %vm1242, %v1236, %v1240
    %v1244 = vld [vmem:[%s1199] sm:$0x3]
    %v1245 = vld [vmem:[%s190] sm:$0x3]
    %1247 = vrot.lane.b32.xlu0 %v1245, 32
    %v1248 = vpop.permute.xlu0 %1247
    %v1250 = vsel %vm1242, %v1244, %v1248
    %v1251 = vsel %vm54, %v1243, 0.0
    %v1252 = vsel %vm54, %v1250, 0.0
    %v1254 = vrot.slane %v1252, 6
    %v1256 = vsel %vm60, %v1251, %v1254
    %v1258 = vsel %vm62, %v1256, 0
    %1260 = vmatpush.msra.mxu0 0.0
    %1261 = vmatpush.msra.mxu0 0.0
    %1262 = vmatpush.msra.mxu0 0.0
    %1263 = vmatpush.msra.mxu0 0.0
    %1264 = vmatpush.msra.mxu0 %v1228
    %1265 = vmatpush.msra.mxu0 %v1226
    %1266 = vmatpush.msra.mxu0 %v1224
    %1267 = vmatpush.msra.mxu0 %v1222
    %1268 = vmatpush.msra.mxu0 %v1220
    %1269 = vmatpush.msra.mxu0 %v1218
    %1270 = vmatpush.msra.mxu0 %v1216
    %1271 = vmatpush.msra.mxu0 %v1214
    %1272 = vmatpush.msra.mxu0 %v1212
    %1273 = vmatpush.msra.mxu0 %v1210
    %1274 = vmatpush.msra.mxu0 %v1208
    %1275 = vmatpush.msra.mxu0 %v1206
    %1276 = vmatmul.f32.gmra.mxu0 %v1258
    %v1277 = vpop.f32.mrf.mxu0
    %v1278 = vadd.f32 %v1232, %v1277
    %1279 = vdwg.mxu0
    %1280 = vmatpush.msra.mxu0 0.0
    %1281 = vmatpush.msra.mxu0 0.0
    %1282 = vmatpush.msra.mxu0 0.0
    %1283 = vmatpush.msra.mxu0 0.0
    %1284 = vmatpush.msra.mxu0 %v1229
    %1285 = vmatpush.msra.mxu0 %v1227
    %1286 = vmatpush.msra.mxu0 %v1225
    %1287 = vmatpush.msra.mxu0 %v1223
    %1288 = vmatpush.msra.mxu0 %v1221
    %1289 = vmatpush.msra.mxu0 %v1219
    %1290 = vmatpush.msra.mxu0 %v1217
    %1291 = vmatpush.msra.mxu0 %v1215
    %1292 = vmatpush.msra.mxu0 %v1213
    %1293 = vmatpush.msra.mxu0 %v1211
    %1294 = vmatpush.msra.mxu0 %v1209
    %1295 = vmatpush.msra.mxu0 %v1207
    %1296 = vmatmul.f32.gmra.mxu0 %v1258
    %v1297 = vpop.f32.mrf.mxu0
    %v1298 = vadd.f32 %v1233, %v1297
    %1299 = vdwg.mxu0
    %v1300 = vxor.u32 %v1278, 2147483648
    %v1301 = vmul.f32 %v1300, 1.442695
    %v1302 = vpow.pop %v1301
    %v1303 = vadd.f32 %v1302, 1.0
    %v1304 = vrcp.pop %v1303
    %v1305 = vmul.f32 %v1303, %v1304
    %v1306 = vsub.f32 1.0, %v1305
    %v1307 = vmul.f32 %v1304, %v1306
    %v1308 = vadd.f32 %v1304, %v1307
    %vm1309 = vweird.f32 %v1303
    %vm1310 = vweird.f32 %v1304
    %vm1311 = vmor %vm1309, %vm1310
    %v1312 = vsel %vm1311, %v1304, %v1308
    %v1313 = vand.u32 2147483647, %v1303
    %vm1314 = vcmp.eq.f32.partialorder %v1313, 8.507059e+37
    %v1315 = vand.u32 %v1303, 2147483648
    %v1316 = vor.u32 1.1754944e-38, %v1315
    %v1317 = vsel %vm1314, %v1316, %v1312
    %v1318 = vmul.f32 1.0, %v1317
    %v1319 = vtanh.pop %v1278
    %v1320 = vmul.f32 %v1318, 0.0
    %1322 = vrot.lane.b32.xlu0 %v1319, 64
    %v1323 = vpop.permute.xlu0 %1322
    %v1325 = vmul.f32 %v1318, %v1323
    %1327 = vrot.lane.b32.xlu0 %v1325, 32
    %v1328 = vpop.permute.xlu0 %1327
    %v1330 = vadd.f32 %v1320, %v1328
    %v1331 = vtanh.pop %v1330
    %1333 = vrot.lane.b32.xlu0 %v1331, 64
    %v1334 = vpop.permute.xlu0 %1333
    %v1336 = vmul.f32 %v1318, %v1334
    %v1337 = vxor.u32 %v1298, 2147483648
    %v1338 = vmul.f32 %v1337, 1.442695
    %v1339 = vpow.pop %v1338
    %v1340 = vadd.f32 %v1339, 1.0
    %v1341 = vrcp.pop %v1340
    %v1342 = vmul.f32 %v1340, %v1341
    %v1343 = vsub.f32 1.0, %v1342
    %v1344 = vmul.f32 %v1341, %v1343
    %v1345 = vadd.f32 %v1341, %v1344
    %vm1346 = vweird.f32 %v1340
    %vm1347 = vweird.f32 %v1341
    %vm1348 = vmor %vm1346, %vm1347
    %v1349 = vsel %vm1348, %v1341, %v1345
    %v1350 = vand.u32 2147483647, %v1340
    %vm1351 = vcmp.eq.f32.partialorder %v1350, 8.507059e+37
    %v1352 = vand.u32 %v1340, 2147483648
    %v1353 = vor.u32 1.1754944e-38, %v1352
    %v1354 = vsel %vm1351, %v1353, %v1349
    %v1355 = vmul.f32 1.0, %v1354
    %v1356 = vtanh.pop %v1298
    %v1357 = vmul.f32 %v1355, 0.0
    %1359 = vrot.lane.b32.xlu0 %v1356, 64
    %v1360 = vpop.permute.xlu0 %1359
    %v1362 = vmul.f32 %v1355, %v1360
    %1364 = vrot.lane.b32.xlu0 %v1362, 32
    %v1365 = vpop.permute.xlu0 %1364
    %v1367 = vadd.f32 %v1357, %v1365
    %v1368 = vtanh.pop %v1367
    %1370 = vrot.lane.b32.xlu0 %v1368, 64
    %v1371 = vpop.permute.xlu0 %1370
    %v1373 = vmul.f32 %v1355, %v1371
    %1375 = vrot.lane.b32.xlu0 %v1336, 32
    %v1376 = vpop.permute.xlu0 %1375
    %1378 = vst.msk [vmem:[#allocation4] sm:$0x3] %vm184, %v1376
    %1380 = vrot.lane.b32.xlu0 %v1373, 32
    %v1381 = vpop.permute.xlu0 %1380
    %s1383 = scalar_lea.vmem [#allocation5], 14
    %1384 = vst.msk [vmem:[%s1383 - $0x2] sm:$0xc] %vm191, %v1381
    %v1385 = vld [vmem:[%s331] sm:$0x3]
    %v1386 = vld [vmem:[%s1061] sm:$0x3]
    %1388 = vrot.lane.b32.xlu0 %v1386, 32
    %v1389 = vpop.permute.xlu0 %1388
    %v1391 = vsel %vm1242, %v1385, %v1389
    %v1392 = vld [vmem:[%s1055] sm:$0x3]
    %v1393 = vld [vmem:[%s337] sm:$0x3]
    %1395 = vrot.lane.b32.xlu0 %v1393, 32
    %v1396 = vpop.permute.xlu0 %1395
    %v1398 = vsel %vm1242, %v1392, %v1396
    %1399 = vrot.lane.b32.xlu0 %v1336, 96
    %v1400 = vpop.permute.xlu0 %1399
    %v1402 = vsel %vm54, %v1391, %v1400
    %v1403 = vrot.slane %v1373, 2
    %1404 = vrot.lane.b32.xlu0 %v1403, 96
    %v1405 = vpop.permute.xlu0 %1404
    %v1407 = vsel %vm54, %v1398, %v1405
    %v1409 = vrot.slane %v1407, 6
    %v1411 = vsel %vm60, %v1402, %v1409
    %v1413 = vsel %vm62, %v1411, 0
    %1415 = vmatpush.msra.mxu0 0.0
    %1416 = vmatpush.msra.mxu0 0.0
    %1417 = vmatpush.msra.mxu0 0.0
    %1418 = vmatpush.msra.mxu0 0.0
    %1419 = vmatpush.msra.mxu0 %v1228
    %1420 = vmatpush.msra.mxu0 %v1226
    %1421 = vmatpush.msra.mxu0 %v1224
    %1422 = vmatpush.msra.mxu0 %v1222
    %1423 = vmatpush.msra.mxu0 %v1220
    %1424 = vmatpush.msra.mxu0 %v1218
    %1425 = vmatpush.msra.mxu0 %v1216
    %1426 = vmatpush.msra.mxu0 %v1214
    %1427 = vmatpush.msra.mxu0 %v1212
    %1428 = vmatpush.msra.mxu0 %v1210
    %1429 = vmatpush.msra.mxu0 %v1208
    %1430 = vmatpush.msra.mxu0 %v1206
    %1431 = vmatmul.f32.gmra.mxu0 %v1413
    %v1432 = vpop.f32.mrf.mxu0
    %v1433 = vadd.f32 %v1232, %v1432
    %1434 = vdwg.mxu0
    %1435 = vmatpush.msra.mxu0 0.0
    %1436 = vmatpush.msra.mxu0 0.0
    %1437 = vmatpush.msra.mxu0 0.0
    %1438 = vmatpush.msra.mxu0 0.0
    %1439 = vmatpush.msra.mxu0 %v1229
    %1440 = vmatpush.msra.mxu0 %v1227
    %1441 = vmatpush.msra.mxu0 %v1225
    %1442 = vmatpush.msra.mxu0 %v1223
    %1443 = vmatpush.msra.mxu0 %v1221
    %1444 = vmatpush.msra.mxu0 %v1219
    %1445 = vmatpush.msra.mxu0 %v1217
    %1446 = vmatpush.msra.mxu0 %v1215
    %1447 = vmatpush.msra.mxu0 %v1213
    %1448 = vmatpush.msra.mxu0 %v1211
    %1449 = vmatpush.msra.mxu0 %v1209
    %1450 = vmatpush.msra.mxu0 %v1207
    %1451 = vmatmul.f32.gmra.mxu0 %v1413
    %v1452 = vpop.f32.mrf.mxu0
    %v1453 = vadd.f32 %v1233, %v1452
    %1454 = vdwg.mxu0
    %v1455 = vxor.u32 %v1433, 2147483648
    %v1456 = vmul.f32 %v1455, 1.442695
    %v1457 = vpow.pop %v1456
    %v1458 = vadd.f32 %v1457, 1.0
    %v1459 = vrcp.pop %v1458
    %v1460 = vmul.f32 %v1458, %v1459
    %v1461 = vsub.f32 1.0, %v1460
    %v1462 = vmul.f32 %v1459, %v1461
    %v1463 = vadd.f32 %v1459, %v1462
    %vm1464 = vweird.f32 %v1458
    %vm1465 = vweird.f32 %v1459
    %vm1466 = vmor %vm1464, %vm1465
    %v1467 = vsel %vm1466, %v1459, %v1463
    %v1468 = vand.u32 2147483647, %v1458
    %vm1469 = vcmp.eq.f32.partialorder %v1468, 8.507059e+37
    %v1470 = vand.u32 %v1458, 2147483648
    %v1471 = vor.u32 1.1754944e-38, %v1470
    %v1472 = vsel %vm1469, %v1471, %v1467
    %v1473 = vmul.f32 1.0, %v1472
    %v1474 = vtanh.pop %v1433
    %v1475 = vmul.f32 %v1473, %v1330
    %1477 = vrot.lane.b32.xlu0 %v1474, 64
    %v1478 = vpop.permute.xlu0 %1477
    %v1480 = vmul.f32 %v1473, %v1478
    %1482 = vrot.lane.b32.xlu0 %v1480, 32
    %v1483 = vpop.permute.xlu0 %1482
    %v1485 = vadd.f32 %v1475, %v1483
    %v1486 = vtanh.pop %v1485
    %1488 = vrot.lane.b32.xlu0 %v1486, 64
    %v1489 = vpop.permute.xlu0 %1488
    %v1491 = vmul.f32 %v1473, %v1489
    %v1492 = vxor.u32 %v1453, 2147483648
    %v1493 = vmul.f32 %v1492, 1.442695
    %v1494 = vpow.pop %v1493
    %v1495 = vadd.f32 %v1494, 1.0
    %v1496 = vrcp.pop %v1495
    %v1497 = vmul.f32 %v1495, %v1496
    %v1498 = vsub.f32 1.0, %v1497
    %v1499 = vmul.f32 %v1496, %v1498
    %v1500 = vadd.f32 %v1496, %v1499
    %vm1501 = vweird.f32 %v1495
    %vm1502 = vweird.f32 %v1496
    %vm1503 = vmor %vm1501, %vm1502
    %v1504 = vsel %vm1503, %v1496, %v1500
    %v1505 = vand.u32 2147483647, %v1495
    %vm1506 = vcmp.eq.f32.partialorder %v1505, 8.507059e+37
    %v1507 = vand.u32 %v1495, 2147483648
    %v1508 = vor.u32 1.1754944e-38, %v1507
    %v1509 = vsel %vm1506, %v1508, %v1504
    %v1510 = vmul.f32 1.0, %v1509
    %v1511 = vtanh.pop %v1453
    %v1512 = vmul.f32 %v1510, %v1367
    %1514 = vrot.lane.b32.xlu0 %v1511, 64
    %v1515 = vpop.permute.xlu0 %1514
    %v1517 = vmul.f32 %v1510, %v1515
    %1519 = vrot.lane.b32.xlu0 %v1517, 32
    %v1520 = vpop.permute.xlu0 %1519
    %v1522 = vadd.f32 %v1512, %v1520
    %v1523 = vtanh.pop %v1522
    %1525 = vrot.lane.b32.xlu0 %v1523, 64
    %v1526 = vpop.permute.xlu0 %1525
    %v1528 = vmul.f32 %v1510, %v1526
    %1530 = vrot.lane.b32.xlu0 %v1491, 32
    %v1531 = vpop.permute.xlu0 %1530
    %s1533 = scalar_lea.vmem [#allocation4], 2
    %1534 = vst.msk [vmem:[%s1533] sm:$0x3] %vm184, %v1531
    %1536 = vrot.lane.b32.xlu0 %v1528, 32
    %v1537 = vpop.permute.xlu0 %1536
    %s1539 = scalar_lea.vmem [#allocation5], 12
    %1540 = vst.msk [vmem:[%s1539 - $0x2] sm:$0xc] %vm191, %v1537
    %v1541 = vld [vmem:[%s477] sm:$0x3]
    %v1542 = vld [vmem:[%s917] sm:$0x3]
    %1544 = vrot.lane.b32.xlu0 %v1542, 32
    %v1545 = vpop.permute.xlu0 %1544
    %v1547 = vsel %vm1242, %v1541, %v1545
    %v1548 = vld [vmem:[%s911] sm:$0x3]
    %v1549 = vld [vmem:[%s483] sm:$0x3]
    %1551 = vrot.lane.b32.xlu0 %v1549, 32
    %v1552 = vpop.permute.xlu0 %1551
    %v1554 = vsel %vm1242, %v1548, %v1552
    %1555 = vrot.lane.b32.xlu0 %v1491, 96
    %v1556 = vpop.permute.xlu0 %1555
    %v1558 = vsel %vm54, %v1547, %v1556
    %v1559 = vrot.slane %v1528, 2
    %1560 = vrot.lane.b32.xlu0 %v1559, 96
    %v1561 = vpop.permute.xlu0 %1560
    %v1563 = vsel %vm54, %v1554, %v1561
    %v1565 = vrot.slane %v1563, 6
    %v1567 = vsel %vm60, %v1558, %v1565
    %v1569 = vsel %vm62, %v1567, 0
    %1571 = vmatpush.msra.mxu0 0.0
    %1572 = vmatpush.msra.mxu0 0.0
    %1573 = vmatpush.msra.mxu0 0.0
    %1574 = vmatpush.msra.mxu0 0.0
    %1575 = vmatpush.msra.mxu0 %v1228
    %1576 = vmatpush.msra.mxu0 %v1226
    %1577 = vmatpush.msra.mxu0 %v1224
    %1578 = vmatpush.msra.mxu0 %v1222
    %1579 = vmatpush.msra.mxu0 %v1220
    %1580 = vmatpush.msra.mxu0 %v1218
    %1581 = vmatpush.msra.mxu0 %v1216
    %1582 = vmatpush.msra.mxu0 %v1214
    %1583 = vmatpush.msra.mxu0 %v1212
    %1584 = vmatpush.msra.mxu0 %v1210
    %1585 = vmatpush.msra.mxu0 %v1208
    %1586 = vmatpush.msra.mxu0 %v1206
    %1587 = vmatmul.f32.gmra.mxu0 %v1569
    %v1588 = vpop.f32.mrf.mxu0
    %v1589 = vadd.f32 %v1232, %v1588
    %1590 = vdwg.mxu0
    %1591 = vmatpush.msra.mxu0 0.0
    %1592 = vmatpush.msra.mxu0 0.0
    %1593 = vmatpush.msra.mxu0 0.0
    %1594 = vmatpush.msra.mxu0 0.0
    %1595 = vmatpush.msra.mxu0 %v1229
    %1596 = vmatpush.msra.mxu0 %v1227
    %1597 = vmatpush.msra.mxu0 %v1225
    %1598 = vmatpush.msra.mxu0 %v1223
    %1599 = vmatpush.msra.mxu0 %v1221
    %1600 = vmatpush.msra.mxu0 %v1219
    %1601 = vmatpush.msra.mxu0 %v1217
    %1602 = vmatpush.msra.mxu0 %v1215
    %1603 = vmatpush.msra.mxu0 %v1213
    %1604 = vmatpush.msra.mxu0 %v1211
    %1605 = vmatpush.msra.mxu0 %v1209
    %1606 = vmatpush.msra.mxu0 %v1207
    %1607 = vmatmul.f32.gmra.mxu0 %v1569
    %v1608 = vpop.f32.mrf.mxu0
    %v1609 = vadd.f32 %v1233, %v1608
    %1610 = vdwg.mxu0
    %v1611 = vxor.u32 %v1589, 2147483648
    %v1612 = vmul.f32 %v1611, 1.442695
    %v1613 = vpow.pop %v1612
    %v1614 = vadd.f32 %v1613, 1.0
    %v1615 = vrcp.pop %v1614
    %v1616 = vmul.f32 %v1614, %v1615
    %v1617 = vsub.f32 1.0, %v1616
    %v1618 = vmul.f32 %v1615, %v1617
    %v1619 = vadd.f32 %v1615, %v1618
    %vm1620 = vweird.f32 %v1614
    %vm1621 = vweird.f32 %v1615
    %vm1622 = vmor %vm1620, %vm1621
    %v1623 = vsel %vm1622, %v1615, %v1619
    %v1624 = vand.u32 2147483647, %v1614
    %vm1625 = vcmp.eq.f32.partialorder %v1624, 8.507059e+37
    %v1626 = vand.u32 %v1614, 2147483648
    %v1627 = vor.u32 1.1754944e-38, %v1626
    %v1628 = vsel %vm1625, %v1627, %v1623
    %v1629 = vmul.f32 1.0, %v1628
    %v1630 = vtanh.pop %v1589
    %v1631 = vmul.f32 %v1629, %v1485
    %1633 = vrot.lane.b32.xlu0 %v1630, 64
    %v1634 = vpop.permute.xlu0 %1633
    %v1636 = vmul.f32 %v1629, %v1634
    %1638 = vrot.lane.b32.xlu0 %v1636, 32
    %v1639 = vpop.permute.xlu0 %1638
    %v1641 = vadd.f32 %v1631, %v1639
    %v1642 = vtanh.pop %v1641
    %1644 = vrot.lane.b32.xlu0 %v1642, 64
    %v1645 = vpop.permute.xlu0 %1644
    %v1647 = vmul.f32 %v1629, %v1645
    %v1648 = vxor.u32 %v1609, 2147483648
    %v1649 = vmul.f32 %v1648, 1.442695
    %v1650 = vpow.pop %v1649
    %v1651 = vadd.f32 %v1650, 1.0
    %v1652 = vrcp.pop %v1651
    %v1653 = vmul.f32 %v1651, %v1652
    %v1654 = vsub.f32 1.0, %v1653
    %v1655 = vmul.f32 %v1652, %v1654
    %v1656 = vadd.f32 %v1652, %v1655
    %vm1657 = vweird.f32 %v1651
    %vm1658 = vweird.f32 %v1652
    %vm1659 = vmor %vm1657, %vm1658
    %v1660 = vsel %vm1659, %v1652, %v1656
    %v1661 = vand.u32 2147483647, %v1651
    %vm1662 = vcmp.eq.f32.partialorder %v1661, 8.507059e+37
    %v1663 = vand.u32 %v1651, 2147483648
    %v1664 = vor.u32 1.1754944e-38, %v1663
    %v1665 = vsel %vm1662, %v1664, %v1660
    %v1666 = vmul.f32 1.0, %v1665
    %v1667 = vtanh.pop %v1609
    %v1668 = vmul.f32 %v1666, %v1522
    %1670 = vrot.lane.b32.xlu0 %v1667, 64
    %v1671 = vpop.permute.xlu0 %1670
    %v1673 = vmul.f32 %v1666, %v1671
    %1675 = vrot.lane.b32.xlu0 %v1673, 32
    %v1676 = vpop.permute.xlu0 %1675
    %v1678 = vadd.f32 %v1668, %v1676
    %v1679 = vtanh.pop %v1678
    %1681 = vrot.lane.b32.xlu0 %v1679, 64
    %v1682 = vpop.permute.xlu0 %1681
    %v1684 = vmul.f32 %v1666, %v1682
    %1686 = vrot.lane.b32.xlu0 %v1647, 32
    %v1687 = vpop.permute.xlu0 %1686
    %s1689 = scalar_lea.vmem [#allocation4], 4
    %1690 = vst.msk [vmem:[%s1689] sm:$0x3] %vm184, %v1687
    %1692 = vrot.lane.b32.xlu0 %v1684, 32
    %v1693 = vpop.permute.xlu0 %1692
    %s1695 = scalar_lea.vmem [#allocation5], 10
    %1696 = vst.msk [vmem:[%s1695 - $0x2] sm:$0xc] %vm191, %v1693
    %v1697 = vld [vmem:[%s623] sm:$0x3]
    %v1698 = vld [vmem:[%s773] sm:$0x3]
    %1700 = vrot.lane.b32.xlu0 %v1698, 32
    %v1701 = vpop.permute.xlu0 %1700
    %v1703 = vsel %vm1242, %v1697, %v1701
    %v1704 = vld [vmem:[%s767] sm:$0x3]
    %v1705 = vld [vmem:[%s629] sm:$0x3]
    %1707 = vrot.lane.b32.xlu0 %v1705, 32
    %v1708 = vpop.permute.xlu0 %1707
    %v1710 = vsel %vm1242, %v1704, %v1708
    %1711 = vrot.lane.b32.xlu0 %v1647, 96
    %v1712 = vpop.permute.xlu0 %1711
    %v1714 = vsel %vm54, %v1703, %v1712
    %v1715 = vrot.slane %v1684, 2
    %1716 = vrot.lane.b32.xlu0 %v1715, 96
    %v1717 = vpop.permute.xlu0 %1716
    %v1719 = vsel %vm54, %v1710, %v1717
    %v1721 = vrot.slane %v1719, 6
    %v1723 = vsel %vm60, %v1714, %v1721
    %v1725 = vsel %vm62, %v1723, 0
    %1727 = vmatpush.msra.mxu0 0.0
    %1728 = vmatpush.msra.mxu0 0.0
    %1729 = vmatpush.msra.mxu0 0.0
    %1730 = vmatpush.msra.mxu0 0.0
    %1731 = vmatpush.msra.mxu0 %v1228
    %1732 = vmatpush.msra.mxu0 %v1226
    %1733 = vmatpush.msra.mxu0 %v1224
    %1734 = vmatpush.msra.mxu0 %v1222
    %1735 = vmatpush.msra.mxu0 %v1220
    %1736 = vmatpush.msra.mxu0 %v1218
    %1737 = vmatpush.msra.mxu0 %v1216
    %1738 = vmatpush.msra.mxu0 %v1214
    %1739 = vmatpush.msra.mxu0 %v1212
    %1740 = vmatpush.msra.mxu0 %v1210
    %1741 = vmatpush.msra.mxu0 %v1208
    %1742 = vmatpush.msra.mxu0 %v1206
    %1743 = vmatmul.f32.gmra.mxu0 %v1725
    %v1744 = vpop.f32.mrf.mxu0
    %v1745 = vadd.f32 %v1232, %v1744
    %1746 = vdwg.mxu0
    %1747 = vmatpush.msra.mxu0 0.0
    %1748 = vmatpush.msra.mxu0 0.0
    %1749 = vmatpush.msra.mxu0 0.0
    %1750 = vmatpush.msra.mxu0 0.0
    %1751 = vmatpush.msra.mxu0 %v1229
    %1752 = vmatpush.msra.mxu0 %v1227
    %1753 = vmatpush.msra.mxu0 %v1225
    %1754 = vmatpush.msra.mxu0 %v1223
    %1755 = vmatpush.msra.mxu0 %v1221
    %1756 = vmatpush.msra.mxu0 %v1219
    %1757 = vmatpush.msra.mxu0 %v1217
    %1758 = vmatpush.msra.mxu0 %v1215
    %1759 = vmatpush.msra.mxu0 %v1213
    %1760 = vmatpush.msra.mxu0 %v1211
    %1761 = vmatpush.msra.mxu0 %v1209
    %1762 = vmatpush.msra.mxu0 %v1207
    %1763 = vmatmul.f32.gmra.mxu0 %v1725
    %v1764 = vpop.f32.mrf.mxu0
    %v1765 = vadd.f32 %v1233, %v1764
    %1766 = vdwg.mxu0
    %v1767 = vxor.u32 %v1745, 2147483648
    %v1768 = vmul.f32 %v1767, 1.442695
    %v1769 = vpow.pop %v1768
    %v1770 = vadd.f32 %v1769, 1.0
    %v1771 = vrcp.pop %v1770
    %v1772 = vmul.f32 %v1770, %v1771
    %v1773 = vsub.f32 1.0, %v1772
    %v1774 = vmul.f32 %v1771, %v1773
    %v1775 = vadd.f32 %v1771, %v1774
    %vm1776 = vweird.f32 %v1770
    %vm1777 = vweird.f32 %v1771
    %vm1778 = vmor %vm1776, %vm1777
    %v1779 = vsel %vm1778, %v1771, %v1775
    %v1780 = vand.u32 2147483647, %v1770
    %vm1781 = vcmp.eq.f32.partialorder %v1780, 8.507059e+37
    %v1782 = vand.u32 %v1770, 2147483648
    %v1783 = vor.u32 1.1754944e-38, %v1782
    %v1784 = vsel %vm1781, %v1783, %v1779
    %v1785 = vmul.f32 1.0, %v1784
    %v1786 = vtanh.pop %v1745
    %v1787 = vmul.f32 %v1785, %v1641
    %1789 = vrot.lane.b32.xlu0 %v1786, 64
    %v1790 = vpop.permute.xlu0 %1789
    %v1792 = vmul.f32 %v1785, %v1790
    %1794 = vrot.lane.b32.xlu0 %v1792, 32
    %v1795 = vpop.permute.xlu0 %1794
    %v1797 = vadd.f32 %v1787, %v1795
    %v1798 = vtanh.pop %v1797
    %1800 = vrot.lane.b32.xlu0 %v1798, 64
    %v1801 = vpop.permute.xlu0 %1800
    %v1803 = vmul.f32 %v1785, %v1801
    %v1804 = vxor.u32 %v1765, 2147483648
    %v1805 = vmul.f32 %v1804, 1.442695
    %v1806 = vpow.pop %v1805
    %v1807 = vadd.f32 %v1806, 1.0
    %v1808 = vrcp.pop %v1807
    %v1809 = vmul.f32 %v1807, %v1808
    %v1810 = vsub.f32 1.0, %v1809
    %v1811 = vmul.f32 %v1808, %v1810
    %v1812 = vadd.f32 %v1808, %v1811
    %vm1813 = vweird.f32 %v1807
    %vm1814 = vweird.f32 %v1808
    %vm1815 = vmor %vm1813, %vm1814
    %v1816 = vsel %vm1815, %v1808, %v1812
    %v1817 = vand.u32 2147483647, %v1807
    %vm1818 = vcmp.eq.f32.partialorder %v1817, 8.507059e+37
    %v1819 = vand.u32 %v1807, 2147483648
    %v1820 = vor.u32 1.1754944e-38, %v1819
    %v1821 = vsel %vm1818, %v1820, %v1816
    %v1822 = vmul.f32 1.0, %v1821
    %v1823 = vtanh.pop %v1765
    %v1824 = vmul.f32 %v1822, %v1678
    %1826 = vrot.lane.b32.xlu0 %v1823, 64
    %v1827 = vpop.permute.xlu0 %1826
    %v1829 = vmul.f32 %v1822, %v1827
    %1831 = vrot.lane.b32.xlu0 %v1829, 32
    %v1832 = vpop.permute.xlu0 %1831
    %v1834 = vadd.f32 %v1824, %v1832
    %v1835 = vtanh.pop %v1834
    %1837 = vrot.lane.b32.xlu0 %v1835, 64
    %v1838 = vpop.permute.xlu0 %1837
    %v1840 = vmul.f32 %v1822, %v1838
    %1842 = vrot.lane.b32.xlu0 %v1803, 32
    %v1843 = vpop.permute.xlu0 %1842
    %s1845 = scalar_lea.vmem [#allocation4], 6
    %1846 = vst.msk [vmem:[%s1845] sm:$0x3] %vm184, %v1843
    %1848 = vrot.lane.b32.xlu0 %v1840, 32
    %v1849 = vpop.permute.xlu0 %1848
    %s1851 = scalar_lea.vmem [#allocation5], 8
    %1852 = vst.msk [vmem:[%s1851 - $0x2] sm:$0xc] %vm191, %v1849
    %v1853 = vld [vmem:[%s767] sm:$0x3]
    %v1854 = vld [vmem:[%s629] sm:$0x3]
    %1856 = vrot.lane.b32.xlu0 %v1854, 32
    %v1857 = vpop.permute.xlu0 %1856
    %v1859 = vsel %vm1242, %v1853, %v1857
    %v1860 = vld [vmem:[%s623] sm:$0x3]
    %v1861 = vld [vmem:[%s773] sm:$0x3]
    %1863 = vrot.lane.b32.xlu0 %v1861, 32
    %v1864 = vpop.permute.xlu0 %1863
    %v1866 = vsel %vm1242, %v1860, %v1864
    %1867 = vrot.lane.b32.xlu0 %v1803, 96
    %v1868 = vpop.permute.xlu0 %1867
    %v1870 = vsel %vm54, %v1859, %v1868
    %v1871 = vrot.slane %v1840, 2
    %1872 = vrot.lane.b32.xlu0 %v1871, 96
    %v1873 = vpop.permute.xlu0 %1872
    %v1875 = vsel %vm54, %v1866, %v1873
    %v1877 = vrot.slane %v1875, 6
    %v1879 = vsel %vm60, %v1870, %v1877
    %v1881 = vsel %vm62, %v1879, 0
    %1883 = vmatpush.msra.mxu0 0.0
    %1884 = vmatpush.msra.mxu0 0.0
    %1885 = vmatpush.msra.mxu0 0.0
    %1886 = vmatpush.msra.mxu0 0.0
    %1887 = vmatpush.msra.mxu0 %v1228
    %1888 = vmatpush.msra.mxu0 %v1226
    %1889 = vmatpush.msra.mxu0 %v1224
    %1890 = vmatpush.msra.mxu0 %v1222
    %1891 = vmatpush.msra.mxu0 %v1220
    %1892 = vmatpush.msra.mxu0 %v1218
    %1893 = vmatpush.msra.mxu0 %v1216
    %1894 = vmatpush.msra.mxu0 %v1214
    %1895 = vmatpush.msra.mxu0 %v1212
    %1896 = vmatpush.msra.mxu0 %v1210
    %1897 = vmatpush.msra.mxu0 %v1208
    %1898 = vmatpush.msra.mxu0 %v1206
    %1899 = vmatmul.f32.gmra.mxu0 %v1881
    %v1900 = vpop.f32.mrf.mxu0
    %v1901 = vadd.f32 %v1232, %v1900
    %1902 = vdwg.mxu0
    %1903 = vmatpush.msra.mxu0 0.0
    %1904 = vmatpush.msra.mxu0 0.0
    %1905 = vmatpush.msra.mxu0 0.0
    %1906 = vmatpush.msra.mxu0 0.0
    %1907 = vmatpush.msra.mxu0 %v1229
    %1908 = vmatpush.msra.mxu0 %v1227
    %1909 = vmatpush.msra.mxu0 %v1225
    %1910 = vmatpush.msra.mxu0 %v1223
    %1911 = vmatpush.msra.mxu0 %v1221
    %1912 = vmatpush.msra.mxu0 %v1219
    %1913 = vmatpush.msra.mxu0 %v1217
    %1914 = vmatpush.msra.mxu0 %v1215
    %1915 = vmatpush.msra.mxu0 %v1213
    %1916 = vmatpush.msra.mxu0 %v1211
    %1917 = vmatpush.msra.mxu0 %v1209
    %1918 = vmatpush.msra.mxu0 %v1207
    %1919 = vmatmul.f32.gmra.mxu0 %v1881
    %v1920 = vpop.f32.mrf.mxu0
    %v1921 = vadd.f32 %v1233, %v1920
    %1922 = vdwg.mxu0
    %v1923 = vxor.u32 %v1901, 2147483648
    %v1924 = vmul.f32 %v1923, 1.442695
    %v1925 = vpow.pop %v1924
    %v1926 = vadd.f32 %v1925, 1.0
    %v1927 = vrcp.pop %v1926
    %v1928 = vmul.f32 %v1926, %v1927
    %v1929 = vsub.f32 1.0, %v1928
    %v1930 = vmul.f32 %v1927, %v1929
    %v1931 = vadd.f32 %v1927, %v1930
    %vm1932 = vweird.f32 %v1926
    %vm1933 = vweird.f32 %v1927
    %vm1934 = vmor %vm1932, %vm1933
    %v1935 = vsel %vm1934, %v1927, %v1931
    %v1936 = vand.u32 2147483647, %v1926
    %vm1937 = vcmp.eq.f32.partialorder %v1936, 8.507059e+37
    %v1938 = vand.u32 %v1926, 2147483648
    %v1939 = vor.u32 1.1754944e-38, %v1938
    %v1940 = vsel %vm1937, %v1939, %v1935
    %v1941 = vmul.f32 1.0, %v1940
    %v1942 = vtanh.pop %v1901
    %v1943 = vmul.f32 %v1941, %v1797
    %1945 = vrot.lane.b32.xlu0 %v1942, 64
    %v1946 = vpop.permute.xlu0 %1945
    %v1948 = vmul.f32 %v1941, %v1946
    %1950 = vrot.lane.b32.xlu0 %v1948, 32
    %v1951 = vpop.permute.xlu0 %1950
    %v1953 = vadd.f32 %v1943, %v1951
    %v1954 = vtanh.pop %v1953
    %1956 = vrot.lane.b32.xlu0 %v1954, 64
    %v1957 = vpop.permute.xlu0 %1956
    %v1959 = vmul.f32 %v1941, %v1957
    %v1960 = vxor.u32 %v1921, 2147483648
    %v1961 = vmul.f32 %v1960, 1.442695
    %v1962 = vpow.pop %v1961
    %v1963 = vadd.f32 %v1962, 1.0
    %v1964 = vrcp.pop %v1963
    %v1965 = vmul.f32 %v1963, %v1964
    %v1966 = vsub.f32 1.0, %v1965
    %v1967 = vmul.f32 %v1964, %v1966
    %v1968 = vadd.f32 %v1964, %v1967
    %vm1969 = vweird.f32 %v1963
    %vm1970 = vweird.f32 %v1964
    %vm1971 = vmor %vm1969, %vm1970
    %v1972 = vsel %vm1971, %v1964, %v1968
    %v1973 = vand.u32 2147483647, %v1963
    %vm1974 = vcmp.eq.f32.partialorder %v1973, 8.507059e+37
    %v1975 = vand.u32 %v1963, 2147483648
    %v1976 = vor.u32 1.1754944e-38, %v1975
    %v1977 = vsel %vm1974, %v1976, %v1972
    %v1978 = vmul.f32 1.0, %v1977
    %v1979 = vtanh.pop %v1921
    %v1980 = vmul.f32 %v1978, %v1834
    %1982 = vrot.lane.b32.xlu0 %v1979, 64
    %v1983 = vpop.permute.xlu0 %1982
    %v1985 = vmul.f32 %v1978, %v1983
    %1987 = vrot.lane.b32.xlu0 %v1985, 32
    %v1988 = vpop.permute.xlu0 %1987
    %v1990 = vadd.f32 %v1980, %v1988
    %v1991 = vtanh.pop %v1990
    %1993 = vrot.lane.b32.xlu0 %v1991, 64
    %v1994 = vpop.permute.xlu0 %1993
    %v1996 = vmul.f32 %v1978, %v1994
    %1998 = vrot.lane.b32.xlu0 %v1959, 32
    %v1999 = vpop.permute.xlu0 %1998
    %s2001 = scalar_lea.vmem [#allocation4], 8
    %2002 = vst.msk [vmem:[%s2001] sm:$0x3] %vm184, %v1999
    %2004 = vrot.lane.b32.xlu0 %v1996, 32
    %v2005 = vpop.permute.xlu0 %2004
    %s2007 = scalar_lea.vmem [#allocation5], 6
    %2008 = vst.msk [vmem:[%s2007 - $0x2] sm:$0xc] %vm191, %v2005
    %v2009 = vld [vmem:[%s911] sm:$0x3]
    %v2010 = vld [vmem:[%s483] sm:$0x3]
    %2012 = vrot.lane.b32.xlu0 %v2010, 32
    %v2013 = vpop.permute.xlu0 %2012
    %v2015 = vsel %vm1242, %v2009, %v2013
    %v2016 = vld [vmem:[%s477] sm:$0x3]
    %v2017 = vld [vmem:[%s917] sm:$0x3]
    %2019 = vrot.lane.b32.xlu0 %v2017, 32
    %v2020 = vpop.permute.xlu0 %2019
    %v2022 = vsel %vm1242, %v2016, %v2020
    %2023 = vrot.lane.b32.xlu0 %v1959, 96
    %v2024 = vpop.permute.xlu0 %2023
    %v2026 = vsel %vm54, %v2015, %v2024
    %v2027 = vrot.slane %v1996, 2
    %2028 = vrot.lane.b32.xlu0 %v2027, 96
    %v2029 = vpop.permute.xlu0 %2028
    %v2031 = vsel %vm54, %v2022, %v2029
    %v2033 = vrot.slane %v2031, 6
    %v2035 = vsel %vm60, %v2026, %v2033
    %v2037 = vsel %vm62, %v2035, 0
    %2039 = vmatpush.msra.mxu0 0.0
    %2040 = vmatpush.msra.mxu0 0.0
    %2041 = vmatpush.msra.mxu0 0.0
    %2042 = vmatpush.msra.mxu0 0.0
    %2043 = vmatpush.msra.mxu0 %v1228
    %2044 = vmatpush.msra.mxu0 %v1226
    %2045 = vmatpush.msra.mxu0 %v1224
    %2046 = vmatpush.msra.mxu0 %v1222
    %2047 = vmatpush.msra.mxu0 %v1220
    %2048 = vmatpush.msra.mxu0 %v1218
    %2049 = vmatpush.msra.mxu0 %v1216
    %2050 = vmatpush.msra.mxu0 %v1214
    %2051 = vmatpush.msra.mxu0 %v1212
    %2052 = vmatpush.msra.mxu0 %v1210
    %2053 = vmatpush.msra.mxu0 %v1208
    %2054 = vmatpush.msra.mxu0 %v1206
    %2055 = vmatmul.f32.gmra.mxu0 %v2037
    %v2056 = vpop.f32.mrf.mxu0
    %v2057 = vadd.f32 %v1232, %v2056
    %2058 = vdwg.mxu0
    %2059 = vmatpush.msra.mxu0 0.0
    %2060 = vmatpush.msra.mxu0 0.0
    %2061 = vmatpush.msra.mxu0 0.0
    %2062 = vmatpush.msra.mxu0 0.0
    %2063 = vmatpush.msra.mxu0 %v1229
    %2064 = vmatpush.msra.mxu0 %v1227
    %2065 = vmatpush.msra.mxu0 %v1225
    %2066 = vmatpush.msra.mxu0 %v1223
    %2067 = vmatpush.msra.mxu0 %v1221
    %2068 = vmatpush.msra.mxu0 %v1219
    %2069 = vmatpush.msra.mxu0 %v1217
    %2070 = vmatpush.msra.mxu0 %v1215
    %2071 = vmatpush.msra.mxu0 %v1213
    %2072 = vmatpush.msra.mxu0 %v1211
    %2073 = vmatpush.msra.mxu0 %v1209
    %2074 = vmatpush.msra.mxu0 %v1207
    %2075 = vmatmul.f32.gmra.mxu0 %v2037
    %v2076 = vpop.f32.mrf.mxu0
    %v2077 = vadd.f32 %v1233, %v2076
    %2078 = vdwg.mxu0
    %v2079 = vxor.u32 %v2057, 2147483648
    %v2080 = vmul.f32 %v2079, 1.442695
    %v2081 = vpow.pop %v2080
    %v2082 = vadd.f32 %v2081, 1.0
    %v2083 = vrcp.pop %v2082
    %v2084 = vmul.f32 %v2082, %v2083
    %v2085 = vsub.f32 1.0, %v2084
    %v2086 = vmul.f32 %v2083, %v2085
    %v2087 = vadd.f32 %v2083, %v2086
    %vm2088 = vweird.f32 %v2082
    %vm2089 = vweird.f32 %v2083
    %vm2090 = vmor %vm2088, %vm2089
    %v2091 = vsel %vm2090, %v2083, %v2087
    %v2092 = vand.u32 2147483647, %v2082
    %vm2093 = vcmp.eq.f32.partialorder %v2092, 8.507059e+37
    %v2094 = vand.u32 %v2082, 2147483648
    %v2095 = vor.u32 1.1754944e-38, %v2094
    %v2096 = vsel %vm2093, %v2095, %v2091
    %v2097 = vmul.f32 1.0, %v2096
    %v2098 = vtanh.pop %v2057
    %v2099 = vmul.f32 %v2097, %v1953
    %2101 = vrot.lane.b32.xlu0 %v2098, 64
    %v2102 = vpop.permute.xlu0 %2101
    %v2104 = vmul.f32 %v2097, %v2102
    %2106 = vrot.lane.b32.xlu0 %v2104, 32
    %v2107 = vpop.permute.xlu0 %2106
    %v2109 = vadd.f32 %v2099, %v2107
    %v2110 = vtanh.pop %v2109
    %2112 = vrot.lane.b32.xlu0 %v2110, 64
    %v2113 = vpop.permute.xlu0 %2112
    %v2115 = vmul.f32 %v2097, %v2113
    %v2116 = vxor.u32 %v2077, 2147483648
    %v2117 = vmul.f32 %v2116, 1.442695
    %v2118 = vpow.pop %v2117
    %v2119 = vadd.f32 %v2118, 1.0
    %v2120 = vrcp.pop %v2119
    %v2121 = vmul.f32 %v2119, %v2120
    %v2122 = vsub.f32 1.0, %v2121
    %v2123 = vmul.f32 %v2120, %v2122
    %v2124 = vadd.f32 %v2120, %v2123
    %vm2125 = vweird.f32 %v2119
    %vm2126 = vweird.f32 %v2120
    %vm2127 = vmor %vm2125, %vm2126
    %v2128 = vsel %vm2127, %v2120, %v2124
    %v2129 = vand.u32 2147483647, %v2119
    %vm2130 = vcmp.eq.f32.partialorder %v2129, 8.507059e+37
    %v2131 = vand.u32 %v2119, 2147483648
    %v2132 = vor.u32 1.1754944e-38, %v2131
    %v2133 = vsel %vm2130, %v2132, %v2128
    %v2134 = vmul.f32 1.0, %v2133
    %v2135 = vtanh.pop %v2077
    %v2136 = vmul.f32 %v2134, %v1990
    %2138 = vrot.lane.b32.xlu0 %v2135, 64
    %v2139 = vpop.permute.xlu0 %2138
    %v2141 = vmul.f32 %v2134, %v2139
    %2143 = vrot.lane.b32.xlu0 %v2141, 32
    %v2144 = vpop.permute.xlu0 %2143
    %v2146 = vadd.f32 %v2136, %v2144
    %v2147 = vtanh.pop %v2146
    %2149 = vrot.lane.b32.xlu0 %v2147, 64
    %v2150 = vpop.permute.xlu0 %2149
    %v2152 = vmul.f32 %v2134, %v2150
    %2154 = vrot.lane.b32.xlu0 %v2115, 32
    %v2155 = vpop.permute.xlu0 %2154
    %s2157 = scalar_lea.vmem [#allocation4], 10
    %2158 = vst.msk [vmem:[%s2157] sm:$0x3] %vm184, %v2155
    %2160 = vrot.lane.b32.xlu0 %v2152, 32
    %v2161 = vpop.permute.xlu0 %2160
    %s2163 = scalar_lea.vmem [#allocation5], 4
    %2164 = vst.msk [vmem:[%s2163 - $0x2] sm:$0xc] %vm191, %v2161
    %v2165 = vld [vmem:[%s1055] sm:$0x3]
    %v2166 = vld [vmem:[%s337] sm:$0x3]
    %2168 = vrot.lane.b32.xlu0 %v2166, 32
    %v2169 = vpop.permute.xlu0 %2168
    %v2171 = vsel %vm1242, %v2165, %v2169
    %v2172 = vld [vmem:[%s331] sm:$0x3]
    %v2173 = vld [vmem:[%s1061] sm:$0x3]
    %2175 = vrot.lane.b32.xlu0 %v2173, 32
    %v2176 = vpop.permute.xlu0 %2175
    %v2178 = vsel %vm1242, %v2172, %v2176
    %2179 = vrot.lane.b32.xlu0 %v2115, 96
    %v2180 = vpop.permute.xlu0 %2179
    %v2182 = vsel %vm54, %v2171, %v2180
    %v2183 = vrot.slane %v2152, 2
    %2184 = vrot.lane.b32.xlu0 %v2183, 96
    %v2185 = vpop.permute.xlu0 %2184
    %v2187 = vsel %vm54, %v2178, %v2185
    %v2189 = vrot.slane %v2187, 6
    %v2191 = vsel %vm60, %v2182, %v2189
    %v2193 = vsel %vm62, %v2191, 0
    %2195 = vmatpush.msra.mxu0 0.0
    %2196 = vmatpush.msra.mxu0 0.0
    %2197 = vmatpush.msra.mxu0 0.0
    %2198 = vmatpush.msra.mxu0 0.0
    %2199 = vmatpush.msra.mxu0 %v1228
    %2200 = vmatpush.msra.mxu0 %v1226
    %2201 = vmatpush.msra.mxu0 %v1224
    %2202 = vmatpush.msra.mxu0 %v1222
    %2203 = vmatpush.msra.mxu0 %v1220
    %2204 = vmatpush.msra.mxu0 %v1218
    %2205 = vmatpush.msra.mxu0 %v1216
    %2206 = vmatpush.msra.mxu0 %v1214
    %2207 = vmatpush.msra.mxu0 %v1212
    %2208 = vmatpush.msra.mxu0 %v1210
    %2209 = vmatpush.msra.mxu0 %v1208
    %2210 = vmatpush.msra.mxu0 %v1206
    %2211 = vmatmul.f32.gmra.mxu0 %v2193
    %v2212 = vpop.f32.mrf.mxu0
    %v2213 = vadd.f32 %v1232, %v2212
    %2214 = vdwg.mxu0
    %2215 = vmatpush.msra.mxu0 0.0
    %2216 = vmatpush.msra.mxu0 0.0
    %2217 = vmatpush.msra.mxu0 0.0
    %2218 = vmatpush.msra.mxu0 0.0
    %2219 = vmatpush.msra.mxu0 %v1229
    %2220 = vmatpush.msra.mxu0 %v1227
    %2221 = vmatpush.msra.mxu0 %v1225
    %2222 = vmatpush.msra.mxu0 %v1223
    %2223 = vmatpush.msra.mxu0 %v1221
    %2224 = vmatpush.msra.mxu0 %v1219
    %2225 = vmatpush.msra.mxu0 %v1217
    %2226 = vmatpush.msra.mxu0 %v1215
    %2227 = vmatpush.msra.mxu0 %v1213
    %2228 = vmatpush.msra.mxu0 %v1211
    %2229 = vmatpush.msra.mxu0 %v1209
    %2230 = vmatpush.msra.mxu0 %v1207
    %2231 = vmatmul.f32.gmra.mxu0 %v2193
    %v2232 = vpop.f32.mrf.mxu0
    %v2233 = vadd.f32 %v1233, %v2232
    %2234 = vdwg.mxu0
    %v2235 = vxor.u32 %v2213, 2147483648
    %v2236 = vmul.f32 %v2235, 1.442695
    %v2237 = vpow.pop %v2236
    %v2238 = vadd.f32 %v2237, 1.0
    %v2239 = vrcp.pop %v2238
    %v2240 = vmul.f32 %v2238, %v2239
    %v2241 = vsub.f32 1.0, %v2240
    %v2242 = vmul.f32 %v2239, %v2241
    %v2243 = vadd.f32 %v2239, %v2242
    %vm2244 = vweird.f32 %v2238
    %vm2245 = vweird.f32 %v2239
    %vm2246 = vmor %vm2244, %vm2245
    %v2247 = vsel %vm2246, %v2239, %v2243
    %v2248 = vand.u32 2147483647, %v2238
    %vm2249 = vcmp.eq.f32.partialorder %v2248, 8.507059e+37
    %v2250 = vand.u32 %v2238, 2147483648
    %v2251 = vor.u32 1.1754944e-38, %v2250
    %v2252 = vsel %vm2249, %v2251, %v2247
    %v2253 = vmul.f32 1.0, %v2252
    %v2254 = vtanh.pop %v2213
    %v2255 = vmul.f32 %v2253, %v2109
    %2257 = vrot.lane.b32.xlu0 %v2254, 64
    %v2258 = vpop.permute.xlu0 %2257
    %v2260 = vmul.f32 %v2253, %v2258
    %2262 = vrot.lane.b32.xlu0 %v2260, 32
    %v2263 = vpop.permute.xlu0 %2262
    %v2265 = vadd.f32 %v2255, %v2263
    %v2266 = vtanh.pop %v2265
    %2268 = vrot.lane.b32.xlu0 %v2266, 64
    %v2269 = vpop.permute.xlu0 %2268
    %v2271 = vmul.f32 %v2253, %v2269
    %v2272 = vxor.u32 %v2233, 2147483648
    %v2273 = vmul.f32 %v2272, 1.442695
    %v2274 = vpow.pop %v2273
    %v2275 = vadd.f32 %v2274, 1.0
    %v2276 = vrcp.pop %v2275
    %v2277 = vmul.f32 %v2275, %v2276
    %v2278 = vsub.f32 1.0, %v2277
    %v2279 = vmul.f32 %v2276, %v2278
    %v2280 = vadd.f32 %v2276, %v2279
    %vm2281 = vweird.f32 %v2275
    %vm2282 = vweird.f32 %v2276
    %vm2283 = vmor %vm2281, %vm2282
    %v2284 = vsel %vm2283, %v2276, %v2280
    %v2285 = vand.u32 2147483647, %v2275
    %vm2286 = vcmp.eq.f32.partialorder %v2285, 8.507059e+37
    %v2287 = vand.u32 %v2275, 2147483648
    %v2288 = vor.u32 1.1754944e-38, %v2287
    %v2289 = vsel %vm2286, %v2288, %v2284
    %v2290 = vmul.f32 1.0, %v2289
    %v2291 = vtanh.pop %v2233
    %v2292 = vmul.f32 %v2290, %v2146
    %2294 = vrot.lane.b32.xlu0 %v2291, 64
    %v2295 = vpop.permute.xlu0 %2294
    %v2297 = vmul.f32 %v2290, %v2295
    %2299 = vrot.lane.b32.xlu0 %v2297, 32
    %v2300 = vpop.permute.xlu0 %2299
    %v2302 = vadd.f32 %v2292, %v2300
    %v2303 = vtanh.pop %v2302
    %2305 = vrot.lane.b32.xlu0 %v2303, 64
    %v2306 = vpop.permute.xlu0 %2305
    %v2308 = vmul.f32 %v2290, %v2306
    %2310 = vrot.lane.b32.xlu0 %v2271, 32
    %v2311 = vpop.permute.xlu0 %2310
    %s2313 = scalar_lea.vmem [#allocation4], 12
    %2314 = vst.msk [vmem:[%s2313] sm:$0x3] %vm184, %v2311
    %2316 = vrot.lane.b32.xlu0 %v2308, 32
    %v2317 = vpop.permute.xlu0 %2316
    %s2319 = scalar_lea.vmem [#allocation5], 2
    %2320 = vst.msk [vmem:[%s2319 - $0x2] sm:$0xc] %vm191, %v2317
    %v2321 = vld [vmem:[%s1199] sm:$0x3]
    %v2322 = vld [vmem:[%s190] sm:$0x3]
    %2324 = vrot.lane.b32.xlu0 %v2322, 32
    %v2325 = vpop.permute.xlu0 %2324
    %v2327 = vsel %vm1242, %v2321, %v2325
    %v2328 = vld [vmem:[#allocation2] sm:$0x3]
    %v2329 = vld [vmem:[#allocation3] sm:$0x3]
    %2331 = vrot.lane.b32.xlu0 %v2329, 32
    %v2332 = vpop.permute.xlu0 %2331
    %v2334 = vsel %vm1242, %v2328, %v2332
    %2335 = vrot.lane.b32.xlu0 %v2271, 96
    %v2336 = vpop.permute.xlu0 %2335
    %v2338 = vsel %vm54, %v2327, %v2336
    %v2339 = vrot.slane %v2308, 2
    %2340 = vrot.lane.b32.xlu0 %v2339, 96
    %v2341 = vpop.permute.xlu0 %2340
    %v2343 = vsel %vm54, %v2334, %v2341
    %v2345 = vrot.slane %v2343, 6
    %v2347 = vsel %vm60, %v2338, %v2345
    %v2349 = vsel %vm62, %v2347, 0
    %2351 = vmatpush.msra.mxu0 0.0
    %2352 = vmatpush.msra.mxu0 0.0
    %2353 = vmatpush.msra.mxu0 0.0
    %2354 = vmatpush.msra.mxu0 0.0
    %2355 = vmatpush.msra.mxu0 %v1228
    %2356 = vmatpush.msra.mxu0 %v1226
    %2357 = vmatpush.msra.mxu0 %v1224
    %2358 = vmatpush.msra.mxu0 %v1222
    %2359 = vmatpush.msra.mxu0 %v1220
    %2360 = vmatpush.msra.mxu0 %v1218
    %2361 = vmatpush.msra.mxu0 %v1216
    %2362 = vmatpush.msra.mxu0 %v1214
    %2363 = vmatpush.msra.mxu0 %v1212
    %2364 = vmatpush.msra.mxu0 %v1210
    %2365 = vmatpush.msra.mxu0 %v1208
    %2366 = vmatpush.msra.mxu0 %v1206
    %2367 = vmatmul.f32.gmra.mxu0 %v2349
    %v2368 = vpop.f32.mrf.mxu0
    %v2369 = vadd.f32 %v1232, %v2368
    %2370 = vdwg.mxu0
    %2371 = vmatpush.msra.mxu0 0.0
    %2372 = vmatpush.msra.mxu0 0.0
    %2373 = vmatpush.msra.mxu0 0.0
    %2374 = vmatpush.msra.mxu0 0.0
    %2375 = vmatpush.msra.mxu0 %v1229
    %2376 = vmatpush.msra.mxu0 %v1227
    %2377 = vmatpush.msra.mxu0 %v1225
    %2378 = vmatpush.msra.mxu0 %v1223
    %2379 = vmatpush.msra.mxu0 %v1221
    %2380 = vmatpush.msra.mxu0 %v1219
    %2381 = vmatpush.msra.mxu0 %v1217
    %2382 = vmatpush.msra.mxu0 %v1215
    %2383 = vmatpush.msra.mxu0 %v1213
    %2384 = vmatpush.msra.mxu0 %v1211
    %2385 = vmatpush.msra.mxu0 %v1209
    %2386 = vmatpush.msra.mxu0 %v1207
    %2387 = vmatmul.f32.gmra.mxu0 %v2349
    %v2388 = vpop.f32.mrf.mxu0
    %v2389 = vadd.f32 %v1233, %v2388
    %2390 = vdwg.mxu0
    %v2391 = vxor.u32 %v2369, 2147483648
    %v2392 = vmul.f32 %v2391, 1.442695
    %v2393 = vpow.pop %v2392
    %v2394 = vadd.f32 %v2393, 1.0
    %v2395 = vrcp.pop %v2394
    %v2396 = vmul.f32 %v2394, %v2395
    %v2397 = vsub.f32 1.0, %v2396
    %v2398 = vmul.f32 %v2395, %v2397
    %v2399 = vadd.f32 %v2395, %v2398
    %vm2400 = vweird.f32 %v2394
    %vm2401 = vweird.f32 %v2395
    %vm2402 = vmor %vm2400, %vm2401
    %v2403 = vsel %vm2402, %v2395, %v2399
    %v2404 = vand.u32 2147483647, %v2394
    %vm2405 = vcmp.eq.f32.partialorder %v2404, 8.507059e+37
    %v2406 = vand.u32 %v2394, 2147483648
    %v2407 = vor.u32 1.1754944e-38, %v2406
    %v2408 = vsel %vm2405, %v2407, %v2403
    %v2409 = vmul.f32 1.0, %v2408
    %v2410 = vtanh.pop %v2369
    %v2411 = vmul.f32 %v2409, %v2265
    %2413 = vrot.lane.b32.xlu0 %v2410, 64
    %v2414 = vpop.permute.xlu0 %2413
    %v2416 = vmul.f32 %v2409, %v2414
    %2418 = vrot.lane.b32.xlu0 %v2416, 32
    %v2419 = vpop.permute.xlu0 %2418
    %v2421 = vadd.f32 %v2411, %v2419
    %v2422 = vtanh.pop %v2421
    %2424 = vrot.lane.b32.xlu0 %v2422, 64
    %v2425 = vpop.permute.xlu0 %2424
    %v2427 = vmul.f32 %v2409, %v2425
    %v2428 = vxor.u32 %v2389, 2147483648
    %v2429 = vmul.f32 %v2428, 1.442695
    %v2430 = vpow.pop %v2429
    %v2431 = vadd.f32 %v2430, 1.0
    %v2432 = vrcp.pop %v2431
    %v2433 = vmul.f32 %v2431, %v2432
    %v2434 = vsub.f32 1.0, %v2433
    %v2435 = vmul.f32 %v2432, %v2434
    %v2436 = vadd.f32 %v2432, %v2435
    %vm2437 = vweird.f32 %v2431
    %vm2438 = vweird.f32 %v2432
    %vm2439 = vmor %vm2437, %vm2438
    %v2440 = vsel %vm2439, %v2432, %v2436
    %v2441 = vand.u32 2147483647, %v2431
    %vm2442 = vcmp.eq.f32.partialorder %v2441, 8.507059e+37
    %v2443 = vand.u32 %v2431, 2147483648
    %v2444 = vor.u32 1.1754944e-38, %v2443
    %v2445 = vsel %vm2442, %v2444, %v2440
    %v2446 = vmul.f32 1.0, %v2445
    %v2447 = vtanh.pop %v2389
    %v2448 = vmul.f32 %v2446, %v2302
    %2450 = vrot.lane.b32.xlu0 %v2447, 64
    %v2451 = vpop.permute.xlu0 %2450
    %v2453 = vmul.f32 %v2446, %v2451
    %2455 = vrot.lane.b32.xlu0 %v2453, 32
    %v2456 = vpop.permute.xlu0 %2455
    %v2458 = vadd.f32 %v2448, %v2456
    %v2459 = vtanh.pop %v2458
    %2461 = vrot.lane.b32.xlu0 %v2459, 64
    %v2462 = vpop.permute.xlu0 %2461
    %v2464 = vmul.f32 %v2446, %v2462
    %2466 = vrot.lane.b32.xlu0 %v2427, 32
    %v2467 = vpop.permute.xlu0 %2466
    %s2469 = scalar_lea.vmem [#allocation4], 14
    %2470 = vst.msk [vmem:[%s2469] sm:$0x3] %vm184, %v2467
    %2472 = vrot.lane.b32.xlu0 %v2464, 32
    %v2473 = vpop.permute.xlu0 %2472
    %2475 = vst.msk [vmem:[#allocation5 - $0x2] sm:$0xc] %vm191, %v2473
    %v2476 = vld [vmem:[#allocation4] sm:$0x3]
    %v2477 = vld [vmem:[#allocation4 + $0x2] sm:$0x3]
    %v2478 = vld [vmem:[#allocation4 + $0x4] sm:$0x3]
    %v2479 = vld [vmem:[#allocation4 + $0x6] sm:$0x3]
    %v2480 = vld [vmem:[#allocation4 + $0x8] sm:$0x3]
    %v2481 = vld [vmem:[#allocation4 + $0xa] sm:$0x3]
    %v2482 = vld [vmem:[#allocation4 + $0xc] sm:$0x3]
    %v2483 = vld [vmem:[#allocation4 + $0xe] sm:$0x3]
    %v2484 = vld [vmem:[#allocation5] sm:$0x3]
    %v2485 = vld [vmem:[#allocation5 + $0x2] sm:$0x3]
    %v2486 = vld [vmem:[#allocation5 + $0x4] sm:$0x3]
    %v2487 = vld [vmem:[#allocation5 + $0x6] sm:$0x3]
    %v2488 = vld [vmem:[#allocation5 + $0x8] sm:$0x3]
    %v2489 = vld [vmem:[#allocation5 + $0xa] sm:$0x3]
    %v2490 = vld [vmem:[#allocation5 + $0xc] sm:$0x3]
    %v2491 = vld [vmem:[#allocation5 + $0xe] sm:$0x3]
    %2500 = vrot.lane.b32.xlu0 %v2484, 32
    %v2501 = vpop.permute.xlu0 %2500
    %2502 = vrot.lane.b32.xlu0 %v2485, 32
    %v2503 = vpop.permute.xlu0 %2502
    %2504 = vrot.lane.b32.xlu0 %v2486, 32
    %v2505 = vpop.permute.xlu0 %2504
    %2506 = vrot.lane.b32.xlu0 %v2487, 32
    %v2507 = vpop.permute.xlu0 %2506
    %2508 = vrot.lane.b32.xlu0 %v2488, 32
    %v2509 = vpop.permute.xlu0 %2508
    %2510 = vrot.lane.b32.xlu0 %v2489, 32
    %v2511 = vpop.permute.xlu0 %2510
    %2512 = vrot.lane.b32.xlu0 %v2490, 32
    %v2513 = vpop.permute.xlu0 %2512
    %2514 = vrot.lane.b32.xlu0 %v2491, 32
    %v2515 = vpop.permute.xlu0 %2514
    %v2524 = vsel %vm1242, %v2476, %v2501
    %v2525 = vsel %vm1242, %v2477, %v2503
    %v2526 = vsel %vm1242, %v2478, %v2505
    %v2527 = vsel %vm1242, %v2479, %v2507
    %v2528 = vsel %vm1242, %v2480, %v2509
    %v2529 = vsel %vm1242, %v2481, %v2511
    %v2530 = vsel %vm1242, %v2482, %v2513
    %v2531 = vsel %vm1242, %v2483, %v2515
    %v2540 = vrot.slane %v2525, 7
    %vm2541 = vcmask 1041409
    %v2542 = vsel %vm2541, %v2540, %v2524
    %v2543 = vrot.slane %v2526, 6
    %vm2544 = vcmask 1042434
    %v2545 = vsel %vm2544, %v2543, %v2542
    %v2546 = vrot.slane %v2527, 5
    %vm2547 = vcmask 1043459
    %v2548 = vsel %vm2547, %v2546, %v2545
    %v2549 = vrot.slane %v2528, 4
    %vm2550 = vcmask 1044484
    %v2551 = vsel %vm2550, %v2549, %v2548
    %v2552 = vrot.slane %v2529, 3
    %vm2553 = vcmask 1045509
    %v2554 = vsel %vm2553, %v2552, %v2551
    %v2555 = vrot.slane %v2530, 2
    %vm2556 = vcmask 1046534
    %v2557 = vsel %vm2556, %v2555, %v2554
    %v2558 = vrot.slane %v2531, 1
    %vm2559 = vcmask 1047559
    %v2560 = vsel %vm2559, %v2558, %v2557
    %2562 = vst.msk [vmem:[#allocation6] sm:$0xff] %vm54, %v2560
    %v2563 = vsel %vm2544, %v2540, %v2524
    %v2564 = vsel %vm2547, %v2543, %v2563
    %v2565 = vsel %vm2550, %v2546, %v2564
    %v2566 = vsel %vm2553, %v2549, %v2565
    %v2567 = vsel %vm2556, %v2552, %v2566
    %v2568 = vsel %vm2559, %v2555, %v2567
    %s2571 = scalar_lea.vmem [#allocation6], 8
    %vm2572 = vcmask 523265
    %2573 = vst.msk [vmem:[%s2571 - $0x1] sm:$0xfe] %vm2572, %v2568
    %vm2574 = vcmask 516096
    %2575 = vst.msk [vmem:[%s2571 + $0x7] sm:$0x1] %vm2574, %v2558
    // Predicated region
    $region22: #{sequence_encoder_forward.1} parent=1 // pred_check
      _
    $region23: #{sequence_encoder_forward.1} parent=1 // pred_check_branch
      %2577 = sbr.rel (0) target = $region25
    $region24: #{sequence_encoder_forward.1} parent=1 // pred_region
      %2579 = vsyncadd [#allocation7], 0
      %s2580 = sshll.u32 [#allocation6], 4
      %s2581 = int_to_ptr.vmem [resolvable:$true] %s2580
      %s2582 = sshll.u32 %s5, 4
      %s2583 = int_to_ptr.hbm [resolvable:$true] %s2582
      %2588 = dma.vmem_to_hbm [thread:$0]  %s2581, 256, %s2583, [#allocation7], 128, 128, 8
    $region25: #{sequence_encoder_forward.1} parent=1 // pred_fallthru
      _
    // Predicated region
    $region26: #{sequence_encoder_forward.1} parent=1 // pred_check
      _
    $region27: #{sequence_encoder_forward.1} parent=1 // pred_check_branch
      %2590 = sbr.rel (0) target = $region29
    $region28: #{sequence_encoder_forward.1} parent=1 // pred_region
      %2592 = dma.done [#allocation7], 256
    $region29: #{sequence_encoder_forward.1} parent=1 // pred_fallthru
      _
    %2593 = vsyncpa [#allocation7], 1

</llo_original>
